<compile_context>
chip_gen: v6e
topology: v6e:2x2x1
jax: 0.10.0
libtpu: 0.0.40
codegen_flags: <defaults>
</compile_context>

<pallas_src>
import jax
import jax.numpy as jnp
from jax.experimental import pallas as pl
from jax.experimental.pallas import tpu as pltpu

# ---- configuration (matches the module's default constructor) ---------------
XYZ_DIMS = 3                          # positionalEncoding=False
IN_DIM = 512                          # dims_sdf[0] is always 512
SDF_DIMS = [256, 256]                 # sdf_dims ctor arg
DIMS_SDF = [IN_DIM] + SDF_DIMS + [1]  # [512, 256, 256, 1]
NUM_LAYERS = len(DIMS_SDF)            # 4 -> 3 linear layers


def _round_up(x, m):
    return (x + m - 1) // m * m


def _device_defaults():
    """Pick the per-generation compute strategy (safe fallback = v5e path)."""
    try:
        kind = jax.devices()[0].device_kind.lower()
    except Exception:
        kind = ""
    newer_gen = any(tag in kind for tag in ("v6", "v7", "tpu7"))
    if newer_gen:
        # v6e/v7x: MXU has slack, VALU is binding, bf16 VALU exists.
        return dict(use_mxu_layer0=True, ew_dtype=jnp.bfloat16)
    # v5e (and older / unknown): no bf16 VPU/EUP, MXU is co-binding.
    return dict(use_mxu_layer0=False, ew_dtype=jnp.float32)


def _make_kernel(use_mxu_layer0, ew_dtype):
    """One slab of tile_n points.  ew_dtype = dtype for post-matmul
    bias/ReLU elementwise math (bf16 on v6e/v7x, f32 on v5e)."""

    def kernel(x_ref, w0_ref, b0_ref, w1_ref, b1_ref, w2_ref, b2_ref, o_ref):
        x = x_ref[...]                                   # (tile_n, 3)  f32
        w0 = w0_ref[...]                                 # (3, 256)     f32

        # -- layer 0: 512 -> 256, reduced to the 3 non-zero input rows -------
        if use_mxu_layer0:
            # v6e/v7x: push layer 0 onto the otherwise-idle MXU.  f32 operands
            # (Mosaic pads K=3); xyz coordinates are precision sensitive.
            h = jnp.dot(x, w0, preferred_element_type=jnp.float32)
        else:
            # v5e: 3 broadcast FMAs on the VPU (MXU already co-binding, and no
            # bf16 VALU to cheapen the alternative).
            h = x[:, 0:1] * w0[0:1, :]
            h = h + x[:, 1:2] * w0[1:2, :]
            h = h + x[:, 2:3] * w0[2:3, :]
        h = h.astype(ew_dtype) + b0_ref[...]             # bias pre-cast in wrapper
        h = jnp.maximum(h, 0.0)                          # ReLU

        # -- layer 1: 256 -> 256 (MXU, bf16 operands, f32 accumulation) ------
        h = jnp.dot(h.astype(w1_ref.dtype), w1_ref[...],
                    preferred_element_type=jnp.float32)
        h = h.astype(ew_dtype) + b1_ref[...]
        h = jnp.maximum(h, 0.0)                          # ReLU

        # -- layer 2: 256 -> 1 (no ReLU on the last linear) -------------------
        out = jnp.dot(h.astype(w2_ref.dtype), w2_ref[...],
                      preferred_element_type=jnp.float32) + b2_ref[...]

        # final self.th = nn.Tanh()
        o_ref[...] = jnp.tanh(out).astype(o_ref.dtype)

    return kernel


def refnet_forward(x, params, *, tile_n=1024, mxu_dtype=jnp.bfloat16,
                   use_mxu_layer0=None, ew_dtype=None):
    """x: (N, 3).  params: weights stored as (in, out), biases as (1, out)."""
    n = x.shape[0]

    cfg = _device_defaults()
    if use_mxu_layer0 is None:
        use_mxu_layer0 = cfg["use_mxu_layer0"]
    if ew_dtype is None:
        ew_dtype = cfg["ew_dtype"]

    # v7x has 2 TensorCores; the "parallel" grid axis is how work is sharded
    # across them, so keep >= 2 grid steps whenever there is enough work
    # (cap tile_n at ceil(N/2) rounded up to a sublane multiple of 8).
    tile_n = max(8, min(int(tile_n), _round_up(pl.cdiv(n, 2), 8)))

    n_tiles = pl.cdiv(n, tile_n)
    n_pad = n_tiles * tile_n

    x = x.astype(jnp.float32)
    if n_pad != n:                      # ragged N: pad, slice the tail off after
        x = jnp.pad(x, ((0, n_pad - n), (0, 0)))

    # Only the first XYZ_DIMS rows of w0 can contribute (rest hit zeros).
    w0 = params["w0"][:XYZ_DIMS, :].astype(jnp.float32)   # (3, 256)
    b0 = params["b0"].astype(ew_dtype)                     # (1, 256)
    w1 = params["w1"].astype(mxu_dtype)                    # (256, 256) MXU
    b1 = params["b1"].astype(ew_dtype)                     # (1, 256)
    w2 = params["w2"].astype(mxu_dtype)                    # (256, 1)   MXU
    b2 = params["b2"].astype(jnp.float32)                  # (1, 1)     f32

    def inv(shape):  # grid-invariant full-array block (fetched once: constant map)
        return pl.BlockSpec(shape, lambda i: (0, 0))

    weight_bytes = sum(int(a.size) * a.dtype.itemsize
                       for a in (w0, b0, w1, b1, w2, b2))

    # Explicit scoped-VMEM budget: v5e defaults to 16 MiB which large tiles can
    # trip; keep the cap well under v7x's 64 MiB physical VMEM.
    vmem_est = (2 * weight_bytes                       # double-buffered weights
                + 2 * tile_n * (XYZ_DIMS + 1) * 4      # double-buffered x / out
                + 6 * tile_n * 256 * 4)                # f32/bf16 intermediates
    vmem_limit = int(min(max(2 * vmem_est, 32 * 1024 * 1024), 48 * 1024 * 1024))

    flops = 2 * n_pad * (XYZ_DIMS * 256 + 256 * 256 + 256 * 1)
    bytes_accessed = n_pad * (XYZ_DIMS + 1) * 4 + weight_bytes

    kernel = _make_kernel(use_mxu_layer0, ew_dtype)

    out = pl.pallas_call(
        kernel,
        out_shape=jax.ShapeDtypeStruct((n_pad, 1), jnp.float32),
        grid_spec=pltpu.PrefetchScalarGridSpec(
            num_scalar_prefetch=0,
            grid=(n_tiles,),
            in_specs=[
                pl.BlockSpec((tile_n, XYZ_DIMS), lambda i: (i, 0)),   # x tile
                inv(w0.shape), inv(b0.shape),
                inv(w1.shape), inv(b1.shape),
                inv(w2.shape), inv(b2.shape),
            ],
            out_specs=pl.BlockSpec((tile_n, 1), lambda i: (i, 0)),
        ),
        compiler_params=pltpu.CompilerParams(
            dimension_semantics=("parallel",),
            vmem_limit_bytes=vmem_limit,
        ),
        cost_estimate=pl.CostEstimate(
            flops=flops,
            transcendentals=n_pad,           # final tanh
            bytes_accessed=bytes_accessed,
        ),
    )(x, w0, b0, w1, b1, w2, b2)
    return out[:n]


def init_params(key):
    """Mimics nn.Linear default init: U(-1/sqrt(in), 1/sqrt(in)); stored (in, out)."""
    params = {}
    keys = jax.random.split(key, 2 * (NUM_LAYERS - 1))
    for layer in range(NUM_LAYERS - 1):
        fan_in = DIMS_SDF[layer]
        fan_out = DIMS_SDF[layer + 1]
        bound = 1.0 / jnp.sqrt(fan_in)
        w = jax.random.uniform(keys[2 * layer], (fan_in, fan_out),
                               minval=-bound, maxval=bound, dtype=jnp.float32)
        b = jax.random.uniform(keys[2 * layer + 1], (1, fan_out),
                               minval=-bound, maxval=bound, dtype=jnp.float32)
        params[f"w{layer}"] = w
        params[f"b{layer}"] = b
    return params


def refnet_reference(x, params):
    """Pure-JAX f32 reference following the PyTorch forward verbatim."""
    n = x.shape[0]
    y = jnp.concatenate(
        [x.astype(jnp.float32), jnp.zeros((n, IN_DIM - XYZ_DIMS), jnp.float32)],
        axis=1)
    for layer in range(NUM_LAYERS - 1):
        y = y @ params[f"w{layer}"] + params[f"b{layer}"]
        if layer < NUM_LAYERS - 2:
            y = jnp.maximum(y, 0.0)
    return jnp.tanh(y)


if __name__ == "__main__":
    key = jax.random.PRNGKey(0)
    kx, kp = jax.random.split(key)

    # 2 grid steps of 1024 points each -> both v7x TensorCores get work and
    # the ~0.35 us/step overhead is amortized; still tiny (24 KB of input).
    N = 2048
    x = jax.random.normal(kx, (N, XYZ_DIMS), dtype=jnp.float32)
    params = init_params(kp)

    out = jax.block_until_ready(refnet_forward(x, params, tile_n=1024))
    ref = refnet_reference(x, params)

    assert out.shape == (N, 1), out.shape
    # bf16 MXU operands (f32 accumulation, bf16 elementwise on v6e/v7x) vs the
    # pure-f32 reference; tanh output is O(1) so this tolerance is comfortable.
    assert jnp.allclose(out, ref, atol=2e-2, rtol=2e-2), \
        f"max abs err {jnp.max(jnp.abs(out - ref))}"

    print("KERNEL_OK")
</pallas_src>

<mosaic_0001>
module attributes {stable_mosaic.version = 11 : i64} {
  func.func @kernel(%arg0: i32, %arg1: memref<1024x3xf32, #tpu.memory_space<vmem>>, %arg2: memref<3x256xf32, #tpu.memory_space<vmem>>, %arg3: memref<1x256xf32, #tpu.memory_space<vmem>>, %arg4: memref<256x256xbf16, #tpu.memory_space<vmem>>, %arg5: memref<1x256xf32, #tpu.memory_space<vmem>>, %arg6: memref<256x1xbf16, #tpu.memory_space<vmem>>, %arg7: memref<1x1xf32, #tpu.memory_space<vmem>>, %arg8: memref<1024x1xf32, #tpu.memory_space<vmem>>) attributes {dimension_semantics = [#tpu.dimension_semantics<parallel>], iteration_bounds = array<i64: 2>, scalar_prefetch = 0 : i64, scratch_operands = 0 : i64, tpu.core_type = #tpu.core_type<tc>, window_params = [{transform_indices = @transform_0, window_bounds = array<i64: 1024, 3>}, {pipeline_mode = #tpu.pipeline_mode<synchronous>, transform_indices = @transform_1, window_bounds = array<i64: 3, 256>}, {pipeline_mode = #tpu.pipeline_mode<synchronous>, transform_indices = @transform_2, window_bounds = array<i64: 1, 256>}, {pipeline_mode = #tpu.pipeline_mode<synchronous>, transform_indices = @transform_3, window_bounds = array<i64: 256, 256>}, {pipeline_mode = #tpu.pipeline_mode<synchronous>, transform_indices = @transform_4, window_bounds = array<i64: 1, 256>}, {pipeline_mode = #tpu.pipeline_mode<synchronous>, transform_indices = @transform_5, window_bounds = array<i64: 256, 1>}, {pipeline_mode = #tpu.pipeline_mode<synchronous>, transform_indices = @transform_6, window_bounds = array<i64: 1, 1>}, {transform_indices = @transform_7, window_bounds = array<i64: 1024, 1>}]} {
    %c0 = arith.constant 0 : index
    %c0_0 = arith.constant 0 : index
    %0 = vector.load %arg1[%c0, %c0_0] : memref<1024x3xf32, #tpu.memory_space<vmem>>, vector<1024x3xf32>
    %c0_1 = arith.constant 0 : index
    %c0_2 = arith.constant 0 : index
    %1 = vector.load %arg2[%c0_1, %c0_2] : memref<3x256xf32, #tpu.memory_space<vmem>>, vector<3x256xf32>
    %2 = vector.extract_strided_slice %0 {offsets = [0, 0], sizes = [1024, 1], strides = [1, 1]} : vector<1024x3xf32> to vector<1024x1xf32>
    %3 = vector.extract_strided_slice %1 {offsets = [0, 0], sizes = [1, 256], strides = [1, 1]} : vector<3x256xf32> to vector<1x256xf32>
    %4 = vector.broadcast %2 : vector<1024x1xf32> to vector<1024x256xf32>
    %5 = vector.broadcast %3 : vector<1x256xf32> to vector<1024x256xf32>
    %6 = arith.mulf %4, %5 : vector<1024x256xf32>
    %7 = vector.extract_strided_slice %0 {offsets = [0, 1], sizes = [1024, 1], strides = [1, 1]} : vector<1024x3xf32> to vector<1024x1xf32>
    %8 = vector.extract_strided_slice %1 {offsets = [1, 0], sizes = [1, 256], strides = [1, 1]} : vector<3x256xf32> to vector<1x256xf32>
    %9 = vector.broadcast %7 : vector<1024x1xf32> to vector<1024x256xf32>
    %10 = vector.broadcast %8 : vector<1x256xf32> to vector<1024x256xf32>
    %11 = arith.mulf %9, %10 : vector<1024x256xf32>
    %12 = arith.addf %6, %11 : vector<1024x256xf32>
    %13 = vector.extract_strided_slice %0 {offsets = [0, 2], sizes = [1024, 1], strides = [1, 1]} : vector<1024x3xf32> to vector<1024x1xf32>
    %14 = vector.extract_strided_slice %1 {offsets = [2, 0], sizes = [1, 256], strides = [1, 1]} : vector<3x256xf32> to vector<1x256xf32>
    %15 = vector.broadcast %13 : vector<1024x1xf32> to vector<1024x256xf32>
    %16 = vector.broadcast %14 : vector<1x256xf32> to vector<1024x256xf32>
    %17 = arith.mulf %15, %16 : vector<1024x256xf32>
    %18 = arith.addf %12, %17 : vector<1024x256xf32>
    %c0_3 = arith.constant 0 : index
    %c0_4 = arith.constant 0 : index
    %19 = vector.load %arg3[%c0_3, %c0_4] : memref<1x256xf32, #tpu.memory_space<vmem>>, vector<1x256xf32>
    %20 = vector.broadcast %19 : vector<1x256xf32> to vector<1024x256xf32>
    %21 = arith.addf %18, %20 : vector<1024x256xf32>
    %cst = arith.constant 0.000000e+00 : f32
    %22 = vector.broadcast %cst : f32 to vector<1024x256xf32>
    %23 = arith.maximumf %21, %22 : vector<1024x256xf32>
    %24 = arith.truncf %23 : vector<1024x256xf32> to vector<1024x256xbf16>
    %c0_5 = arith.constant 0 : index
    %c0_6 = arith.constant 0 : index
    %25 = vector.load %arg4[%c0_5, %c0_6] : memref<256x256xbf16, #tpu.memory_space<vmem>>, vector<256x256xbf16>
    %cst_7 = arith.constant dense<0.000000e+00> : vector<1024x256xf32>
    %26 = tpu.matmul %24, %25, %cst_7 {dimension_numbers = #tpu.dot_dimension_numbers<[1], [0], [0], [1], [0, 0, 1, 1], [], []>} : vector<1024x256xbf16>, vector<256x256xbf16>, vector<1024x256xf32> -> vector<1024x256xf32>
    %c0_8 = arith.constant 0 : index
    %c0_9 = arith.constant 0 : index
    %27 = vector.load %arg5[%c0_8, %c0_9] : memref<1x256xf32, #tpu.memory_space<vmem>>, vector<1x256xf32>
    %28 = vector.broadcast %27 : vector<1x256xf32> to vector<1024x256xf32>
    %29 = arith.addf %26, %28 : vector<1024x256xf32>
    %cst_10 = arith.constant 0.000000e+00 : f32
    %30 = vector.broadcast %cst_10 : f32 to vector<1024x256xf32>
    %31 = arith.maximumf %29, %30 : vector<1024x256xf32>
    %32 = arith.truncf %31 : vector<1024x256xf32> to vector<1024x256xbf16>
    %c0_11 = arith.constant 0 : index
    %c0_12 = arith.constant 0 : index
    %33 = vector.load %arg6[%c0_11, %c0_12] : memref<256x1xbf16, #tpu.memory_space<vmem>>, vector<256x1xbf16>
    %cst_13 = arith.constant dense<0.000000e+00> : vector<1024x1xf32>
    %34 = tpu.matmul %32, %33, %cst_13 {dimension_numbers = #tpu.dot_dimension_numbers<[1], [0], [0], [1], [0, 0, 1, 1], [], []>} : vector<1024x256xbf16>, vector<256x1xbf16>, vector<1024x1xf32> -> vector<1024x1xf32>
    %c0_14 = arith.constant 0 : index
    %c0_15 = arith.constant 0 : index
    %35 = vector.load %arg7[%c0_14, %c0_15] : memref<1x1xf32, #tpu.memory_space<vmem>>, vector<1x1xf32>
    %36 = vector.broadcast %35 : vector<1x1xf32> to vector<1024x1xf32>
    %37 = arith.addf %34, %36 : vector<1024x1xf32>
    %38 = math.tanh %37 : vector<1024x1xf32>
    %c0_16 = arith.constant 0 : index
    %c0_17 = arith.constant 0 : index
    %39 = vector.load %arg8[%c0_16, %c0_17] : memref<1024x1xf32, #tpu.memory_space<vmem>>, vector<1024x1xf32>
    tpu.vector_store %arg8[%c0_16, %c0_17], %38 {strides = array<i32>} : memref<1024x1xf32, #tpu.memory_space<vmem>>, vector<1024x1xf32>,
    return
  }
  func.func @transform_0(%arg0: i32) -> (i32, i32) {
    %c0_i32 = arith.constant 0 : i32
    %c0_i32_0 = arith.constant 0 : i32
    return %arg0, %c0_i32 : i32, i32
  }
  func.func @transform_1(%arg0: i32) -> (i32, i32) {
    %c0_i32 = arith.constant 0 : i32
    %c0_i32_0 = arith.constant 0 : i32
    %c0_i32_1 = arith.constant 0 : i32
    return %c0_i32, %c0_i32_0 : i32, i32
  }
  func.func @transform_2(%arg0: i32) -> (i32, i32) {
    %c0_i32 = arith.constant 0 : i32
    %c0_i32_0 = arith.constant 0 : i32
    %c0_i32_1 = arith.constant 0 : i32
    return %c0_i32, %c0_i32_0 : i32, i32
  }
  func.func @transform_3(%arg0: i32) -> (i32, i32) {
    %c0_i32 = arith.constant 0 : i32
    %c0_i32_0 = arith.constant 0 : i32
    %c0_i32_1 = arith.constant 0 : i32
    return %c0_i32, %c0_i32_0 : i32, i32
  }
  func.func @transform_4(%arg0: i32) -> (i32, i32) {
    %c0_i32 = arith.constant 0 : i32
    %c0_i32_0 = arith.constant 0 : i32
    %c0_i32_1 = arith.constant 0 : i32
    return %c0_i32, %c0_i32_0 : i32, i32
  }
  func.func @transform_5(%arg0: i32) -> (i32, i32) {
    %c0_i32 = arith.constant 0 : i32
    %c0_i32_0 = arith.constant 0 : i32
    %c0_i32_1 = arith.constant 0 : i32
    return %c0_i32, %c0_i32_0 : i32, i32
  }
  func.func @transform_6(%arg0: i32) -> (i32, i32) {
    %c0_i32 = arith.constant 0 : i32
    %c0_i32_0 = arith.constant 0 : i32
    %c0_i32_1 = arith.constant 0 : i32
    return %c0_i32, %c0_i32_0 : i32, i32
  }
  func.func @transform_7(%arg0: i32) -> (i32, i32) {
    %c0_i32 = arith.constant 0 : i32
    %c0_i32_0 = arith.constant 0 : i32
    return %arg0, %c0_i32 : i32, i32
  }
}

</mosaic_0001>

<llo_original>
// kernel: tpu_custom_call.1
$region0: #{tpu_custom_call.1}
  #allocation0 [shape = 'u32[]', space=smem, size = 0x4, offset = 0x4, fixed_abs, tag = 'smem constant byte address 0x4 - core index']
  #allocation1 [shape = 'u32[144,128]{1,0:T(1,128)}', space=vmem, size = 0x12000, scoped, tag = 'internal scratch']
  #allocation2 [shape = 'f32[1,1]{1,0:T(1,128)S(1)}', space=vmem, size = 0x200, scoped, tag = 'scoped memory for tpu_custom_call.1']
  %s0 = inlined_call_operand.vmem [shape: f32[2048,3], index: 0, kind: input, shape index: {}]
  %s1 = inlined_call_operand.vmem [shape: f32[3,256], index: 1, kind: input, shape index: {}]
  %s2 = inlined_call_operand.vmem [shape: f32[1,256], index: 2, kind: input, shape index: {}]
  %s3 = inlined_call_operand.vmem [shape: bf16[256,256], index: 3, kind: input, shape index: {}]
  %s4 = inlined_call_operand.vmem [shape: f32[1,256], index: 4, kind: input, shape index: {}]
  %s5 = inlined_call_operand.vmem [shape: bf16[256,1], index: 5, kind: input, shape index: {}]
  %s6 = inlined_call_operand.<no memory space> [shape: f32[1,1], index: 6, kind: input, shape index: {}]
  %s7 = inlined_call_operand.vmem [shape: f32[2048,1], index: 7, kind: output, shape index: {}]
  %s8 = sld [smem:[#allocation0]]
  $region61: #{tpu_custom_call.1} parent=0
    _
  %s10 = ssub.s32 1, %s8
  %s11 = scalar_select 0, %s10, %s8
  %v12 = vstv %s6
  %13 = vst [vmem:[#allocation2] sm:$0x1] %v12
  loop: start=0, step=1, limit=4
  $region2: #{tpu_custom_call.1} parent=0 // loop_pre_header
    _
  $region3: #{tpu_custom_call.1} parent=0 // loop_header
    %s15 = sphi 0, %s19
    %p16 = scmp.ge.s32.totalorder %s15, 4
    %s25 = sphi 0, %s27
    %s28 = sphi 0, %s25
    %s29 = sphi 0, %s28
    %s45 = sphi 0, %s29
    %s49 = sphi 0, %s49
    %s51 = sphi 0, %s49
    %s52 = sphi 0, %s51
    %s66 = sphi 0, %s52
    %s70 = sphi 0, %s70
    %s72 = sphi 0, %s70
    %s73 = sphi 0, %s72
    %s87 = sphi 0, %s73
    %s91 = sphi 0, %s91
    %s93 = sphi 0, %s91
    %s94 = sphi 0, %s93
    %s108 = sphi 0, %s94
    %s112 = sphi 0, %s112
    %s114 = sphi 0, %s112
    %s115 = sphi 0, %s114
    %s129 = sphi 0, %s115
    %s133 = sphi 0, %s133
    %s135 = sphi 0, %s133
    %s136 = sphi 0, %s135
    %s150 = sphi 0, %s136
    %s154 = sphi 0, %s154
    %s156 = sphi 0, %s154
    %s157 = sphi 0, %s156
    %s171 = sphi 0, %s157
    %s177 = sphi 0, %s179
    %s180 = sphi 0, %s177
    %s181 = sphi 0, %s180
    %s197 = sphi 0, %s181
  $region4: #{tpu_custom_call.1} parent=0 // loop_header_branch
    %18 = sbr.rel (%p16) target = $region8
  $region5: #{tpu_custom_call.1} parent=0 // loop_body
    %s20 = ssub.s32 %s15, 1
    %s21 = ssub.s32 %s15, 2
    %s22 = sadd.s32 %s15, 1
    %s23 = ssub.s32 %s15, %s22
    %p24 = scmp.eq.s32.totalorder %s23, 0
    %s26 = sadd.s32 %s25, 1
    %s27 = scalar_select %p24, %s25, %s26
    %p30 = pneg %p24
    %p31 = scmp.eq.s32.totalorder %s15, 1
    %p32 = por %p30, %p31
    %p33 = scmp.ne.s32.totalorder %s25, %s28
    %p34 = scmp.eq.s32.totalorder %s15, 0
    %p35 = por %p33, %p34
    %p36 = scmp.ne.s32.totalorder %s25, %s28
    %p37 = scmp.eq.s32.totalorder %s20, 1
    %p38 = por %p36, %p37
    %p39 = scmp.ne.s32.totalorder %s28, %s29
    %p40 = scmp.eq.s32.totalorder %s20, 0
    %p41 = por %p39, %p40
    %p42 = scmp.ne.s32.totalorder %s28, %s29
    %p43 = scmp.eq.s32.totalorder %s21, 1
    %p44 = por %p42, %p43
    %p46 = scmp.ne.s32.totalorder %s29, %s45
    %p47 = scmp.eq.s32.totalorder %s21, 0
    %p48 = por %p46, %p47
    %s50 = sadd.s32 %s49, 1
    %p53 = scmp.eq.s32.totalorder %s15, 1
    %p54 = scmp.ne.s32.totalorder %s49, %s51
    %p55 = scmp.eq.s32.totalorder %s15, 0
    %p56 = por %p54, %p55
    %p57 = scmp.ne.s32.totalorder %s49, %s51
    %p58 = scmp.eq.s32.totalorder %s20, 1
    %p59 = por %p57, %p58
    %p60 = scmp.ne.s32.totalorder %s51, %s52
    %p61 = scmp.eq.s32.totalorder %s20, 0
    %p62 = por %p60, %p61
    %p63 = scmp.ne.s32.totalorder %s51, %s52
    %p64 = scmp.eq.s32.totalorder %s21, 1
    %p65 = por %p63, %p64
    %p67 = scmp.ne.s32.totalorder %s52, %s66
    %p68 = scmp.eq.s32.totalorder %s21, 0
    %p69 = por %p67, %p68
    %s71 = sadd.s32 %s70, 1
    %p74 = scmp.eq.s32.totalorder %s15, 1
    %p75 = scmp.ne.s32.totalorder %s70, %s72
    %p76 = scmp.eq.s32.totalorder %s15, 0
    %p77 = por %p75, %p76
    %p78 = scmp.ne.s32.totalorder %s70, %s72
    %p79 = scmp.eq.s32.totalorder %s20, 1
    %p80 = por %p78, %p79
    %p81 = scmp.ne.s32.totalorder %s72, %s73
    %p82 = scmp.eq.s32.totalorder %s20, 0
    %p83 = por %p81, %p82
    %p84 = scmp.ne.s32.totalorder %s72, %s73
    %p85 = scmp.eq.s32.totalorder %s21, 1
    %p86 = por %p84, %p85
    %p88 = scmp.ne.s32.totalorder %s73, %s87
    %p89 = scmp.eq.s32.totalorder %s21, 0
    %p90 = por %p88, %p89
    %s92 = sadd.s32 %s91, 1
    %p95 = scmp.eq.s32.totalorder %s15, 1
    %p96 = scmp.ne.s32.totalorder %s91, %s93
    %p97 = scmp.eq.s32.totalorder %s15, 0
    %p98 = por %p96, %p97
    %p99 = scmp.ne.s32.totalorder %s91, %s93
    %p100 = scmp.eq.s32.totalorder %s20, 1
    %p101 = por %p99, %p100
    %p102 = scmp.ne.s32.totalorder %s93, %s94
    %p103 = scmp.eq.s32.totalorder %s20, 0
    %p104 = por %p102, %p103
    %p105 = scmp.ne.s32.totalorder %s93, %s94
    %p106 = scmp.eq.s32.totalorder %s21, 1
    %p107 = por %p105, %p106
    %p109 = scmp.ne.s32.totalorder %s94, %s108
    %p110 = scmp.eq.s32.totalorder %s21, 0
    %p111 = por %p109, %p110
    %s113 = sadd.s32 %s112, 1
    %p116 = scmp.eq.s32.totalorder %s15, 1
    %p117 = scmp.ne.s32.totalorder %s112, %s114
    %p118 = scmp.eq.s32.totalorder %s15, 0
    %p119 = por %p117, %p118
    %p120 = scmp.ne.s32.totalorder %s112, %s114
    %p121 = scmp.eq.s32.totalorder %s20, 1
    %p122 = por %p120, %p121
    %p123 = scmp.ne.s32.totalorder %s114, %s115
    %p124 = scmp.eq.s32.totalorder %s20, 0
    %p125 = por %p123, %p124
    %p126 = scmp.ne.s32.totalorder %s114, %s115
    %p127 = scmp.eq.s32.totalorder %s21, 1
    %p128 = por %p126, %p127
    %p130 = scmp.ne.s32.totalorder %s115, %s129
    %p131 = scmp.eq.s32.totalorder %s21, 0
    %p132 = por %p130, %p131
    %s134 = sadd.s32 %s133, 1
    %p137 = scmp.eq.s32.totalorder %s15, 1
    %p138 = scmp.ne.s32.totalorder %s133, %s135
    %p139 = scmp.eq.s32.totalorder %s15, 0
    %p140 = por %p138, %p139
    %p141 = scmp.ne.s32.totalorder %s133, %s135
    %p142 = scmp.eq.s32.totalorder %s20, 1
    %p143 = por %p141, %p142
    %p144 = scmp.ne.s32.totalorder %s135, %s136
    %p145 = scmp.eq.s32.totalorder %s20, 0
    %p146 = por %p144, %p145
    %p147 = scmp.ne.s32.totalorder %s135, %s136
    %p148 = scmp.eq.s32.totalorder %s21, 1
    %p149 = por %p147, %p148
    %p151 = scmp.ne.s32.totalorder %s136, %s150
    %p152 = scmp.eq.s32.totalorder %s21, 0
    %p153 = por %p151, %p152
    %s155 = sadd.s32 %s154, 1
    %p158 = scmp.eq.s32.totalorder %s15, 1
    %p159 = scmp.ne.s32.totalorder %s154, %s156
    %p160 = scmp.eq.s32.totalorder %s15, 0
    %p161 = por %p159, %p160
    %p162 = scmp.ne.s32.totalorder %s154, %s156
    %p163 = scmp.eq.s32.totalorder %s20, 1
    %p164 = por %p162, %p163
    %p165 = scmp.ne.s32.totalorder %s156, %s157
    %p166 = scmp.eq.s32.totalorder %s20, 0
    %p167 = por %p165, %p166
    %p168 = scmp.ne.s32.totalorder %s156, %s157
    %p169 = scmp.eq.s32.totalorder %s21, 1
    %p170 = por %p168, %p169
    %p172 = scmp.ne.s32.totalorder %s157, %s171
    %p173 = scmp.eq.s32.totalorder %s21, 0
    %p174 = por %p172, %p173
    %s175 = ssub.s32 %s15, %s22
    %p176 = scmp.eq.s32.totalorder %s175, 0
    %s178 = sadd.s32 %s177, 1
    %s179 = scalar_select %p176, %s177, %s178
    %p182 = pneg %p176
    %p183 = scmp.eq.s32.totalorder %s15, 1
    %p184 = por %p182, %p183
    %p185 = scmp.ne.s32.totalorder %s177, %s180
    %p186 = scmp.eq.s32.totalorder %s15, 0
    %p187 = por %p185, %p186
    %p188 = scmp.ne.s32.totalorder %s177, %s180
    %p189 = scmp.eq.s32.totalorder %s20, 1
    %p190 = por %p188, %p189
    %p191 = scmp.ne.s32.totalorder %s180, %s181
    %p192 = scmp.eq.s32.totalorder %s20, 0
    %p193 = por %p191, %p192
    %p194 = scmp.ne.s32.totalorder %s180, %s181
    %p195 = scmp.eq.s32.totalorder %s21, 1
    %p196 = por %p194, %p195
    %p198 = scmp.ne.s32.totalorder %s181, %s197
    %p199 = scmp.eq.s32.totalorder %s21, 0
    %p200 = por %p198, %p199
    %p201 = scmp.le.s32.totalorder 1, %s15
    %p202 = scmp.lt.s32.totalorder %s15, 3
    %p203 = pnand %p201, %p202
    %p204 = pneg %p203
    // Predicated region
    $region9: #{tpu_custom_call.1} parent=5 // pred_check
      _
    $region10: #{tpu_custom_call.1} parent=5 // pred_check_branch
      %206 = sbr.rel (%p203) target = $region12
    $region11: #{tpu_custom_call.1} parent=5 // pred_region
      %s207 = ssub.s32 %s15, 1
      // Predicated region
      $region13: #{tpu_custom_call.1} parent=11 // pred_check
        %p208 = pneg %p62
      $region14: #{tpu_custom_call.1} parent=11 // pred_check_branch
        %210 = sbr.rel (%p208) target = $region16
      $region15: #{tpu_custom_call.1} parent=11 // pred_region
        _
      $region16: #{tpu_custom_call.1} parent=11 // pred_fallthru
        _
      // Predicated region
      $region17: #{tpu_custom_call.1} parent=11 // pred_check
        %p211 = pneg %p83
      $region18: #{tpu_custom_call.1} parent=11 // pred_check_branch
        %213 = sbr.rel (%p211) target = $region20
      $region19: #{tpu_custom_call.1} parent=11 // pred_region
        _
      $region20: #{tpu_custom_call.1} parent=11 // pred_fallthru
        _
      // Predicated region
      $region21: #{tpu_custom_call.1} parent=11 // pred_check
        %p214 = pneg %p104
      $region22: #{tpu_custom_call.1} parent=11 // pred_check_branch
        %216 = sbr.rel (%p214) target = $region24
      $region23: #{tpu_custom_call.1} parent=11 // pred_region
        _
      $region24: #{tpu_custom_call.1} parent=11 // pred_fallthru
        _
      // Predicated region
      $region25: #{tpu_custom_call.1} parent=11 // pred_check
        %p217 = pneg %p125
      $region26: #{tpu_custom_call.1} parent=11 // pred_check_branch
        %219 = sbr.rel (%p217) target = $region28
      $region27: #{tpu_custom_call.1} parent=11 // pred_region
        _
      $region28: #{tpu_custom_call.1} parent=11 // pred_fallthru
        _
      // Predicated region
      $region29: #{tpu_custom_call.1} parent=11 // pred_check
        %p220 = pneg %p146
      $region30: #{tpu_custom_call.1} parent=11 // pred_check_branch
        %222 = sbr.rel (%p220) target = $region32
      $region31: #{tpu_custom_call.1} parent=11 // pred_region
        _
      $region32: #{tpu_custom_call.1} parent=11 // pred_fallthru
        _
      // Predicated region
      $region33: #{tpu_custom_call.1} parent=11 // pred_check
        %p223 = pneg %p167
      $region34: #{tpu_custom_call.1} parent=11 // pred_check_branch
        %225 = sbr.rel (%p223) target = $region36
      $region35: #{tpu_custom_call.1} parent=11 // pred_region
        _
      $region36: #{tpu_custom_call.1} parent=11 // pred_fallthru
        _
    $region12: #{tpu_custom_call.1} parent=5 // pred_fallthru
      _
    %p226 = scmp.lt.s32.totalorder %s15, 2
    // Predicated region
    $region37: #{tpu_custom_call.1} parent=5 // pred_check
      %p227 = pneg %p226
    $region38: #{tpu_custom_call.1} parent=5 // pred_check_branch
      %229 = sbr.rel (%p227) target = $region40
    $region39: #{tpu_custom_call.1} parent=5 // pred_region
      // Predicated region
      $region41: #{tpu_custom_call.1} parent=39 // pred_check
        %p230 = pneg %p35
      $region42: #{tpu_custom_call.1} parent=39 // pred_check_branch
        %232 = sbr.rel (%p230) target = $region44
      $region43: #{tpu_custom_call.1} parent=39 // pred_region
        %s233 = smul.u32 128, %s15
        %p234 = scmp.lt.s32.totalorder %s233, 255
        %s235 = scalar_select %p234, %s233, 255
        %s236 = smul.addr %s235, 8
        %s237 = scalar_lea.vmem %s0, %s236
        %s238 = smul.u32 128, %s15
      $region44: #{tpu_custom_call.1} parent=39 // pred_fallthru
        _
    $region40: #{tpu_custom_call.1} parent=5 // pred_fallthru
      _
    %p239 = scmp.le.s32.totalorder 1, %s15
    %p240 = scmp.lt.s32.totalorder %s15, 3
    %p241 = pnand %p239, %p240
    %p242 = pneg %p241
    // Predicated region
    $region45: #{tpu_custom_call.1} parent=5 // pred_check
      _
    $region46: #{tpu_custom_call.1} parent=5 // pred_check_branch
      %244 = sbr.rel (%p241) target = $region48
    $region47: #{tpu_custom_call.1} parent=5 // pred_region
      %s245 = ssub.s32 %s15, 1
      %s246 = smul.u32 128, %s20
      %p247 = scmp.lt.s32.totalorder %s246, 255
      %s248 = scalar_select %p247, %s246, 255
      %s249 = smul.addr %s248, 8
      %s250 = scalar_lea.vmem %s0, %s249
      %p251 = pneg %p41
      %p252 = pneg %p38
      %p253 = pneg %p62
      %p254 = pneg %p59
      %p255 = pneg %p83
      %p256 = pneg %p80
      %p257 = pneg %p104
      %p258 = pneg %p101
      %p259 = pneg %p125
      %p260 = pneg %p122
      %p261 = pneg %p146
      %p262 = pneg %p143
      %p263 = pneg %p167
      %p264 = pneg %p164
      %p265 = pneg %p193
      %p266 = pneg %p190
      %s267 = smul.u32 128, %s20
      %p268 = scmp.lt.s32.totalorder %s267, 255
      %s269 = scalar_select %p268, %s267, 255
      %s270 = smul.addr %s269, 8
      %s271 = scalar_lea.vmem %s7, %s270
      %s272 = smul.u32 128, %s20
      %p273 = scmp.lt.s32.totalorder %s272, 255
      %s274 = scalar_select %p273, %s272, 255
      %s275 = smul.addr %s274, 8
      %s276 = scalar_lea.vmem %s0, %s275
      %s277 = smul.u32 128, %s20
      %s278 = smul.u32 128, %s20
      %p279 = scmp.lt.s32.totalorder %s278, 255
      %s280 = scalar_select %p279, %s278, 255
      %s281 = smul.addr %s280, 8
      %s282 = scalar_lea.vmem %s7, %s281
      %s283 = smul.u32 128, %s20
      %v285 = vld [vmem:[%s276] sm:$0xff]
      %v286 = vld [vmem:[%s276 + $0x8] sm:$0xff]
      %v287 = vld [vmem:[%s276 + $0x10] sm:$0xff]
      %v288 = vld [vmem:[%s276 + $0x18] sm:$0xff]
      %v289 = vld [vmem:[%s276 + $0x20] sm:$0xff]
      %v290 = vld [vmem:[%s276 + $0x28] sm:$0xff]
      %v291 = vld [vmem:[%s276 + $0x30] sm:$0xff]
      %v292 = vld [vmem:[%s276 + $0x38] sm:$0xff]
      %v293 = vld [vmem:[%s276 + $0x40] sm:$0xff]
      %v294 = vld [vmem:[%s276 + $0x48] sm:$0xff]
      %v295 = vld [vmem:[%s276 + $0x50] sm:$0xff]
      %v296 = vld [vmem:[%s276 + $0x58] sm:$0xff]
      %v297 = vld [vmem:[%s276 + $0x60] sm:$0xff]
      %v298 = vld [vmem:[%s276 + $0x68] sm:$0xff]
      %v299 = vld [vmem:[%s276 + $0x70] sm:$0xff]
      %v300 = vld [vmem:[%s276 + $0x78] sm:$0xff]
      %v301 = vld [vmem:[%s276 + $0x80] sm:$0xff]
      %v302 = vld [vmem:[%s276 + $0x88] sm:$0xff]
      %v303 = vld [vmem:[%s276 + $0x90] sm:$0xff]
      %v304 = vld [vmem:[%s276 + $0x98] sm:$0xff]
      %v305 = vld [vmem:[%s276 + $0xa0] sm:$0xff]
      %v306 = vld [vmem:[%s276 + $0xa8] sm:$0xff]
      %v307 = vld [vmem:[%s276 + $0xb0] sm:$0xff]
      %v308 = vld [vmem:[%s276 + $0xb8] sm:$0xff]
      %v309 = vld [vmem:[%s276 + $0xc0] sm:$0xff]
      %v310 = vld [vmem:[%s276 + $0xc8] sm:$0xff]
      %v311 = vld [vmem:[%s276 + $0xd0] sm:$0xff]
      %v312 = vld [vmem:[%s276 + $0xd8] sm:$0xff]
      %v313 = vld [vmem:[%s276 + $0xe0] sm:$0xff]
      %v314 = vld [vmem:[%s276 + $0xe8] sm:$0xff]
      %v315 = vld [vmem:[%s276 + $0xf0] sm:$0xff]
      %v316 = vld [vmem:[%s276 + $0xf8] sm:$0xff]
      %v317 = vld [vmem:[%s276 + $0x100] sm:$0xff]
      %v318 = vld [vmem:[%s276 + $0x108] sm:$0xff]
      %v319 = vld [vmem:[%s276 + $0x110] sm:$0xff]
      %v320 = vld [vmem:[%s276 + $0x118] sm:$0xff]
      %v321 = vld [vmem:[%s276 + $0x120] sm:$0xff]
      %v322 = vld [vmem:[%s276 + $0x128] sm:$0xff]
      %v323 = vld [vmem:[%s276 + $0x130] sm:$0xff]
      %v324 = vld [vmem:[%s276 + $0x138] sm:$0xff]
      %v325 = vld [vmem:[%s276 + $0x140] sm:$0xff]
      %v326 = vld [vmem:[%s276 + $0x148] sm:$0xff]
      %v327 = vld [vmem:[%s276 + $0x150] sm:$0xff]
      %v328 = vld [vmem:[%s276 + $0x158] sm:$0xff]
      %v329 = vld [vmem:[%s276 + $0x160] sm:$0xff]
      %v330 = vld [vmem:[%s276 + $0x168] sm:$0xff]
      %v331 = vld [vmem:[%s276 + $0x170] sm:$0xff]
      %v332 = vld [vmem:[%s276 + $0x178] sm:$0xff]
      %v333 = vld [vmem:[%s276 + $0x180] sm:$0xff]
      %v334 = vld [vmem:[%s276 + $0x188] sm:$0xff]
      %v335 = vld [vmem:[%s276 + $0x190] sm:$0xff]
      %v336 = vld [vmem:[%s276 + $0x198] sm:$0xff]
      %v337 = vld [vmem:[%s276 + $0x1a0] sm:$0xff]
      %v338 = vld [vmem:[%s276 + $0x1a8] sm:$0xff]
      %v339 = vld [vmem:[%s276 + $0x1b0] sm:$0xff]
      %v340 = vld [vmem:[%s276 + $0x1b8] sm:$0xff]
      %v341 = vld [vmem:[%s276 + $0x1c0] sm:$0xff]
      %v342 = vld [vmem:[%s276 + $0x1c8] sm:$0xff]
      %v343 = vld [vmem:[%s276 + $0x1d0] sm:$0xff]
      %v344 = vld [vmem:[%s276 + $0x1d8] sm:$0xff]
      %v345 = vld [vmem:[%s276 + $0x1e0] sm:$0xff]
      %v346 = vld [vmem:[%s276 + $0x1e8] sm:$0xff]
      %v347 = vld [vmem:[%s276 + $0x1f0] sm:$0xff]
      %v348 = vld [vmem:[%s276 + $0x1f8] sm:$0xff]
      %v349 = vld [vmem:[%s276 + $0x200] sm:$0xff]
      %v350 = vld [vmem:[%s276 + $0x208] sm:$0xff]
      %v351 = vld [vmem:[%s276 + $0x210] sm:$0xff]
      %v352 = vld [vmem:[%s276 + $0x218] sm:$0xff]
      %v353 = vld [vmem:[%s276 + $0x220] sm:$0xff]
      %v354 = vld [vmem:[%s276 + $0x228] sm:$0xff]
      %v355 = vld [vmem:[%s276 + $0x230] sm:$0xff]
      %v356 = vld [vmem:[%s276 + $0x238] sm:$0xff]
      %v357 = vld [vmem:[%s276 + $0x240] sm:$0xff]
      %v358 = vld [vmem:[%s276 + $0x248] sm:$0xff]
      %v359 = vld [vmem:[%s276 + $0x250] sm:$0xff]
      %v360 = vld [vmem:[%s276 + $0x258] sm:$0xff]
      %v361 = vld [vmem:[%s276 + $0x260] sm:$0xff]
      %v362 = vld [vmem:[%s276 + $0x268] sm:$0xff]
      %v363 = vld [vmem:[%s276 + $0x270] sm:$0xff]
      %v364 = vld [vmem:[%s276 + $0x278] sm:$0xff]
      %v365 = vld [vmem:[%s276 + $0x280] sm:$0xff]
      %v366 = vld [vmem:[%s276 + $0x288] sm:$0xff]
      %v367 = vld [vmem:[%s276 + $0x290] sm:$0xff]
      %v368 = vld [vmem:[%s276 + $0x298] sm:$0xff]
      %v369 = vld [vmem:[%s276 + $0x2a0] sm:$0xff]
      %v370 = vld [vmem:[%s276 + $0x2a8] sm:$0xff]
      %v371 = vld [vmem:[%s276 + $0x2b0] sm:$0xff]
      %v372 = vld [vmem:[%s276 + $0x2b8] sm:$0xff]
      %v373 = vld [vmem:[%s276 + $0x2c0] sm:$0xff]
      %v374 = vld [vmem:[%s276 + $0x2c8] sm:$0xff]
      %v375 = vld [vmem:[%s276 + $0x2d0] sm:$0xff]
      %v376 = vld [vmem:[%s276 + $0x2d8] sm:$0xff]
      %v377 = vld [vmem:[%s276 + $0x2e0] sm:$0xff]
      %v378 = vld [vmem:[%s276 + $0x2e8] sm:$0xff]
      %v379 = vld [vmem:[%s276 + $0x2f0] sm:$0xff]
      %v380 = vld [vmem:[%s276 + $0x2f8] sm:$0xff]
      %v381 = vld [vmem:[%s276 + $0x300] sm:$0xff]
      %v382 = vld [vmem:[%s276 + $0x308] sm:$0xff]
      %v383 = vld [vmem:[%s276 + $0x310] sm:$0xff]
      %v384 = vld [vmem:[%s276 + $0x318] sm:$0xff]
      %v385 = vld [vmem:[%s276 + $0x320] sm:$0xff]
      %v386 = vld [vmem:[%s276 + $0x328] sm:$0xff]
      %v387 = vld [vmem:[%s276 + $0x330] sm:$0xff]
      %v388 = vld [vmem:[%s276 + $0x338] sm:$0xff]
      %v389 = vld [vmem:[%s276 + $0x340] sm:$0xff]
      %v390 = vld [vmem:[%s276 + $0x348] sm:$0xff]
      %v391 = vld [vmem:[%s276 + $0x350] sm:$0xff]
      %v392 = vld [vmem:[%s276 + $0x358] sm:$0xff]
      %v393 = vld [vmem:[%s276 + $0x360] sm:$0xff]
      %v394 = vld [vmem:[%s276 + $0x368] sm:$0xff]
      %v395 = vld [vmem:[%s276 + $0x370] sm:$0xff]
      %v396 = vld [vmem:[%s276 + $0x378] sm:$0xff]
      %v397 = vld [vmem:[%s276 + $0x380] sm:$0xff]
      %v398 = vld [vmem:[%s276 + $0x388] sm:$0xff]
      %v399 = vld [vmem:[%s276 + $0x390] sm:$0xff]
      %v400 = vld [vmem:[%s276 + $0x398] sm:$0xff]
      %v401 = vld [vmem:[%s276 + $0x3a0] sm:$0xff]
      %v402 = vld [vmem:[%s276 + $0x3a8] sm:$0xff]
      %v403 = vld [vmem:[%s276 + $0x3b0] sm:$0xff]
      %v404 = vld [vmem:[%s276 + $0x3b8] sm:$0xff]
      %v405 = vld [vmem:[%s276 + $0x3c0] sm:$0xff]
      %v406 = vld [vmem:[%s276 + $0x3c8] sm:$0xff]
      %v407 = vld [vmem:[%s276 + $0x3d0] sm:$0xff]
      %v408 = vld [vmem:[%s276 + $0x3d8] sm:$0xff]
      %v409 = vld [vmem:[%s276 + $0x3e0] sm:$0xff]
      %v410 = vld [vmem:[%s276 + $0x3e8] sm:$0xff]
      %v411 = vld [vmem:[%s276 + $0x3f0] sm:$0xff]
      %v412 = vld [vmem:[%s276 + $0x3f8] sm:$0xff]
      %v413 = vld [vmem:[%s1] sm:$0x77]
      %415 = vset.pattern.permute.xlu0 0
      %416 = vperm.xlu0 %415, %v285
      %v417 = vpop.permute.xlu0 %416
      %420 = vset.pattern.permute.xlu0 0
      %421 = vperm.xlu0 %420, %v286
      %v422 = vpop.permute.xlu0 %421
      %425 = vset.pattern.permute.xlu0 0
      %426 = vperm.xlu0 %425, %v287
      %v427 = vpop.permute.xlu0 %426
      %430 = vset.pattern.permute.xlu0 0
      %431 = vperm.xlu0 %430, %v288
      %v432 = vpop.permute.xlu0 %431
      %435 = vset.pattern.permute.xlu0 0
      %436 = vperm.xlu0 %435, %v289
      %v437 = vpop.permute.xlu0 %436
      %440 = vset.pattern.permute.xlu0 0
      %441 = vperm.xlu0 %440, %v290
      %v442 = vpop.permute.xlu0 %441
      %445 = vset.pattern.permute.xlu0 0
      %446 = vperm.xlu0 %445, %v291
      %v447 = vpop.permute.xlu0 %446
      %450 = vset.pattern.permute.xlu0 0
      %451 = vperm.xlu0 %450, %v292
      %v452 = vpop.permute.xlu0 %451
      %455 = vset.pattern.permute.xlu0 0
      %456 = vperm.xlu0 %455, %v293
      %v457 = vpop.permute.xlu0 %456
      %460 = vset.pattern.permute.xlu0 0
      %461 = vperm.xlu0 %460, %v294
      %v462 = vpop.permute.xlu0 %461
      %465 = vset.pattern.permute.xlu0 0
      %466 = vperm.xlu0 %465, %v295
      %v467 = vpop.permute.xlu0 %466
      %470 = vset.pattern.permute.xlu0 0
      %471 = vperm.xlu0 %470, %v296
      %v472 = vpop.permute.xlu0 %471
      %475 = vset.pattern.permute.xlu0 0
      %476 = vperm.xlu0 %475, %v297
      %v477 = vpop.permute.xlu0 %476
      %480 = vset.pattern.permute.xlu0 0
      %481 = vperm.xlu0 %480, %v298
      %v482 = vpop.permute.xlu0 %481
      %485 = vset.pattern.permute.xlu0 0
      %486 = vperm.xlu0 %485, %v299
      %v487 = vpop.permute.xlu0 %486
      %490 = vset.pattern.permute.xlu0 0
      %491 = vperm.xlu0 %490, %v300
      %v492 = vpop.permute.xlu0 %491
      %495 = vset.pattern.permute.xlu0 0
      %496 = vperm.xlu0 %495, %v301
      %v497 = vpop.permute.xlu0 %496
      %500 = vset.pattern.permute.xlu0 0
      %501 = vperm.xlu0 %500, %v302
      %v502 = vpop.permute.xlu0 %501
      %505 = vset.pattern.permute.xlu0 0
      %506 = vperm.xlu0 %505, %v303
      %v507 = vpop.permute.xlu0 %506
      %510 = vset.pattern.permute.xlu0 0
      %511 = vperm.xlu0 %510, %v304
      %v512 = vpop.permute.xlu0 %511
      %515 = vset.pattern.permute.xlu0 0
      %516 = vperm.xlu0 %515, %v305
      %v517 = vpop.permute.xlu0 %516
      %520 = vset.pattern.permute.xlu0 0
      %521 = vperm.xlu0 %520, %v306
      %v522 = vpop.permute.xlu0 %521
      %525 = vset.pattern.permute.xlu0 0
      %526 = vperm.xlu0 %525, %v307
      %v527 = vpop.permute.xlu0 %526
      %530 = vset.pattern.permute.xlu0 0
      %531 = vperm.xlu0 %530, %v308
      %v532 = vpop.permute.xlu0 %531
      %535 = vset.pattern.permute.xlu0 0
      %536 = vperm.xlu0 %535, %v309
      %v537 = vpop.permute.xlu0 %536
      %540 = vset.pattern.permute.xlu0 0
      %541 = vperm.xlu0 %540, %v310
      %v542 = vpop.permute.xlu0 %541
      %545 = vset.pattern.permute.xlu0 0
      %546 = vperm.xlu0 %545, %v311
      %v547 = vpop.permute.xlu0 %546
      %550 = vset.pattern.permute.xlu0 0
      %551 = vperm.xlu0 %550, %v312
      %v552 = vpop.permute.xlu0 %551
      %555 = vset.pattern.permute.xlu0 0
      %556 = vperm.xlu0 %555, %v313
      %v557 = vpop.permute.xlu0 %556
      %560 = vset.pattern.permute.xlu0 0
      %561 = vperm.xlu0 %560, %v314
      %v562 = vpop.permute.xlu0 %561
      %565 = vset.pattern.permute.xlu0 0
      %566 = vperm.xlu0 %565, %v315
      %v567 = vpop.permute.xlu0 %566
      %570 = vset.pattern.permute.xlu0 0
      %571 = vperm.xlu0 %570, %v316
      %v572 = vpop.permute.xlu0 %571
      %575 = vset.pattern.permute.xlu0 0
      %576 = vperm.xlu0 %575, %v317
      %v577 = vpop.permute.xlu0 %576
      %580 = vset.pattern.permute.xlu0 0
      %581 = vperm.xlu0 %580, %v318
      %v582 = vpop.permute.xlu0 %581
      %585 = vset.pattern.permute.xlu0 0
      %586 = vperm.xlu0 %585, %v319
      %v587 = vpop.permute.xlu0 %586
      %590 = vset.pattern.permute.xlu0 0
      %591 = vperm.xlu0 %590, %v320
      %v592 = vpop.permute.xlu0 %591
      %595 = vset.pattern.permute.xlu0 0
      %596 = vperm.xlu0 %595, %v321
      %v597 = vpop.permute.xlu0 %596
      %600 = vset.pattern.permute.xlu0 0
      %601 = vperm.xlu0 %600, %v322
      %v602 = vpop.permute.xlu0 %601
      %605 = vset.pattern.permute.xlu0 0
      %606 = vperm.xlu0 %605, %v323
      %v607 = vpop.permute.xlu0 %606
      %610 = vset.pattern.permute.xlu0 0
      %611 = vperm.xlu0 %610, %v324
      %v612 = vpop.permute.xlu0 %611
      %615 = vset.pattern.permute.xlu0 0
      %616 = vperm.xlu0 %615, %v325
      %v617 = vpop.permute.xlu0 %616
      %620 = vset.pattern.permute.xlu0 0
      %621 = vperm.xlu0 %620, %v326
      %v622 = vpop.permute.xlu0 %621
      %625 = vset.pattern.permute.xlu0 0
      %626 = vperm.xlu0 %625, %v327
      %v627 = vpop.permute.xlu0 %626
      %630 = vset.pattern.permute.xlu0 0
      %631 = vperm.xlu0 %630, %v328
      %v632 = vpop.permute.xlu0 %631
      %635 = vset.pattern.permute.xlu0 0
      %636 = vperm.xlu0 %635, %v329
      %v637 = vpop.permute.xlu0 %636
      %640 = vset.pattern.permute.xlu0 0
      %641 = vperm.xlu0 %640, %v330
      %v642 = vpop.permute.xlu0 %641
      %645 = vset.pattern.permute.xlu0 0
      %646 = vperm.xlu0 %645, %v331
      %v647 = vpop.permute.xlu0 %646
      %650 = vset.pattern.permute.xlu0 0
      %651 = vperm.xlu0 %650, %v332
      %v652 = vpop.permute.xlu0 %651
      %655 = vset.pattern.permute.xlu0 0
      %656 = vperm.xlu0 %655, %v333
      %v657 = vpop.permute.xlu0 %656
      %660 = vset.pattern.permute.xlu0 0
      %661 = vperm.xlu0 %660, %v334
      %v662 = vpop.permute.xlu0 %661
      %665 = vset.pattern.permute.xlu0 0
      %666 = vperm.xlu0 %665, %v335
      %v667 = vpop.permute.xlu0 %666
      %670 = vset.pattern.permute.xlu0 0
      %671 = vperm.xlu0 %670, %v336
      %v672 = vpop.permute.xlu0 %671
      %675 = vset.pattern.permute.xlu0 0
      %676 = vperm.xlu0 %675, %v337
      %v677 = vpop.permute.xlu0 %676
      %680 = vset.pattern.permute.xlu0 0
      %681 = vperm.xlu0 %680, %v338
      %v682 = vpop.permute.xlu0 %681
      %685 = vset.pattern.permute.xlu0 0
      %686 = vperm.xlu0 %685, %v339
      %v687 = vpop.permute.xlu0 %686
      %690 = vset.pattern.permute.xlu0 0
      %691 = vperm.xlu0 %690, %v340
      %v692 = vpop.permute.xlu0 %691
      %695 = vset.pattern.permute.xlu0 0
      %696 = vperm.xlu0 %695, %v341
      %v697 = vpop.permute.xlu0 %696
      %700 = vset.pattern.permute.xlu0 0
      %701 = vperm.xlu0 %700, %v342
      %v702 = vpop.permute.xlu0 %701
      %705 = vset.pattern.permute.xlu0 0
      %706 = vperm.xlu0 %705, %v343
      %v707 = vpop.permute.xlu0 %706
      %710 = vset.pattern.permute.xlu0 0
      %711 = vperm.xlu0 %710, %v344
      %v712 = vpop.permute.xlu0 %711
      %715 = vset.pattern.permute.xlu0 0
      %716 = vperm.xlu0 %715, %v345
      %v717 = vpop.permute.xlu0 %716
      %720 = vset.pattern.permute.xlu0 0
      %721 = vperm.xlu0 %720, %v346
      %v722 = vpop.permute.xlu0 %721
      %725 = vset.pattern.permute.xlu0 0
      %726 = vperm.xlu0 %725, %v347
      %v727 = vpop.permute.xlu0 %726
      %730 = vset.pattern.permute.xlu0 0
      %731 = vperm.xlu0 %730, %v348
      %v732 = vpop.permute.xlu0 %731
      %735 = vset.pattern.permute.xlu0 0
      %736 = vperm.xlu0 %735, %v349
      %v737 = vpop.permute.xlu0 %736
      %740 = vset.pattern.permute.xlu0 0
      %741 = vperm.xlu0 %740, %v350
      %v742 = vpop.permute.xlu0 %741
      %745 = vset.pattern.permute.xlu0 0
      %746 = vperm.xlu0 %745, %v351
      %v747 = vpop.permute.xlu0 %746
      %750 = vset.pattern.permute.xlu0 0
      %751 = vperm.xlu0 %750, %v352
      %v752 = vpop.permute.xlu0 %751
      %755 = vset.pattern.permute.xlu0 0
      %756 = vperm.xlu0 %755, %v353
      %v757 = vpop.permute.xlu0 %756
      %760 = vset.pattern.permute.xlu0 0
      %761 = vperm.xlu0 %760, %v354
      %v762 = vpop.permute.xlu0 %761
      %765 = vset.pattern.permute.xlu0 0
      %766 = vperm.xlu0 %765, %v355
      %v767 = vpop.permute.xlu0 %766
      %770 = vset.pattern.permute.xlu0 0
      %771 = vperm.xlu0 %770, %v356
      %v772 = vpop.permute.xlu0 %771
      %775 = vset.pattern.permute.xlu0 0
      %776 = vperm.xlu0 %775, %v357
      %v777 = vpop.permute.xlu0 %776
      %780 = vset.pattern.permute.xlu0 0
      %781 = vperm.xlu0 %780, %v358
      %v782 = vpop.permute.xlu0 %781
      %785 = vset.pattern.permute.xlu0 0
      %786 = vperm.xlu0 %785, %v359
      %v787 = vpop.permute.xlu0 %786
      %790 = vset.pattern.permute.xlu0 0
      %791 = vperm.xlu0 %790, %v360
      %v792 = vpop.permute.xlu0 %791
      %795 = vset.pattern.permute.xlu0 0
      %796 = vperm.xlu0 %795, %v361
      %v797 = vpop.permute.xlu0 %796
      %800 = vset.pattern.permute.xlu0 0
      %801 = vperm.xlu0 %800, %v362
      %v802 = vpop.permute.xlu0 %801
      %805 = vset.pattern.permute.xlu0 0
      %806 = vperm.xlu0 %805, %v363
      %v807 = vpop.permute.xlu0 %806
      %810 = vset.pattern.permute.xlu0 0
      %811 = vperm.xlu0 %810, %v364
      %v812 = vpop.permute.xlu0 %811
      %815 = vset.pattern.permute.xlu0 0
      %816 = vperm.xlu0 %815, %v365
      %v817 = vpop.permute.xlu0 %816
      %820 = vset.pattern.permute.xlu0 0
      %821 = vperm.xlu0 %820, %v366
      %v822 = vpop.permute.xlu0 %821
      %825 = vset.pattern.permute.xlu0 0
      %826 = vperm.xlu0 %825, %v367
      %v827 = vpop.permute.xlu0 %826
      %830 = vset.pattern.permute.xlu0 0
      %831 = vperm.xlu0 %830, %v368
      %v832 = vpop.permute.xlu0 %831
      %835 = vset.pattern.permute.xlu0 0
      %836 = vperm.xlu0 %835, %v369
      %v837 = vpop.permute.xlu0 %836
      %840 = vset.pattern.permute.xlu0 0
      %841 = vperm.xlu0 %840, %v370
      %v842 = vpop.permute.xlu0 %841
      %845 = vset.pattern.permute.xlu0 0
      %846 = vperm.xlu0 %845, %v371
      %v847 = vpop.permute.xlu0 %846
      %850 = vset.pattern.permute.xlu0 0
      %851 = vperm.xlu0 %850, %v372
      %v852 = vpop.permute.xlu0 %851
      %855 = vset.pattern.permute.xlu0 0
      %856 = vperm.xlu0 %855, %v373
      %v857 = vpop.permute.xlu0 %856
      %860 = vset.pattern.permute.xlu0 0
      %861 = vperm.xlu0 %860, %v374
      %v862 = vpop.permute.xlu0 %861
      %865 = vset.pattern.permute.xlu0 0
      %866 = vperm.xlu0 %865, %v375
      %v867 = vpop.permute.xlu0 %866
      %870 = vset.pattern.permute.xlu0 0
      %871 = vperm.xlu0 %870, %v376
      %v872 = vpop.permute.xlu0 %871
      %875 = vset.pattern.permute.xlu0 0
      %876 = vperm.xlu0 %875, %v377
      %v877 = vpop.permute.xlu0 %876
      %880 = vset.pattern.permute.xlu0 0
      %881 = vperm.xlu0 %880, %v378
      %v882 = vpop.permute.xlu0 %881
      %885 = vset.pattern.permute.xlu0 0
      %886 = vperm.xlu0 %885, %v379
      %v887 = vpop.permute.xlu0 %886
      %890 = vset.pattern.permute.xlu0 0
      %891 = vperm.xlu0 %890, %v380
      %v892 = vpop.permute.xlu0 %891
      %895 = vset.pattern.permute.xlu0 0
      %896 = vperm.xlu0 %895, %v381
      %v897 = vpop.permute.xlu0 %896
      %900 = vset.pattern.permute.xlu0 0
      %901 = vperm.xlu0 %900, %v382
      %v902 = vpop.permute.xlu0 %901
      %905 = vset.pattern.permute.xlu0 0
      %906 = vperm.xlu0 %905, %v383
      %v907 = vpop.permute.xlu0 %906
      %910 = vset.pattern.permute.xlu0 0
      %911 = vperm.xlu0 %910, %v384
      %v912 = vpop.permute.xlu0 %911
      %915 = vset.pattern.permute.xlu0 0
      %916 = vperm.xlu0 %915, %v385
      %v917 = vpop.permute.xlu0 %916
      %920 = vset.pattern.permute.xlu0 0
      %921 = vperm.xlu0 %920, %v386
      %v922 = vpop.permute.xlu0 %921
      %925 = vset.pattern.permute.xlu0 0
      %926 = vperm.xlu0 %925, %v387
      %v927 = vpop.permute.xlu0 %926
      %930 = vset.pattern.permute.xlu0 0
      %931 = vperm.xlu0 %930, %v388
      %v932 = vpop.permute.xlu0 %931
      %935 = vset.pattern.permute.xlu0 0
      %936 = vperm.xlu0 %935, %v389
      %v937 = vpop.permute.xlu0 %936
      %940 = vset.pattern.permute.xlu0 0
      %941 = vperm.xlu0 %940, %v390
      %v942 = vpop.permute.xlu0 %941
      %945 = vset.pattern.permute.xlu0 0
      %946 = vperm.xlu0 %945, %v391
      %v947 = vpop.permute.xlu0 %946
      %950 = vset.pattern.permute.xlu0 0
      %951 = vperm.xlu0 %950, %v392
      %v952 = vpop.permute.xlu0 %951
      %955 = vset.pattern.permute.xlu0 0
      %956 = vperm.xlu0 %955, %v393
      %v957 = vpop.permute.xlu0 %956
      %960 = vset.pattern.permute.xlu0 0
      %961 = vperm.xlu0 %960, %v394
      %v962 = vpop.permute.xlu0 %961
      %965 = vset.pattern.permute.xlu0 0
      %966 = vperm.xlu0 %965, %v395
      %v967 = vpop.permute.xlu0 %966
      %970 = vset.pattern.permute.xlu0 0
      %971 = vperm.xlu0 %970, %v396
      %v972 = vpop.permute.xlu0 %971
      %975 = vset.pattern.permute.xlu0 0
      %976 = vperm.xlu0 %975, %v397
      %v977 = vpop.permute.xlu0 %976
      %980 = vset.pattern.permute.xlu0 0
      %981 = vperm.xlu0 %980, %v398
      %v982 = vpop.permute.xlu0 %981
      %985 = vset.pattern.permute.xlu0 0
      %986 = vperm.xlu0 %985, %v399
      %v987 = vpop.permute.xlu0 %986
      %990 = vset.pattern.permute.xlu0 0
      %991 = vperm.xlu0 %990, %v400
      %v992 = vpop.permute.xlu0 %991
      %995 = vset.pattern.permute.xlu0 0
      %996 = vperm.xlu0 %995, %v401
      %v997 = vpop.permute.xlu0 %996
      %1000 = vset.pattern.permute.xlu0 0
      %1001 = vperm.xlu0 %1000, %v402
      %v1002 = vpop.permute.xlu0 %1001
      %1005 = vset.pattern.permute.xlu0 0
      %1006 = vperm.xlu0 %1005, %v403
      %v1007 = vpop.permute.xlu0 %1006
      %1010 = vset.pattern.permute.xlu0 0
      %1011 = vperm.xlu0 %1010, %v404
      %v1012 = vpop.permute.xlu0 %1011
      %1015 = vset.pattern.permute.xlu0 0
      %1016 = vperm.xlu0 %1015, %v405
      %v1017 = vpop.permute.xlu0 %1016
      %1020 = vset.pattern.permute.xlu0 0
      %1021 = vperm.xlu0 %1020, %v406
      %v1022 = vpop.permute.xlu0 %1021
      %1025 = vset.pattern.permute.xlu0 0
      %1026 = vperm.xlu0 %1025, %v407
      %v1027 = vpop.permute.xlu0 %1026
      %1030 = vset.pattern.permute.xlu0 0
      %1031 = vperm.xlu0 %1030, %v408
      %v1032 = vpop.permute.xlu0 %1031
      %1035 = vset.pattern.permute.xlu0 0
      %1036 = vperm.xlu0 %1035, %v409
      %v1037 = vpop.permute.xlu0 %1036
      %1040 = vset.pattern.permute.xlu0 0
      %1041 = vperm.xlu0 %1040, %v410
      %v1042 = vpop.permute.xlu0 %1041
      %1045 = vset.pattern.permute.xlu0 0
      %1046 = vperm.xlu0 %1045, %v411
      %v1047 = vpop.permute.xlu0 %1046
      %1050 = vset.pattern.permute.xlu0 0
      %1051 = vperm.xlu0 %1050, %v412
      %v1052 = vpop.permute.xlu0 %1051
      %v1055 = vlaneseq
      %v1056 = vshrl.u32 %v1055, 7
      %v1057 = vsub.s32 0, %v1056
      %v1058 = vrot.slane %v413, %v1057
      %v1059 = vlaneseq
      %v1060 = vshrl.u32 %v1059, 7
      %v1061 = vsub.s32 4, %v1060
      %v1062 = vrot.slane %v413, %v1061
      %v1065 = vlaneseq
      %v1066 = vshrl.u32 %v1065, 7
      %v1067 = vsub.s32 0, %v1066
      %v1068 = vrot.slane %v1058, %v1067
      %v1069 = vlaneseq
      %v1070 = vshrl.u32 %v1069, 7
      %v1071 = vsub.s32 0, %v1070
      %v1072 = vrot.slane %v1062, %v1071
      %v1073 = vmul.f32 %v417, %v1068
      %v1074 = vmul.f32 %v417, %v1072
      %v1075 = vmul.f32 %v422, %v1068
      %v1076 = vmul.f32 %v422, %v1072
      %v1077 = vmul.f32 %v427, %v1068
      %v1078 = vmul.f32 %v427, %v1072
      %v1079 = vmul.f32 %v432, %v1068
      %v1080 = vmul.f32 %v432, %v1072
      %v1081 = vmul.f32 %v437, %v1068
      %v1082 = vmul.f32 %v437, %v1072
      %v1083 = vmul.f32 %v442, %v1068
      %v1084 = vmul.f32 %v442, %v1072
      %v1085 = vmul.f32 %v447, %v1068
      %v1086 = vmul.f32 %v447, %v1072
      %v1087 = vmul.f32 %v452, %v1068
      %v1088 = vmul.f32 %v452, %v1072
      %v1089 = vmul.f32 %v457, %v1068
      %v1090 = vmul.f32 %v457, %v1072
      %v1091 = vmul.f32 %v462, %v1068
      %v1092 = vmul.f32 %v462, %v1072
      %v1093 = vmul.f32 %v467, %v1068
      %v1094 = vmul.f32 %v467, %v1072
      %v1095 = vmul.f32 %v472, %v1068
      %v1096 = vmul.f32 %v472, %v1072
      %v1097 = vmul.f32 %v477, %v1068
      %v1098 = vmul.f32 %v477, %v1072
      %v1099 = vmul.f32 %v482, %v1068
      %v1100 = vmul.f32 %v482, %v1072
      %v1101 = vmul.f32 %v487, %v1068
      %v1102 = vmul.f32 %v487, %v1072
      %v1103 = vmul.f32 %v492, %v1068
      %v1104 = vmul.f32 %v492, %v1072
      %v1105 = vmul.f32 %v497, %v1068
      %v1106 = vmul.f32 %v497, %v1072
      %v1107 = vmul.f32 %v502, %v1068
      %v1108 = vmul.f32 %v502, %v1072
      %v1109 = vmul.f32 %v507, %v1068
      %v1110 = vmul.f32 %v507, %v1072
      %v1111 = vmul.f32 %v512, %v1068
      %v1112 = vmul.f32 %v512, %v1072
      %v1113 = vmul.f32 %v517, %v1068
      %v1114 = vmul.f32 %v517, %v1072
      %v1115 = vmul.f32 %v522, %v1068
      %v1116 = vmul.f32 %v522, %v1072
      %v1117 = vmul.f32 %v527, %v1068
      %v1118 = vmul.f32 %v527, %v1072
      %v1119 = vmul.f32 %v532, %v1068
      %v1120 = vmul.f32 %v532, %v1072
      %v1121 = vmul.f32 %v537, %v1068
      %v1122 = vmul.f32 %v537, %v1072
      %v1123 = vmul.f32 %v542, %v1068
      %v1124 = vmul.f32 %v542, %v1072
      %v1125 = vmul.f32 %v547, %v1068
      %v1126 = vmul.f32 %v547, %v1072
      %v1127 = vmul.f32 %v552, %v1068
      %v1128 = vmul.f32 %v552, %v1072
      %v1129 = vmul.f32 %v557, %v1068
      %v1130 = vmul.f32 %v557, %v1072
      %v1131 = vmul.f32 %v562, %v1068
      %v1132 = vmul.f32 %v562, %v1072
      %v1133 = vmul.f32 %v567, %v1068
      %v1134 = vmul.f32 %v567, %v1072
      %v1135 = vmul.f32 %v572, %v1068
      %v1136 = vmul.f32 %v572, %v1072
      %v1137 = vmul.f32 %v577, %v1068
      %v1138 = vmul.f32 %v577, %v1072
      %v1139 = vmul.f32 %v582, %v1068
      %v1140 = vmul.f32 %v582, %v1072
      %v1141 = vmul.f32 %v587, %v1068
      %v1142 = vmul.f32 %v587, %v1072
      %v1143 = vmul.f32 %v592, %v1068
      %v1144 = vmul.f32 %v592, %v1072
      %v1145 = vmul.f32 %v597, %v1068
      %v1146 = vmul.f32 %v597, %v1072
      %v1147 = vmul.f32 %v602, %v1068
      %v1148 = vmul.f32 %v602, %v1072
      %v1149 = vmul.f32 %v607, %v1068
      %v1150 = vmul.f32 %v607, %v1072
      %v1151 = vmul.f32 %v612, %v1068
      %v1152 = vmul.f32 %v612, %v1072
      %v1153 = vmul.f32 %v617, %v1068
      %v1154 = vmul.f32 %v617, %v1072
      %v1155 = vmul.f32 %v622, %v1068
      %v1156 = vmul.f32 %v622, %v1072
      %v1157 = vmul.f32 %v627, %v1068
      %v1158 = vmul.f32 %v627, %v1072
      %v1159 = vmul.f32 %v632, %v1068
      %v1160 = vmul.f32 %v632, %v1072
      %v1161 = vmul.f32 %v637, %v1068
      %v1162 = vmul.f32 %v637, %v1072
      %v1163 = vmul.f32 %v642, %v1068
      %v1164 = vmul.f32 %v642, %v1072
      %v1165 = vmul.f32 %v647, %v1068
      %v1166 = vmul.f32 %v647, %v1072
      %v1167 = vmul.f32 %v652, %v1068
      %v1168 = vmul.f32 %v652, %v1072
      %v1169 = vmul.f32 %v657, %v1068
      %v1170 = vmul.f32 %v657, %v1072
      %v1171 = vmul.f32 %v662, %v1068
      %v1172 = vmul.f32 %v662, %v1072
      %v1173 = vmul.f32 %v667, %v1068
      %v1174 = vmul.f32 %v667, %v1072
      %v1175 = vmul.f32 %v672, %v1068
      %v1176 = vmul.f32 %v672, %v1072
      %v1177 = vmul.f32 %v677, %v1068
      %v1178 = vmul.f32 %v677, %v1072
      %v1179 = vmul.f32 %v682, %v1068
      %v1180 = vmul.f32 %v682, %v1072
      %v1181 = vmul.f32 %v687, %v1068
      %v1182 = vmul.f32 %v687, %v1072
      %v1183 = vmul.f32 %v692, %v1068
      %v1184 = vmul.f32 %v692, %v1072
      %v1185 = vmul.f32 %v697, %v1068
      %v1186 = vmul.f32 %v697, %v1072
      %v1187 = vmul.f32 %v702, %v1068
      %v1188 = vmul.f32 %v702, %v1072
      %v1189 = vmul.f32 %v707, %v1068
      %v1190 = vmul.f32 %v707, %v1072
      %v1191 = vmul.f32 %v712, %v1068
      %v1192 = vmul.f32 %v712, %v1072
      %v1193 = vmul.f32 %v717, %v1068
      %v1194 = vmul.f32 %v717, %v1072
      %v1195 = vmul.f32 %v722, %v1068
      %v1196 = vmul.f32 %v722, %v1072
      %v1197 = vmul.f32 %v727, %v1068
      %v1198 = vmul.f32 %v727, %v1072
      %v1199 = vmul.f32 %v732, %v1068
      %v1200 = vmul.f32 %v732, %v1072
      %v1201 = vmul.f32 %v737, %v1068
      %v1202 = vmul.f32 %v737, %v1072
      %v1203 = vmul.f32 %v742, %v1068
      %v1204 = vmul.f32 %v742, %v1072
      %v1205 = vmul.f32 %v747, %v1068
      %v1206 = vmul.f32 %v747, %v1072
      %v1207 = vmul.f32 %v752, %v1068
      %v1208 = vmul.f32 %v752, %v1072
      %v1209 = vmul.f32 %v757, %v1068
      %v1210 = vmul.f32 %v757, %v1072
      %v1211 = vmul.f32 %v762, %v1068
      %v1212 = vmul.f32 %v762, %v1072
      %v1213 = vmul.f32 %v767, %v1068
      %v1214 = vmul.f32 %v767, %v1072
      %v1215 = vmul.f32 %v772, %v1068
      %v1216 = vmul.f32 %v772, %v1072
      %v1217 = vmul.f32 %v777, %v1068
      %v1218 = vmul.f32 %v777, %v1072
      %v1219 = vmul.f32 %v782, %v1068
      %v1220 = vmul.f32 %v782, %v1072
      %v1221 = vmul.f32 %v787, %v1068
      %v1222 = vmul.f32 %v787, %v1072
      %v1223 = vmul.f32 %v792, %v1068
      %v1224 = vmul.f32 %v792, %v1072
      %v1225 = vmul.f32 %v797, %v1068
      %v1226 = vmul.f32 %v797, %v1072
      %v1227 = vmul.f32 %v802, %v1068
      %v1228 = vmul.f32 %v802, %v1072
      %v1229 = vmul.f32 %v807, %v1068
      %v1230 = vmul.f32 %v807, %v1072
      %v1231 = vmul.f32 %v812, %v1068
      %v1232 = vmul.f32 %v812, %v1072
      %v1233 = vmul.f32 %v817, %v1068
      %v1234 = vmul.f32 %v817, %v1072
      %v1235 = vmul.f32 %v822, %v1068
      %v1236 = vmul.f32 %v822, %v1072
      %v1237 = vmul.f32 %v827, %v1068
      %v1238 = vmul.f32 %v827, %v1072
      %v1239 = vmul.f32 %v832, %v1068
      %v1240 = vmul.f32 %v832, %v1072
      %v1241 = vmul.f32 %v837, %v1068
      %v1242 = vmul.f32 %v837, %v1072
      %v1243 = vmul.f32 %v842, %v1068
      %v1244 = vmul.f32 %v842, %v1072
      %v1245 = vmul.f32 %v847, %v1068
      %v1246 = vmul.f32 %v847, %v1072
      %v1247 = vmul.f32 %v852, %v1068
      %v1248 = vmul.f32 %v852, %v1072
      %v1249 = vmul.f32 %v857, %v1068
      %v1250 = vmul.f32 %v857, %v1072
      %v1251 = vmul.f32 %v862, %v1068
      %v1252 = vmul.f32 %v862, %v1072
      %v1253 = vmul.f32 %v867, %v1068
      %v1254 = vmul.f32 %v867, %v1072
      %v1255 = vmul.f32 %v872, %v1068
      %v1256 = vmul.f32 %v872, %v1072
      %v1257 = vmul.f32 %v877, %v1068
      %v1258 = vmul.f32 %v877, %v1072
      %v1259 = vmul.f32 %v882, %v1068
      %v1260 = vmul.f32 %v882, %v1072
      %v1261 = vmul.f32 %v887, %v1068
      %v1262 = vmul.f32 %v887, %v1072
      %v1263 = vmul.f32 %v892, %v1068
      %v1264 = vmul.f32 %v892, %v1072
      %v1265 = vmul.f32 %v897, %v1068
      %v1266 = vmul.f32 %v897, %v1072
      %v1267 = vmul.f32 %v902, %v1068
      %v1268 = vmul.f32 %v902, %v1072
      %v1269 = vmul.f32 %v907, %v1068
      %v1270 = vmul.f32 %v907, %v1072
      %v1271 = vmul.f32 %v912, %v1068
      %v1272 = vmul.f32 %v912, %v1072
      %v1273 = vmul.f32 %v917, %v1068
      %v1274 = vmul.f32 %v917, %v1072
      %v1275 = vmul.f32 %v922, %v1068
      %v1276 = vmul.f32 %v922, %v1072
      %v1277 = vmul.f32 %v927, %v1068
      %v1278 = vmul.f32 %v927, %v1072
      %v1279 = vmul.f32 %v932, %v1068
      %v1280 = vmul.f32 %v932, %v1072
      %v1281 = vmul.f32 %v937, %v1068
      %v1282 = vmul.f32 %v937, %v1072
      %v1283 = vmul.f32 %v942, %v1068
      %v1284 = vmul.f32 %v942, %v1072
      %v1285 = vmul.f32 %v947, %v1068
      %v1286 = vmul.f32 %v947, %v1072
      %v1287 = vmul.f32 %v952, %v1068
      %v1288 = vmul.f32 %v952, %v1072
      %v1289 = vmul.f32 %v957, %v1068
      %v1290 = vmul.f32 %v957, %v1072
      %v1291 = vmul.f32 %v962, %v1068
      %v1292 = vmul.f32 %v962, %v1072
      %v1293 = vmul.f32 %v967, %v1068
      %v1294 = vmul.f32 %v967, %v1072
      %v1295 = vmul.f32 %v972, %v1068
      %v1296 = vmul.f32 %v972, %v1072
      %v1297 = vmul.f32 %v977, %v1068
      %v1298 = vmul.f32 %v977, %v1072
      %v1299 = vmul.f32 %v982, %v1068
      %v1300 = vmul.f32 %v982, %v1072
      %v1301 = vmul.f32 %v987, %v1068
      %v1302 = vmul.f32 %v987, %v1072
      %v1303 = vmul.f32 %v992, %v1068
      %v1304 = vmul.f32 %v992, %v1072
      %v1305 = vmul.f32 %v997, %v1068
      %v1306 = vmul.f32 %v997, %v1072
      %v1307 = vmul.f32 %v1002, %v1068
      %v1308 = vmul.f32 %v1002, %v1072
      %v1309 = vmul.f32 %v1007, %v1068
      %v1310 = vmul.f32 %v1007, %v1072
      %v1311 = vmul.f32 %v1012, %v1068
      %v1312 = vmul.f32 %v1012, %v1072
      %v1313 = vmul.f32 %v1017, %v1068
      %v1314 = vmul.f32 %v1017, %v1072
      %v1315 = vmul.f32 %v1022, %v1068
      %v1316 = vmul.f32 %v1022, %v1072
      %v1317 = vmul.f32 %v1027, %v1068
      %v1318 = vmul.f32 %v1027, %v1072
      %v1319 = vmul.f32 %v1032, %v1068
      %v1320 = vmul.f32 %v1032, %v1072
      %v1321 = vmul.f32 %v1037, %v1068
      %v1322 = vmul.f32 %v1037, %v1072
      %v1323 = vmul.f32 %v1042, %v1068
      %v1324 = vmul.f32 %v1042, %v1072
      %v1325 = vmul.f32 %v1047, %v1068
      %v1326 = vmul.f32 %v1047, %v1072
      %v1327 = vmul.f32 %v1052, %v1068
      %v1328 = vmul.f32 %v1052, %v1072
      %1329 = vset.pattern.permute.xlu0 1
      %1330 = vperm.xlu0 %1329, %v285
      %v1331 = vpop.permute.xlu0 %1330
      %1333 = vset.pattern.permute.xlu0 1
      %1334 = vperm.xlu0 %1333, %v286
      %v1335 = vpop.permute.xlu0 %1334
      %1337 = vset.pattern.permute.xlu0 1
      %1338 = vperm.xlu0 %1337, %v287
      %v1339 = vpop.permute.xlu0 %1338
      %1341 = vset.pattern.permute.xlu0 1
      %1342 = vperm.xlu0 %1341, %v288
      %v1343 = vpop.permute.xlu0 %1342
      %1345 = vset.pattern.permute.xlu0 1
      %1346 = vperm.xlu0 %1345, %v289
      %v1347 = vpop.permute.xlu0 %1346
      %1349 = vset.pattern.permute.xlu0 1
      %1350 = vperm.xlu0 %1349, %v290
      %v1351 = vpop.permute.xlu0 %1350
      %1353 = vset.pattern.permute.xlu0 1
      %1354 = vperm.xlu0 %1353, %v291
      %v1355 = vpop.permute.xlu0 %1354
      %1357 = vset.pattern.permute.xlu0 1
      %1358 = vperm.xlu0 %1357, %v292
      %v1359 = vpop.permute.xlu0 %1358
      %1361 = vset.pattern.permute.xlu0 1
      %1362 = vperm.xlu0 %1361, %v293
      %v1363 = vpop.permute.xlu0 %1362
      %1365 = vset.pattern.permute.xlu0 1
      %1366 = vperm.xlu0 %1365, %v294
      %v1367 = vpop.permute.xlu0 %1366
      %1369 = vset.pattern.permute.xlu0 1
      %1370 = vperm.xlu0 %1369, %v295
      %v1371 = vpop.permute.xlu0 %1370
      %1373 = vset.pattern.permute.xlu0 1
      %1374 = vperm.xlu0 %1373, %v296
      %v1375 = vpop.permute.xlu0 %1374
      %1377 = vset.pattern.permute.xlu0 1
      %1378 = vperm.xlu0 %1377, %v297
      %v1379 = vpop.permute.xlu0 %1378
      %1381 = vset.pattern.permute.xlu0 1
      %1382 = vperm.xlu0 %1381, %v298
      %v1383 = vpop.permute.xlu0 %1382
      %1385 = vset.pattern.permute.xlu0 1
      %1386 = vperm.xlu0 %1385, %v299
      %v1387 = vpop.permute.xlu0 %1386
      %1389 = vset.pattern.permute.xlu0 1
      %1390 = vperm.xlu0 %1389, %v300
      %v1391 = vpop.permute.xlu0 %1390
      %1393 = vset.pattern.permute.xlu0 1
      %1394 = vperm.xlu0 %1393, %v301
      %v1395 = vpop.permute.xlu0 %1394
      %1397 = vset.pattern.permute.xlu0 1
      %1398 = vperm.xlu0 %1397, %v302
      %v1399 = vpop.permute.xlu0 %1398
      %1401 = vset.pattern.permute.xlu0 1
      %1402 = vperm.xlu0 %1401, %v303
      %v1403 = vpop.permute.xlu0 %1402
      %1405 = vset.pattern.permute.xlu0 1
      %1406 = vperm.xlu0 %1405, %v304
      %v1407 = vpop.permute.xlu0 %1406
      %1409 = vset.pattern.permute.xlu0 1
      %1410 = vperm.xlu0 %1409, %v305
      %v1411 = vpop.permute.xlu0 %1410
      %1413 = vset.pattern.permute.xlu0 1
      %1414 = vperm.xlu0 %1413, %v306
      %v1415 = vpop.permute.xlu0 %1414
      %1417 = vset.pattern.permute.xlu0 1
      %1418 = vperm.xlu0 %1417, %v307
      %v1419 = vpop.permute.xlu0 %1418
      %1421 = vset.pattern.permute.xlu0 1
      %1422 = vperm.xlu0 %1421, %v308
      %v1423 = vpop.permute.xlu0 %1422
      %1425 = vset.pattern.permute.xlu0 1
      %1426 = vperm.xlu0 %1425, %v309
      %v1427 = vpop.permute.xlu0 %1426
      %1429 = vset.pattern.permute.xlu0 1
      %1430 = vperm.xlu0 %1429, %v310
      %v1431 = vpop.permute.xlu0 %1430
      %1433 = vset.pattern.permute.xlu0 1
      %1434 = vperm.xlu0 %1433, %v311
      %v1435 = vpop.permute.xlu0 %1434
      %1437 = vset.pattern.permute.xlu0 1
      %1438 = vperm.xlu0 %1437, %v312
      %v1439 = vpop.permute.xlu0 %1438
      %1441 = vset.pattern.permute.xlu0 1
      %1442 = vperm.xlu0 %1441, %v313
      %v1443 = vpop.permute.xlu0 %1442
      %1445 = vset.pattern.permute.xlu0 1
      %1446 = vperm.xlu0 %1445, %v314
      %v1447 = vpop.permute.xlu0 %1446
      %1449 = vset.pattern.permute.xlu0 1
      %1450 = vperm.xlu0 %1449, %v315
      %v1451 = vpop.permute.xlu0 %1450
      %1453 = vset.pattern.permute.xlu0 1
      %1454 = vperm.xlu0 %1453, %v316
      %v1455 = vpop.permute.xlu0 %1454
      %1457 = vset.pattern.permute.xlu0 1
      %1458 = vperm.xlu0 %1457, %v317
      %v1459 = vpop.permute.xlu0 %1458
      %1461 = vset.pattern.permute.xlu0 1
      %1462 = vperm.xlu0 %1461, %v318
      %v1463 = vpop.permute.xlu0 %1462
      %1465 = vset.pattern.permute.xlu0 1
      %1466 = vperm.xlu0 %1465, %v319
      %v1467 = vpop.permute.xlu0 %1466
      %1469 = vset.pattern.permute.xlu0 1
      %1470 = vperm.xlu0 %1469, %v320
      %v1471 = vpop.permute.xlu0 %1470
      %1473 = vset.pattern.permute.xlu0 1
      %1474 = vperm.xlu0 %1473, %v321
      %v1475 = vpop.permute.xlu0 %1474
      %1477 = vset.pattern.permute.xlu0 1
      %1478 = vperm.xlu0 %1477, %v322
      %v1479 = vpop.permute.xlu0 %1478
      %1481 = vset.pattern.permute.xlu0 1
      %1482 = vperm.xlu0 %1481, %v323
      %v1483 = vpop.permute.xlu0 %1482
      %1485 = vset.pattern.permute.xlu0 1
      %1486 = vperm.xlu0 %1485, %v324
      %v1487 = vpop.permute.xlu0 %1486
      %1489 = vset.pattern.permute.xlu0 1
      %1490 = vperm.xlu0 %1489, %v325
      %v1491 = vpop.permute.xlu0 %1490
      %1493 = vset.pattern.permute.xlu0 1
      %1494 = vperm.xlu0 %1493, %v326
      %v1495 = vpop.permute.xlu0 %1494
      %1497 = vset.pattern.permute.xlu0 1
      %1498 = vperm.xlu0 %1497, %v327
      %v1499 = vpop.permute.xlu0 %1498
      %1501 = vset.pattern.permute.xlu0 1
      %1502 = vperm.xlu0 %1501, %v328
      %v1503 = vpop.permute.xlu0 %1502
      %1505 = vset.pattern.permute.xlu0 1
      %1506 = vperm.xlu0 %1505, %v329
      %v1507 = vpop.permute.xlu0 %1506
      %1509 = vset.pattern.permute.xlu0 1
      %1510 = vperm.xlu0 %1509, %v330
      %v1511 = vpop.permute.xlu0 %1510
      %1513 = vset.pattern.permute.xlu0 1
      %1514 = vperm.xlu0 %1513, %v331
      %v1515 = vpop.permute.xlu0 %1514
      %1517 = vset.pattern.permute.xlu0 1
      %1518 = vperm.xlu0 %1517, %v332
      %v1519 = vpop.permute.xlu0 %1518
      %1521 = vset.pattern.permute.xlu0 1
      %1522 = vperm.xlu0 %1521, %v333
      %v1523 = vpop.permute.xlu0 %1522
      %1525 = vset.pattern.permute.xlu0 1
      %1526 = vperm.xlu0 %1525, %v334
      %v1527 = vpop.permute.xlu0 %1526
      %1529 = vset.pattern.permute.xlu0 1
      %1530 = vperm.xlu0 %1529, %v335
      %v1531 = vpop.permute.xlu0 %1530
      %1533 = vset.pattern.permute.xlu0 1
      %1534 = vperm.xlu0 %1533, %v336
      %v1535 = vpop.permute.xlu0 %1534
      %1537 = vset.pattern.permute.xlu0 1
      %1538 = vperm.xlu0 %1537, %v337
      %v1539 = vpop.permute.xlu0 %1538
      %1541 = vset.pattern.permute.xlu0 1
      %1542 = vperm.xlu0 %1541, %v338
      %v1543 = vpop.permute.xlu0 %1542
      %1545 = vset.pattern.permute.xlu0 1
      %1546 = vperm.xlu0 %1545, %v339
      %v1547 = vpop.permute.xlu0 %1546
      %1549 = vset.pattern.permute.xlu0 1
      %1550 = vperm.xlu0 %1549, %v340
      %v1551 = vpop.permute.xlu0 %1550
      %1553 = vset.pattern.permute.xlu0 1
      %1554 = vperm.xlu0 %1553, %v341
      %v1555 = vpop.permute.xlu0 %1554
      %1557 = vset.pattern.permute.xlu0 1
      %1558 = vperm.xlu0 %1557, %v342
      %v1559 = vpop.permute.xlu0 %1558
      %1561 = vset.pattern.permute.xlu0 1
      %1562 = vperm.xlu0 %1561, %v343
      %v1563 = vpop.permute.xlu0 %1562
      %1565 = vset.pattern.permute.xlu0 1
      %1566 = vperm.xlu0 %1565, %v344
      %v1567 = vpop.permute.xlu0 %1566
      %1569 = vset.pattern.permute.xlu0 1
      %1570 = vperm.xlu0 %1569, %v345
      %v1571 = vpop.permute.xlu0 %1570
      %1573 = vset.pattern.permute.xlu0 1
      %1574 = vperm.xlu0 %1573, %v346
      %v1575 = vpop.permute.xlu0 %1574
      %1577 = vset.pattern.permute.xlu0 1
      %1578 = vperm.xlu0 %1577, %v347
      %v1579 = vpop.permute.xlu0 %1578
      %1581 = vset.pattern.permute.xlu0 1
      %1582 = vperm.xlu0 %1581, %v348
      %v1583 = vpop.permute.xlu0 %1582
      %1585 = vset.pattern.permute.xlu0 1
      %1586 = vperm.xlu0 %1585, %v349
      %v1587 = vpop.permute.xlu0 %1586
      %1589 = vset.pattern.permute.xlu0 1
      %1590 = vperm.xlu0 %1589, %v350
      %v1591 = vpop.permute.xlu0 %1590
      %1593 = vset.pattern.permute.xlu0 1
      %1594 = vperm.xlu0 %1593, %v351
      %v1595 = vpop.permute.xlu0 %1594
      %1597 = vset.pattern.permute.xlu0 1
      %1598 = vperm.xlu0 %1597, %v352
      %v1599 = vpop.permute.xlu0 %1598
      %1601 = vset.pattern.permute.xlu0 1
      %1602 = vperm.xlu0 %1601, %v353
      %v1603 = vpop.permute.xlu0 %1602
      %1605 = vset.pattern.permute.xlu0 1
      %1606 = vperm.xlu0 %1605, %v354
      %v1607 = vpop.permute.xlu0 %1606
      %1609 = vset.pattern.permute.xlu0 1
      %1610 = vperm.xlu0 %1609, %v355
      %v1611 = vpop.permute.xlu0 %1610
      %1613 = vset.pattern.permute.xlu0 1
      %1614 = vperm.xlu0 %1613, %v356
      %v1615 = vpop.permute.xlu0 %1614
      %1617 = vset.pattern.permute.xlu0 1
      %1618 = vperm.xlu0 %1617, %v357
      %v1619 = vpop.permute.xlu0 %1618
      %1621 = vset.pattern.permute.xlu0 1
      %1622 = vperm.xlu0 %1621, %v358
      %v1623 = vpop.permute.xlu0 %1622
      %1625 = vset.pattern.permute.xlu0 1
      %1626 = vperm.xlu0 %1625, %v359
      %v1627 = vpop.permute.xlu0 %1626
      %1629 = vset.pattern.permute.xlu0 1
      %1630 = vperm.xlu0 %1629, %v360
      %v1631 = vpop.permute.xlu0 %1630
      %1633 = vset.pattern.permute.xlu0 1
      %1634 = vperm.xlu0 %1633, %v361
      %v1635 = vpop.permute.xlu0 %1634
      %1637 = vset.pattern.permute.xlu0 1
      %1638 = vperm.xlu0 %1637, %v362
      %v1639 = vpop.permute.xlu0 %1638
      %1641 = vset.pattern.permute.xlu0 1
      %1642 = vperm.xlu0 %1641, %v363
      %v1643 = vpop.permute.xlu0 %1642
      %1645 = vset.pattern.permute.xlu0 1
      %1646 = vperm.xlu0 %1645, %v364
      %v1647 = vpop.permute.xlu0 %1646
      %1649 = vset.pattern.permute.xlu0 1
      %1650 = vperm.xlu0 %1649, %v365
      %v1651 = vpop.permute.xlu0 %1650
      %1653 = vset.pattern.permute.xlu0 1
      %1654 = vperm.xlu0 %1653, %v366
      %v1655 = vpop.permute.xlu0 %1654
      %1657 = vset.pattern.permute.xlu0 1
      %1658 = vperm.xlu0 %1657, %v367
      %v1659 = vpop.permute.xlu0 %1658
      %1661 = vset.pattern.permute.xlu0 1
      %1662 = vperm.xlu0 %1661, %v368
      %v1663 = vpop.permute.xlu0 %1662
      %1665 = vset.pattern.permute.xlu0 1
      %1666 = vperm.xlu0 %1665, %v369
      %v1667 = vpop.permute.xlu0 %1666
      %1669 = vset.pattern.permute.xlu0 1
      %1670 = vperm.xlu0 %1669, %v370
      %v1671 = vpop.permute.xlu0 %1670
      %1673 = vset.pattern.permute.xlu0 1
      %1674 = vperm.xlu0 %1673, %v371
      %v1675 = vpop.permute.xlu0 %1674
      %1677 = vset.pattern.permute.xlu0 1
      %1678 = vperm.xlu0 %1677, %v372
      %v1679 = vpop.permute.xlu0 %1678
      %1681 = vset.pattern.permute.xlu0 1
      %1682 = vperm.xlu0 %1681, %v373
      %v1683 = vpop.permute.xlu0 %1682
      %1685 = vset.pattern.permute.xlu0 1
      %1686 = vperm.xlu0 %1685, %v374
      %v1687 = vpop.permute.xlu0 %1686
      %1689 = vset.pattern.permute.xlu0 1
      %1690 = vperm.xlu0 %1689, %v375
      %v1691 = vpop.permute.xlu0 %1690
      %1693 = vset.pattern.permute.xlu0 1
      %1694 = vperm.xlu0 %1693, %v376
      %v1695 = vpop.permute.xlu0 %1694
      %1697 = vset.pattern.permute.xlu0 1
      %1698 = vperm.xlu0 %1697, %v377
      %v1699 = vpop.permute.xlu0 %1698
      %1701 = vset.pattern.permute.xlu0 1
      %1702 = vperm.xlu0 %1701, %v378
      %v1703 = vpop.permute.xlu0 %1702
      %1705 = vset.pattern.permute.xlu0 1
      %1706 = vperm.xlu0 %1705, %v379
      %v1707 = vpop.permute.xlu0 %1706
      %1709 = vset.pattern.permute.xlu0 1
      %1710 = vperm.xlu0 %1709, %v380
      %v1711 = vpop.permute.xlu0 %1710
      %1713 = vset.pattern.permute.xlu0 1
      %1714 = vperm.xlu0 %1713, %v381
      %v1715 = vpop.permute.xlu0 %1714
      %1717 = vset.pattern.permute.xlu0 1
      %1718 = vperm.xlu0 %1717, %v382
      %v1719 = vpop.permute.xlu0 %1718
      %1721 = vset.pattern.permute.xlu0 1
      %1722 = vperm.xlu0 %1721, %v383
      %v1723 = vpop.permute.xlu0 %1722
      %1725 = vset.pattern.permute.xlu0 1
      %1726 = vperm.xlu0 %1725, %v384
      %v1727 = vpop.permute.xlu0 %1726
      %1729 = vset.pattern.permute.xlu0 1
      %1730 = vperm.xlu0 %1729, %v385
      %v1731 = vpop.permute.xlu0 %1730
      %1733 = vset.pattern.permute.xlu0 1
      %1734 = vperm.xlu0 %1733, %v386
      %v1735 = vpop.permute.xlu0 %1734
      %1737 = vset.pattern.permute.xlu0 1
      %1738 = vperm.xlu0 %1737, %v387
      %v1739 = vpop.permute.xlu0 %1738
      %1741 = vset.pattern.permute.xlu0 1
      %1742 = vperm.xlu0 %1741, %v388
      %v1743 = vpop.permute.xlu0 %1742
      %1745 = vset.pattern.permute.xlu0 1
      %1746 = vperm.xlu0 %1745, %v389
      %v1747 = vpop.permute.xlu0 %1746
      %1749 = vset.pattern.permute.xlu0 1
      %1750 = vperm.xlu0 %1749, %v390
      %v1751 = vpop.permute.xlu0 %1750
      %1753 = vset.pattern.permute.xlu0 1
      %1754 = vperm.xlu0 %1753, %v391
      %v1755 = vpop.permute.xlu0 %1754
      %1757 = vset.pattern.permute.xlu0 1
      %1758 = vperm.xlu0 %1757, %v392
      %v1759 = vpop.permute.xlu0 %1758
      %1761 = vset.pattern.permute.xlu0 1
      %1762 = vperm.xlu0 %1761, %v393
      %v1763 = vpop.permute.xlu0 %1762
      %1765 = vset.pattern.permute.xlu0 1
      %1766 = vperm.xlu0 %1765, %v394
      %v1767 = vpop.permute.xlu0 %1766
      %1769 = vset.pattern.permute.xlu0 1
      %1770 = vperm.xlu0 %1769, %v395
      %v1771 = vpop.permute.xlu0 %1770
      %1773 = vset.pattern.permute.xlu0 1
      %1774 = vperm.xlu0 %1773, %v396
      %v1775 = vpop.permute.xlu0 %1774
      %1777 = vset.pattern.permute.xlu0 1
      %1778 = vperm.xlu0 %1777, %v397
      %v1779 = vpop.permute.xlu0 %1778
      %1781 = vset.pattern.permute.xlu0 1
      %1782 = vperm.xlu0 %1781, %v398
      %v1783 = vpop.permute.xlu0 %1782
      %1785 = vset.pattern.permute.xlu0 1
      %1786 = vperm.xlu0 %1785, %v399
      %v1787 = vpop.permute.xlu0 %1786
      %1789 = vset.pattern.permute.xlu0 1
      %1790 = vperm.xlu0 %1789, %v400
      %v1791 = vpop.permute.xlu0 %1790
      %1793 = vset.pattern.permute.xlu0 1
      %1794 = vperm.xlu0 %1793, %v401
      %v1795 = vpop.permute.xlu0 %1794
      %1797 = vset.pattern.permute.xlu0 1
      %1798 = vperm.xlu0 %1797, %v402
      %v1799 = vpop.permute.xlu0 %1798
      %1801 = vset.pattern.permute.xlu0 1
      %1802 = vperm.xlu0 %1801, %v403
      %v1803 = vpop.permute.xlu0 %1802
      %1805 = vset.pattern.permute.xlu0 1
      %1806 = vperm.xlu0 %1805, %v404
      %v1807 = vpop.permute.xlu0 %1806
      %1809 = vset.pattern.permute.xlu0 1
      %1810 = vperm.xlu0 %1809, %v405
      %v1811 = vpop.permute.xlu0 %1810
      %1813 = vset.pattern.permute.xlu0 1
      %1814 = vperm.xlu0 %1813, %v406
      %v1815 = vpop.permute.xlu0 %1814
      %1817 = vset.pattern.permute.xlu0 1
      %1818 = vperm.xlu0 %1817, %v407
      %v1819 = vpop.permute.xlu0 %1818
      %1821 = vset.pattern.permute.xlu0 1
      %1822 = vperm.xlu0 %1821, %v408
      %v1823 = vpop.permute.xlu0 %1822
      %1825 = vset.pattern.permute.xlu0 1
      %1826 = vperm.xlu0 %1825, %v409
      %v1827 = vpop.permute.xlu0 %1826
      %1829 = vset.pattern.permute.xlu0 1
      %1830 = vperm.xlu0 %1829, %v410
      %v1831 = vpop.permute.xlu0 %1830
      %1833 = vset.pattern.permute.xlu0 1
      %1834 = vperm.xlu0 %1833, %v411
      %v1835 = vpop.permute.xlu0 %1834
      %1837 = vset.pattern.permute.xlu0 1
      %1838 = vperm.xlu0 %1837, %v412
      %v1839 = vpop.permute.xlu0 %1838
      %v1841 = vlaneseq
      %v1842 = vshrl.u32 %v1841, 7
      %v1843 = vsub.s32 1, %v1842
      %v1844 = vrot.slane %v413, %v1843
      %v1845 = vlaneseq
      %v1846 = vshrl.u32 %v1845, 7
      %v1847 = vsub.s32 5, %v1846
      %v1848 = vrot.slane %v413, %v1847
      %v1851 = vlaneseq
      %v1852 = vshrl.u32 %v1851, 7
      %v1853 = vsub.s32 1, %v1852
      %v1854 = vrot.slane %v1844, %v1853
      %v1855 = vlaneseq
      %v1856 = vshrl.u32 %v1855, 7
      %v1857 = vsub.s32 1, %v1856
      %v1858 = vrot.slane %v1848, %v1857
      %v1859 = vmul.f32 %v1331, %v1854
      %v1860 = vmul.f32 %v1331, %v1858
      %v1861 = vmul.f32 %v1335, %v1854
      %v1862 = vmul.f32 %v1335, %v1858
      %v1863 = vmul.f32 %v1339, %v1854
      %v1864 = vmul.f32 %v1339, %v1858
      %v1865 = vmul.f32 %v1343, %v1854
      %v1866 = vmul.f32 %v1343, %v1858
      %v1867 = vmul.f32 %v1347, %v1854
      %v1868 = vmul.f32 %v1347, %v1858
      %v1869 = vmul.f32 %v1351, %v1854
      %v1870 = vmul.f32 %v1351, %v1858
      %v1871 = vmul.f32 %v1355, %v1854
      %v1872 = vmul.f32 %v1355, %v1858
      %v1873 = vmul.f32 %v1359, %v1854
      %v1874 = vmul.f32 %v1359, %v1858
      %v1875 = vmul.f32 %v1363, %v1854
      %v1876 = vmul.f32 %v1363, %v1858
      %v1877 = vmul.f32 %v1367, %v1854
      %v1878 = vmul.f32 %v1367, %v1858
      %v1879 = vmul.f32 %v1371, %v1854
      %v1880 = vmul.f32 %v1371, %v1858
      %v1881 = vmul.f32 %v1375, %v1854
      %v1882 = vmul.f32 %v1375, %v1858
      %v1883 = vmul.f32 %v1379, %v1854
      %v1884 = vmul.f32 %v1379, %v1858
      %v1885 = vmul.f32 %v1383, %v1854
      %v1886 = vmul.f32 %v1383, %v1858
      %v1887 = vmul.f32 %v1387, %v1854
      %v1888 = vmul.f32 %v1387, %v1858
      %v1889 = vmul.f32 %v1391, %v1854
      %v1890 = vmul.f32 %v1391, %v1858
      %v1891 = vmul.f32 %v1395, %v1854
      %v1892 = vmul.f32 %v1395, %v1858
      %v1893 = vmul.f32 %v1399, %v1854
      %v1894 = vmul.f32 %v1399, %v1858
      %v1895 = vmul.f32 %v1403, %v1854
      %v1896 = vmul.f32 %v1403, %v1858
      %v1897 = vmul.f32 %v1407, %v1854
      %v1898 = vmul.f32 %v1407, %v1858
      %v1899 = vmul.f32 %v1411, %v1854
      %v1900 = vmul.f32 %v1411, %v1858
      %v1901 = vmul.f32 %v1415, %v1854
      %v1902 = vmul.f32 %v1415, %v1858
      %v1903 = vmul.f32 %v1419, %v1854
      %v1904 = vmul.f32 %v1419, %v1858
      %v1905 = vmul.f32 %v1423, %v1854
      %v1906 = vmul.f32 %v1423, %v1858
      %v1907 = vmul.f32 %v1427, %v1854
      %v1908 = vmul.f32 %v1427, %v1858
      %v1909 = vmul.f32 %v1431, %v1854
      %v1910 = vmul.f32 %v1431, %v1858
      %v1911 = vmul.f32 %v1435, %v1854
      %v1912 = vmul.f32 %v1435, %v1858
      %v1913 = vmul.f32 %v1439, %v1854
      %v1914 = vmul.f32 %v1439, %v1858
      %v1915 = vmul.f32 %v1443, %v1854
      %v1916 = vmul.f32 %v1443, %v1858
      %v1917 = vmul.f32 %v1447, %v1854
      %v1918 = vmul.f32 %v1447, %v1858
      %v1919 = vmul.f32 %v1451, %v1854
      %v1920 = vmul.f32 %v1451, %v1858
      %v1921 = vmul.f32 %v1455, %v1854
      %v1922 = vmul.f32 %v1455, %v1858
      %v1923 = vmul.f32 %v1459, %v1854
      %v1924 = vmul.f32 %v1459, %v1858
      %v1925 = vmul.f32 %v1463, %v1854
      %v1926 = vmul.f32 %v1463, %v1858
      %v1927 = vmul.f32 %v1467, %v1854
      %v1928 = vmul.f32 %v1467, %v1858
      %v1929 = vmul.f32 %v1471, %v1854
      %v1930 = vmul.f32 %v1471, %v1858
      %v1931 = vmul.f32 %v1475, %v1854
      %v1932 = vmul.f32 %v1475, %v1858
      %v1933 = vmul.f32 %v1479, %v1854
      %v1934 = vmul.f32 %v1479, %v1858
      %v1935 = vmul.f32 %v1483, %v1854
      %v1936 = vmul.f32 %v1483, %v1858
      %v1937 = vmul.f32 %v1487, %v1854
      %v1938 = vmul.f32 %v1487, %v1858
      %v1939 = vmul.f32 %v1491, %v1854
      %v1940 = vmul.f32 %v1491, %v1858
      %v1941 = vmul.f32 %v1495, %v1854
      %v1942 = vmul.f32 %v1495, %v1858
      %v1943 = vmul.f32 %v1499, %v1854
      %v1944 = vmul.f32 %v1499, %v1858
      %v1945 = vmul.f32 %v1503, %v1854
      %v1946 = vmul.f32 %v1503, %v1858
      %v1947 = vmul.f32 %v1507, %v1854
      %v1948 = vmul.f32 %v1507, %v1858
      %v1949 = vmul.f32 %v1511, %v1854
      %v1950 = vmul.f32 %v1511, %v1858
      %v1951 = vmul.f32 %v1515, %v1854
      %v1952 = vmul.f32 %v1515, %v1858
      %v1953 = vmul.f32 %v1519, %v1854
      %v1954 = vmul.f32 %v1519, %v1858
      %v1955 = vmul.f32 %v1523, %v1854
      %v1956 = vmul.f32 %v1523, %v1858
      %v1957 = vmul.f32 %v1527, %v1854
      %v1958 = vmul.f32 %v1527, %v1858
      %v1959 = vmul.f32 %v1531, %v1854
      %v1960 = vmul.f32 %v1531, %v1858
      %v1961 = vmul.f32 %v1535, %v1854
      %v1962 = vmul.f32 %v1535, %v1858
      %v1963 = vmul.f32 %v1539, %v1854
      %v1964 = vmul.f32 %v1539, %v1858
      %v1965 = vmul.f32 %v1543, %v1854
      %v1966 = vmul.f32 %v1543, %v1858
      %v1967 = vmul.f32 %v1547, %v1854
      %v1968 = vmul.f32 %v1547, %v1858
      %v1969 = vmul.f32 %v1551, %v1854
      %v1970 = vmul.f32 %v1551, %v1858
      %v1971 = vmul.f32 %v1555, %v1854
      %v1972 = vmul.f32 %v1555, %v1858
      %v1973 = vmul.f32 %v1559, %v1854
      %v1974 = vmul.f32 %v1559, %v1858
      %v1975 = vmul.f32 %v1563, %v1854
      %v1976 = vmul.f32 %v1563, %v1858
      %v1977 = vmul.f32 %v1567, %v1854
      %v1978 = vmul.f32 %v1567, %v1858
      %v1979 = vmul.f32 %v1571, %v1854
      %v1980 = vmul.f32 %v1571, %v1858
      %v1981 = vmul.f32 %v1575, %v1854
      %v1982 = vmul.f32 %v1575, %v1858
      %v1983 = vmul.f32 %v1579, %v1854
      %v1984 = vmul.f32 %v1579, %v1858
      %v1985 = vmul.f32 %v1583, %v1854
      %v1986 = vmul.f32 %v1583, %v1858
      %v1987 = vmul.f32 %v1587, %v1854
      %v1988 = vmul.f32 %v1587, %v1858
      %v1989 = vmul.f32 %v1591, %v1854
      %v1990 = vmul.f32 %v1591, %v1858
      %v1991 = vmul.f32 %v1595, %v1854
      %v1992 = vmul.f32 %v1595, %v1858
      %v1993 = vmul.f32 %v1599, %v1854
      %v1994 = vmul.f32 %v1599, %v1858
      %v1995 = vmul.f32 %v1603, %v1854
      %v1996 = vmul.f32 %v1603, %v1858
      %v1997 = vmul.f32 %v1607, %v1854
      %v1998 = vmul.f32 %v1607, %v1858
      %v1999 = vmul.f32 %v1611, %v1854
      %v2000 = vmul.f32 %v1611, %v1858
      %v2001 = vmul.f32 %v1615, %v1854
      %v2002 = vmul.f32 %v1615, %v1858
      %v2003 = vmul.f32 %v1619, %v1854
      %v2004 = vmul.f32 %v1619, %v1858
      %v2005 = vmul.f32 %v1623, %v1854
      %v2006 = vmul.f32 %v1623, %v1858
      %v2007 = vmul.f32 %v1627, %v1854
      %v2008 = vmul.f32 %v1627, %v1858
      %v2009 = vmul.f32 %v1631, %v1854
      %v2010 = vmul.f32 %v1631, %v1858
      %v2011 = vmul.f32 %v1635, %v1854
      %v2012 = vmul.f32 %v1635, %v1858
      %v2013 = vmul.f32 %v1639, %v1854
      %v2014 = vmul.f32 %v1639, %v1858
      %v2015 = vmul.f32 %v1643, %v1854
      %v2016 = vmul.f32 %v1643, %v1858
      %v2017 = vmul.f32 %v1647, %v1854
      %v2018 = vmul.f32 %v1647, %v1858
      %v2019 = vmul.f32 %v1651, %v1854
      %v2020 = vmul.f32 %v1651, %v1858
      %v2021 = vmul.f32 %v1655, %v1854
      %v2022 = vmul.f32 %v1655, %v1858
      %v2023 = vmul.f32 %v1659, %v1854
      %v2024 = vmul.f32 %v1659, %v1858
      %v2025 = vmul.f32 %v1663, %v1854
      %v2026 = vmul.f32 %v1663, %v1858
      %v2027 = vmul.f32 %v1667, %v1854
      %v2028 = vmul.f32 %v1667, %v1858
      %v2029 = vmul.f32 %v1671, %v1854
      %v2030 = vmul.f32 %v1671, %v1858
      %v2031 = vmul.f32 %v1675, %v1854
      %v2032 = vmul.f32 %v1675, %v1858
      %v2033 = vmul.f32 %v1679, %v1854
      %v2034 = vmul.f32 %v1679, %v1858
      %v2035 = vmul.f32 %v1683, %v1854
      %v2036 = vmul.f32 %v1683, %v1858
      %v2037 = vmul.f32 %v1687, %v1854
      %v2038 = vmul.f32 %v1687, %v1858
      %v2039 = vmul.f32 %v1691, %v1854
      %v2040 = vmul.f32 %v1691, %v1858
      %v2041 = vmul.f32 %v1695, %v1854
      %v2042 = vmul.f32 %v1695, %v1858
      %v2043 = vmul.f32 %v1699, %v1854
      %v2044 = vmul.f32 %v1699, %v1858
      %v2045 = vmul.f32 %v1703, %v1854
      %v2046 = vmul.f32 %v1703, %v1858
      %v2047 = vmul.f32 %v1707, %v1854
      %v2048 = vmul.f32 %v1707, %v1858
      %v2049 = vmul.f32 %v1711, %v1854
      %v2050 = vmul.f32 %v1711, %v1858
      %v2051 = vmul.f32 %v1715, %v1854
      %v2052 = vmul.f32 %v1715, %v1858
      %v2053 = vmul.f32 %v1719, %v1854
      %v2054 = vmul.f32 %v1719, %v1858
      %v2055 = vmul.f32 %v1723, %v1854
      %v2056 = vmul.f32 %v1723, %v1858
      %v2057 = vmul.f32 %v1727, %v1854
      %v2058 = vmul.f32 %v1727, %v1858
      %v2059 = vmul.f32 %v1731, %v1854
      %v2060 = vmul.f32 %v1731, %v1858
      %v2061 = vmul.f32 %v1735, %v1854
      %v2062 = vmul.f32 %v1735, %v1858
      %v2063 = vmul.f32 %v1739, %v1854
      %v2064 = vmul.f32 %v1739, %v1858
      %v2065 = vmul.f32 %v1743, %v1854
      %v2066 = vmul.f32 %v1743, %v1858
      %v2067 = vmul.f32 %v1747, %v1854
      %v2068 = vmul.f32 %v1747, %v1858
      %v2069 = vmul.f32 %v1751, %v1854
      %v2070 = vmul.f32 %v1751, %v1858
      %v2071 = vmul.f32 %v1755, %v1854
      %v2072 = vmul.f32 %v1755, %v1858
      %v2073 = vmul.f32 %v1759, %v1854
      %v2074 = vmul.f32 %v1759, %v1858
      %v2075 = vmul.f32 %v1763, %v1854
      %v2076 = vmul.f32 %v1763, %v1858
      %v2077 = vmul.f32 %v1767, %v1854
      %v2078 = vmul.f32 %v1767, %v1858
      %v2079 = vmul.f32 %v1771, %v1854
      %v2080 = vmul.f32 %v1771, %v1858
      %v2081 = vmul.f32 %v1775, %v1854
      %v2082 = vmul.f32 %v1775, %v1858
      %v2083 = vmul.f32 %v1779, %v1854
      %v2084 = vmul.f32 %v1779, %v1858
      %v2085 = vmul.f32 %v1783, %v1854
      %v2086 = vmul.f32 %v1783, %v1858
      %v2087 = vmul.f32 %v1787, %v1854
      %v2088 = vmul.f32 %v1787, %v1858
      %v2089 = vmul.f32 %v1791, %v1854
      %v2090 = vmul.f32 %v1791, %v1858
      %v2091 = vmul.f32 %v1795, %v1854
      %v2092 = vmul.f32 %v1795, %v1858
      %v2093 = vmul.f32 %v1799, %v1854
      %v2094 = vmul.f32 %v1799, %v1858
      %v2095 = vmul.f32 %v1803, %v1854
      %v2096 = vmul.f32 %v1803, %v1858
      %v2097 = vmul.f32 %v1807, %v1854
      %v2098 = vmul.f32 %v1807, %v1858
      %v2099 = vmul.f32 %v1811, %v1854
      %v2100 = vmul.f32 %v1811, %v1858
      %v2101 = vmul.f32 %v1815, %v1854
      %v2102 = vmul.f32 %v1815, %v1858
      %v2103 = vmul.f32 %v1819, %v1854
      %v2104 = vmul.f32 %v1819, %v1858
      %v2105 = vmul.f32 %v1823, %v1854
      %v2106 = vmul.f32 %v1823, %v1858
      %v2107 = vmul.f32 %v1827, %v1854
      %v2108 = vmul.f32 %v1827, %v1858
      %v2109 = vmul.f32 %v1831, %v1854
      %v2110 = vmul.f32 %v1831, %v1858
      %v2111 = vmul.f32 %v1835, %v1854
      %v2112 = vmul.f32 %v1835, %v1858
      %v2113 = vmul.f32 %v1839, %v1854
      %v2114 = vmul.f32 %v1839, %v1858
      %v2115 = vadd.f32 %v1073, %v1859
      %v2116 = vadd.f32 %v1074, %v1860
      %v2117 = vadd.f32 %v1075, %v1861
      %v2118 = vadd.f32 %v1076, %v1862
      %v2119 = vadd.f32 %v1077, %v1863
      %v2120 = vadd.f32 %v1078, %v1864
      %v2121 = vadd.f32 %v1079, %v1865
      %v2122 = vadd.f32 %v1080, %v1866
      %v2123 = vadd.f32 %v1081, %v1867
      %v2124 = vadd.f32 %v1082, %v1868
      %v2125 = vadd.f32 %v1083, %v1869
      %v2126 = vadd.f32 %v1084, %v1870
      %v2127 = vadd.f32 %v1085, %v1871
      %v2128 = vadd.f32 %v1086, %v1872
      %v2129 = vadd.f32 %v1087, %v1873
      %v2130 = vadd.f32 %v1088, %v1874
      %v2131 = vadd.f32 %v1089, %v1875
      %v2132 = vadd.f32 %v1090, %v1876
      %v2133 = vadd.f32 %v1091, %v1877
      %v2134 = vadd.f32 %v1092, %v1878
      %v2135 = vadd.f32 %v1093, %v1879
      %v2136 = vadd.f32 %v1094, %v1880
      %v2137 = vadd.f32 %v1095, %v1881
      %v2138 = vadd.f32 %v1096, %v1882
      %v2139 = vadd.f32 %v1097, %v1883
      %v2140 = vadd.f32 %v1098, %v1884
      %v2141 = vadd.f32 %v1099, %v1885
      %v2142 = vadd.f32 %v1100, %v1886
      %v2143 = vadd.f32 %v1101, %v1887
      %v2144 = vadd.f32 %v1102, %v1888
      %v2145 = vadd.f32 %v1103, %v1889
      %v2146 = vadd.f32 %v1104, %v1890
      %v2147 = vadd.f32 %v1105, %v1891
      %v2148 = vadd.f32 %v1106, %v1892
      %v2149 = vadd.f32 %v1107, %v1893
      %v2150 = vadd.f32 %v1108, %v1894
      %v2151 = vadd.f32 %v1109, %v1895
      %v2152 = vadd.f32 %v1110, %v1896
      %v2153 = vadd.f32 %v1111, %v1897
      %v2154 = vadd.f32 %v1112, %v1898
      %v2155 = vadd.f32 %v1113, %v1899
      %v2156 = vadd.f32 %v1114, %v1900
      %v2157 = vadd.f32 %v1115, %v1901
      %v2158 = vadd.f32 %v1116, %v1902
      %v2159 = vadd.f32 %v1117, %v1903
      %v2160 = vadd.f32 %v1118, %v1904
      %v2161 = vadd.f32 %v1119, %v1905
      %v2162 = vadd.f32 %v1120, %v1906
      %v2163 = vadd.f32 %v1121, %v1907
      %v2164 = vadd.f32 %v1122, %v1908
      %v2165 = vadd.f32 %v1123, %v1909
      %v2166 = vadd.f32 %v1124, %v1910
      %v2167 = vadd.f32 %v1125, %v1911
      %v2168 = vadd.f32 %v1126, %v1912
      %v2169 = vadd.f32 %v1127, %v1913
      %v2170 = vadd.f32 %v1128, %v1914
      %v2171 = vadd.f32 %v1129, %v1915
      %v2172 = vadd.f32 %v1130, %v1916
      %v2173 = vadd.f32 %v1131, %v1917
      %v2174 = vadd.f32 %v1132, %v1918
      %v2175 = vadd.f32 %v1133, %v1919
      %v2176 = vadd.f32 %v1134, %v1920
      %v2177 = vadd.f32 %v1135, %v1921
      %v2178 = vadd.f32 %v1136, %v1922
      %v2179 = vadd.f32 %v1137, %v1923
      %v2180 = vadd.f32 %v1138, %v1924
      %v2181 = vadd.f32 %v1139, %v1925
      %v2182 = vadd.f32 %v1140, %v1926
      %v2183 = vadd.f32 %v1141, %v1927
      %v2184 = vadd.f32 %v1142, %v1928
      %v2185 = vadd.f32 %v1143, %v1929
      %v2186 = vadd.f32 %v1144, %v1930
      %v2187 = vadd.f32 %v1145, %v1931
      %v2188 = vadd.f32 %v1146, %v1932
      %v2189 = vadd.f32 %v1147, %v1933
      %v2190 = vadd.f32 %v1148, %v1934
      %v2191 = vadd.f32 %v1149, %v1935
      %v2192 = vadd.f32 %v1150, %v1936
      %v2193 = vadd.f32 %v1151, %v1937
      %v2194 = vadd.f32 %v1152, %v1938
      %v2195 = vadd.f32 %v1153, %v1939
      %v2196 = vadd.f32 %v1154, %v1940
      %v2197 = vadd.f32 %v1155, %v1941
      %v2198 = vadd.f32 %v1156, %v1942
      %v2199 = vadd.f32 %v1157, %v1943
      %v2200 = vadd.f32 %v1158, %v1944
      %v2201 = vadd.f32 %v1159, %v1945
      %v2202 = vadd.f32 %v1160, %v1946
      %v2203 = vadd.f32 %v1161, %v1947
      %v2204 = vadd.f32 %v1162, %v1948
      %v2205 = vadd.f32 %v1163, %v1949
      %v2206 = vadd.f32 %v1164, %v1950
      %v2207 = vadd.f32 %v1165, %v1951
      %v2208 = vadd.f32 %v1166, %v1952
      %v2209 = vadd.f32 %v1167, %v1953
      %v2210 = vadd.f32 %v1168, %v1954
      %v2211 = vadd.f32 %v1169, %v1955
      %v2212 = vadd.f32 %v1170, %v1956
      %v2213 = vadd.f32 %v1171, %v1957
      %v2214 = vadd.f32 %v1172, %v1958
      %v2215 = vadd.f32 %v1173, %v1959
      %v2216 = vadd.f32 %v1174, %v1960
      %v2217 = vadd.f32 %v1175, %v1961
      %v2218 = vadd.f32 %v1176, %v1962
      %v2219 = vadd.f32 %v1177, %v1963
      %v2220 = vadd.f32 %v1178, %v1964
      %v2221 = vadd.f32 %v1179, %v1965
      %v2222 = vadd.f32 %v1180, %v1966
      %v2223 = vadd.f32 %v1181, %v1967
      %v2224 = vadd.f32 %v1182, %v1968
      %v2225 = vadd.f32 %v1183, %v1969
      %v2226 = vadd.f32 %v1184, %v1970
      %v2227 = vadd.f32 %v1185, %v1971
      %v2228 = vadd.f32 %v1186, %v1972
      %v2229 = vadd.f32 %v1187, %v1973
      %v2230 = vadd.f32 %v1188, %v1974
      %v2231 = vadd.f32 %v1189, %v1975
      %v2232 = vadd.f32 %v1190, %v1976
      %v2233 = vadd.f32 %v1191, %v1977
      %v2234 = vadd.f32 %v1192, %v1978
      %v2235 = vadd.f32 %v1193, %v1979
      %v2236 = vadd.f32 %v1194, %v1980
      %v2237 = vadd.f32 %v1195, %v1981
      %v2238 = vadd.f32 %v1196, %v1982
      %v2239 = vadd.f32 %v1197, %v1983
      %v2240 = vadd.f32 %v1198, %v1984
      %v2241 = vadd.f32 %v1199, %v1985
      %v2242 = vadd.f32 %v1200, %v1986
      %v2243 = vadd.f32 %v1201, %v1987
      %v2244 = vadd.f32 %v1202, %v1988
      %v2245 = vadd.f32 %v1203, %v1989
      %v2246 = vadd.f32 %v1204, %v1990
      %v2247 = vadd.f32 %v1205, %v1991
      %v2248 = vadd.f32 %v1206, %v1992
      %v2249 = vadd.f32 %v1207, %v1993
      %v2250 = vadd.f32 %v1208, %v1994
      %v2251 = vadd.f32 %v1209, %v1995
      %v2252 = vadd.f32 %v1210, %v1996
      %v2253 = vadd.f32 %v1211, %v1997
      %v2254 = vadd.f32 %v1212, %v1998
      %v2255 = vadd.f32 %v1213, %v1999
      %v2256 = vadd.f32 %v1214, %v2000
      %v2257 = vadd.f32 %v1215, %v2001
      %v2258 = vadd.f32 %v1216, %v2002
      %v2259 = vadd.f32 %v1217, %v2003
      %v2260 = vadd.f32 %v1218, %v2004
      %v2261 = vadd.f32 %v1219, %v2005
      %v2262 = vadd.f32 %v1220, %v2006
      %v2263 = vadd.f32 %v1221, %v2007
      %v2264 = vadd.f32 %v1222, %v2008
      %v2265 = vadd.f32 %v1223, %v2009
      %v2266 = vadd.f32 %v1224, %v2010
      %v2267 = vadd.f32 %v1225, %v2011
      %v2268 = vadd.f32 %v1226, %v2012
      %v2269 = vadd.f32 %v1227, %v2013
      %v2270 = vadd.f32 %v1228, %v2014
      %v2271 = vadd.f32 %v1229, %v2015
      %v2272 = vadd.f32 %v1230, %v2016
      %v2273 = vadd.f32 %v1231, %v2017
      %v2274 = vadd.f32 %v1232, %v2018
      %v2275 = vadd.f32 %v1233, %v2019
      %v2276 = vadd.f32 %v1234, %v2020
      %v2277 = vadd.f32 %v1235, %v2021
      %v2278 = vadd.f32 %v1236, %v2022
      %v2279 = vadd.f32 %v1237, %v2023
      %v2280 = vadd.f32 %v1238, %v2024
      %v2281 = vadd.f32 %v1239, %v2025
      %v2282 = vadd.f32 %v1240, %v2026
      %v2283 = vadd.f32 %v1241, %v2027
      %v2284 = vadd.f32 %v1242, %v2028
      %v2285 = vadd.f32 %v1243, %v2029
      %v2286 = vadd.f32 %v1244, %v2030
      %v2287 = vadd.f32 %v1245, %v2031
      %v2288 = vadd.f32 %v1246, %v2032
      %v2289 = vadd.f32 %v1247, %v2033
      %v2290 = vadd.f32 %v1248, %v2034
      %v2291 = vadd.f32 %v1249, %v2035
      %v2292 = vadd.f32 %v1250, %v2036
      %v2293 = vadd.f32 %v1251, %v2037
      %v2294 = vadd.f32 %v1252, %v2038
      %v2295 = vadd.f32 %v1253, %v2039
      %v2296 = vadd.f32 %v1254, %v2040
      %v2297 = vadd.f32 %v1255, %v2041
      %v2298 = vadd.f32 %v1256, %v2042
      %v2299 = vadd.f32 %v1257, %v2043
      %v2300 = vadd.f32 %v1258, %v2044
      %v2301 = vadd.f32 %v1259, %v2045
      %v2302 = vadd.f32 %v1260, %v2046
      %v2303 = vadd.f32 %v1261, %v2047
      %v2304 = vadd.f32 %v1262, %v2048
      %v2305 = vadd.f32 %v1263, %v2049
      %v2306 = vadd.f32 %v1264, %v2050
      %v2307 = vadd.f32 %v1265, %v2051
      %v2308 = vadd.f32 %v1266, %v2052
      %v2309 = vadd.f32 %v1267, %v2053
      %v2310 = vadd.f32 %v1268, %v2054
      %v2311 = vadd.f32 %v1269, %v2055
      %v2312 = vadd.f32 %v1270, %v2056
      %v2313 = vadd.f32 %v1271, %v2057
      %v2314 = vadd.f32 %v1272, %v2058
      %v2315 = vadd.f32 %v1273, %v2059
      %v2316 = vadd.f32 %v1274, %v2060
      %v2317 = vadd.f32 %v1275, %v2061
      %v2318 = vadd.f32 %v1276, %v2062
      %v2319 = vadd.f32 %v1277, %v2063
      %v2320 = vadd.f32 %v1278, %v2064
      %v2321 = vadd.f32 %v1279, %v2065
      %v2322 = vadd.f32 %v1280, %v2066
      %v2323 = vadd.f32 %v1281, %v2067
      %v2324 = vadd.f32 %v1282, %v2068
      %v2325 = vadd.f32 %v1283, %v2069
      %v2326 = vadd.f32 %v1284, %v2070
      %v2327 = vadd.f32 %v1285, %v2071
      %v2328 = vadd.f32 %v1286, %v2072
      %v2329 = vadd.f32 %v1287, %v2073
      %v2330 = vadd.f32 %v1288, %v2074
      %v2331 = vadd.f32 %v1289, %v2075
      %v2332 = vadd.f32 %v1290, %v2076
      %v2333 = vadd.f32 %v1291, %v2077
      %v2334 = vadd.f32 %v1292, %v2078
      %v2335 = vadd.f32 %v1293, %v2079
      %v2336 = vadd.f32 %v1294, %v2080
      %v2337 = vadd.f32 %v1295, %v2081
      %v2338 = vadd.f32 %v1296, %v2082
      %v2339 = vadd.f32 %v1297, %v2083
      %v2340 = vadd.f32 %v1298, %v2084
      %v2341 = vadd.f32 %v1299, %v2085
      %v2342 = vadd.f32 %v1300, %v2086
      %v2343 = vadd.f32 %v1301, %v2087
      %v2344 = vadd.f32 %v1302, %v2088
      %v2345 = vadd.f32 %v1303, %v2089
      %v2346 = vadd.f32 %v1304, %v2090
      %v2347 = vadd.f32 %v1305, %v2091
      %v2348 = vadd.f32 %v1306, %v2092
      %v2349 = vadd.f32 %v1307, %v2093
      %v2350 = vadd.f32 %v1308, %v2094
      %v2351 = vadd.f32 %v1309, %v2095
      %v2352 = vadd.f32 %v1310, %v2096
      %v2353 = vadd.f32 %v1311, %v2097
      %v2354 = vadd.f32 %v1312, %v2098
      %v2355 = vadd.f32 %v1313, %v2099
      %v2356 = vadd.f32 %v1314, %v2100
      %v2357 = vadd.f32 %v1315, %v2101
      %v2358 = vadd.f32 %v1316, %v2102
      %v2359 = vadd.f32 %v1317, %v2103
      %v2360 = vadd.f32 %v1318, %v2104
      %v2361 = vadd.f32 %v1319, %v2105
      %v2362 = vadd.f32 %v1320, %v2106
      %v2363 = vadd.f32 %v1321, %v2107
      %v2364 = vadd.f32 %v1322, %v2108
      %v2365 = vadd.f32 %v1323, %v2109
      %v2366 = vadd.f32 %v1324, %v2110
      %v2367 = vadd.f32 %v1325, %v2111
      %v2368 = vadd.f32 %v1326, %v2112
      %v2369 = vadd.f32 %v1327, %v2113
      %v2370 = vadd.f32 %v1328, %v2114
      %2371 = vset.pattern.permute.xlu0 2
      %2372 = vperm.xlu0 %2371, %v285
      %v2373 = vpop.permute.xlu0 %2372
      %2375 = vset.pattern.permute.xlu0 2
      %2376 = vperm.xlu0 %2375, %v286
      %v2377 = vpop.permute.xlu0 %2376
      %2379 = vset.pattern.permute.xlu0 2
      %2380 = vperm.xlu0 %2379, %v287
      %v2381 = vpop.permute.xlu0 %2380
      %2383 = vset.pattern.permute.xlu0 2
      %2384 = vperm.xlu0 %2383, %v288
      %v2385 = vpop.permute.xlu0 %2384
      %2387 = vset.pattern.permute.xlu0 2
      %2388 = vperm.xlu0 %2387, %v289
      %v2389 = vpop.permute.xlu0 %2388
      %2391 = vset.pattern.permute.xlu0 2
      %2392 = vperm.xlu0 %2391, %v290
      %v2393 = vpop.permute.xlu0 %2392
      %2395 = vset.pattern.permute.xlu0 2
      %2396 = vperm.xlu0 %2395, %v291
      %v2397 = vpop.permute.xlu0 %2396
      %2399 = vset.pattern.permute.xlu0 2
      %2400 = vperm.xlu0 %2399, %v292
      %v2401 = vpop.permute.xlu0 %2400
      %2403 = vset.pattern.permute.xlu0 2
      %2404 = vperm.xlu0 %2403, %v293
      %v2405 = vpop.permute.xlu0 %2404
      %2407 = vset.pattern.permute.xlu0 2
      %2408 = vperm.xlu0 %2407, %v294
      %v2409 = vpop.permute.xlu0 %2408
      %2411 = vset.pattern.permute.xlu0 2
      %2412 = vperm.xlu0 %2411, %v295
      %v2413 = vpop.permute.xlu0 %2412
      %2415 = vset.pattern.permute.xlu0 2
      %2416 = vperm.xlu0 %2415, %v296
      %v2417 = vpop.permute.xlu0 %2416
      %2419 = vset.pattern.permute.xlu0 2
      %2420 = vperm.xlu0 %2419, %v297
      %v2421 = vpop.permute.xlu0 %2420
      %2423 = vset.pattern.permute.xlu0 2
      %2424 = vperm.xlu0 %2423, %v298
      %v2425 = vpop.permute.xlu0 %2424
      %2427 = vset.pattern.permute.xlu0 2
      %2428 = vperm.xlu0 %2427, %v299
      %v2429 = vpop.permute.xlu0 %2428
      %2431 = vset.pattern.permute.xlu0 2
      %2432 = vperm.xlu0 %2431, %v300
      %v2433 = vpop.permute.xlu0 %2432
      %2435 = vset.pattern.permute.xlu0 2
      %2436 = vperm.xlu0 %2435, %v301
      %v2437 = vpop.permute.xlu0 %2436
      %2439 = vset.pattern.permute.xlu0 2
      %2440 = vperm.xlu0 %2439, %v302
      %v2441 = vpop.permute.xlu0 %2440
      %2443 = vset.pattern.permute.xlu0 2
      %2444 = vperm.xlu0 %2443, %v303
      %v2445 = vpop.permute.xlu0 %2444
      %2447 = vset.pattern.permute.xlu0 2
      %2448 = vperm.xlu0 %2447, %v304
      %v2449 = vpop.permute.xlu0 %2448
      %2451 = vset.pattern.permute.xlu0 2
      %2452 = vperm.xlu0 %2451, %v305
      %v2453 = vpop.permute.xlu0 %2452
      %2455 = vset.pattern.permute.xlu0 2
      %2456 = vperm.xlu0 %2455, %v306
      %v2457 = vpop.permute.xlu0 %2456
      %2459 = vset.pattern.permute.xlu0 2
      %2460 = vperm.xlu0 %2459, %v307
      %v2461 = vpop.permute.xlu0 %2460
      %2463 = vset.pattern.permute.xlu0 2
      %2464 = vperm.xlu0 %2463, %v308
      %v2465 = vpop.permute.xlu0 %2464
      %2467 = vset.pattern.permute.xlu0 2
      %2468 = vperm.xlu0 %2467, %v309
      %v2469 = vpop.permute.xlu0 %2468
      %2471 = vset.pattern.permute.xlu0 2
      %2472 = vperm.xlu0 %2471, %v310
      %v2473 = vpop.permute.xlu0 %2472
      %2475 = vset.pattern.permute.xlu0 2
      %2476 = vperm.xlu0 %2475, %v311
      %v2477 = vpop.permute.xlu0 %2476
      %2479 = vset.pattern.permute.xlu0 2
      %2480 = vperm.xlu0 %2479, %v312
      %v2481 = vpop.permute.xlu0 %2480
      %2483 = vset.pattern.permute.xlu0 2
      %2484 = vperm.xlu0 %2483, %v313
      %v2485 = vpop.permute.xlu0 %2484
      %2487 = vset.pattern.permute.xlu0 2
      %2488 = vperm.xlu0 %2487, %v314
      %v2489 = vpop.permute.xlu0 %2488
      %2491 = vset.pattern.permute.xlu0 2
      %2492 = vperm.xlu0 %2491, %v315
      %v2493 = vpop.permute.xlu0 %2492
      %2495 = vset.pattern.permute.xlu0 2
      %2496 = vperm.xlu0 %2495, %v316
      %v2497 = vpop.permute.xlu0 %2496
      %2499 = vset.pattern.permute.xlu0 2
      %2500 = vperm.xlu0 %2499, %v317
      %v2501 = vpop.permute.xlu0 %2500
      %2503 = vset.pattern.permute.xlu0 2
      %2504 = vperm.xlu0 %2503, %v318
      %v2505 = vpop.permute.xlu0 %2504
      %2507 = vset.pattern.permute.xlu0 2
      %2508 = vperm.xlu0 %2507, %v319
      %v2509 = vpop.permute.xlu0 %2508
      %2511 = vset.pattern.permute.xlu0 2
      %2512 = vperm.xlu0 %2511, %v320
      %v2513 = vpop.permute.xlu0 %2512
      %2515 = vset.pattern.permute.xlu0 2
      %2516 = vperm.xlu0 %2515, %v321
      %v2517 = vpop.permute.xlu0 %2516
      %2519 = vset.pattern.permute.xlu0 2
      %2520 = vperm.xlu0 %2519, %v322
      %v2521 = vpop.permute.xlu0 %2520
      %2523 = vset.pattern.permute.xlu0 2
      %2524 = vperm.xlu0 %2523, %v323
      %v2525 = vpop.permute.xlu0 %2524
      %2527 = vset.pattern.permute.xlu0 2
      %2528 = vperm.xlu0 %2527, %v324
      %v2529 = vpop.permute.xlu0 %2528
      %2531 = vset.pattern.permute.xlu0 2
      %2532 = vperm.xlu0 %2531, %v325
      %v2533 = vpop.permute.xlu0 %2532
      %2535 = vset.pattern.permute.xlu0 2
      %2536 = vperm.xlu0 %2535, %v326
      %v2537 = vpop.permute.xlu0 %2536
      %2539 = vset.pattern.permute.xlu0 2
      %2540 = vperm.xlu0 %2539, %v327
      %v2541 = vpop.permute.xlu0 %2540
      %2543 = vset.pattern.permute.xlu0 2
      %2544 = vperm.xlu0 %2543, %v328
      %v2545 = vpop.permute.xlu0 %2544
      %2547 = vset.pattern.permute.xlu0 2
      %2548 = vperm.xlu0 %2547, %v329
      %v2549 = vpop.permute.xlu0 %2548
      %2551 = vset.pattern.permute.xlu0 2
      %2552 = vperm.xlu0 %2551, %v330
      %v2553 = vpop.permute.xlu0 %2552
      %2555 = vset.pattern.permute.xlu0 2
      %2556 = vperm.xlu0 %2555, %v331
      %v2557 = vpop.permute.xlu0 %2556
      %2559 = vset.pattern.permute.xlu0 2
      %2560 = vperm.xlu0 %2559, %v332
      %v2561 = vpop.permute.xlu0 %2560
      %2563 = vset.pattern.permute.xlu0 2
      %2564 = vperm.xlu0 %2563, %v333
      %v2565 = vpop.permute.xlu0 %2564
      %2567 = vset.pattern.permute.xlu0 2
      %2568 = vperm.xlu0 %2567, %v334
      %v2569 = vpop.permute.xlu0 %2568
      %2571 = vset.pattern.permute.xlu0 2
      %2572 = vperm.xlu0 %2571, %v335
      %v2573 = vpop.permute.xlu0 %2572
      %2575 = vset.pattern.permute.xlu0 2
      %2576 = vperm.xlu0 %2575, %v336
      %v2577 = vpop.permute.xlu0 %2576
      %2579 = vset.pattern.permute.xlu0 2
      %2580 = vperm.xlu0 %2579, %v337
      %v2581 = vpop.permute.xlu0 %2580
      %2583 = vset.pattern.permute.xlu0 2
      %2584 = vperm.xlu0 %2583, %v338
      %v2585 = vpop.permute.xlu0 %2584
      %2587 = vset.pattern.permute.xlu0 2
      %2588 = vperm.xlu0 %2587, %v339
      %v2589 = vpop.permute.xlu0 %2588
      %2591 = vset.pattern.permute.xlu0 2
      %2592 = vperm.xlu0 %2591, %v340
      %v2593 = vpop.permute.xlu0 %2592
      %2595 = vset.pattern.permute.xlu0 2
      %2596 = vperm.xlu0 %2595, %v341
      %v2597 = vpop.permute.xlu0 %2596
      %2599 = vset.pattern.permute.xlu0 2
      %2600 = vperm.xlu0 %2599, %v342
      %v2601 = vpop.permute.xlu0 %2600
      %2603 = vset.pattern.permute.xlu0 2
      %2604 = vperm.xlu0 %2603, %v343
      %v2605 = vpop.permute.xlu0 %2604
      %2607 = vset.pattern.permute.xlu0 2
      %2608 = vperm.xlu0 %2607, %v344
      %v2609 = vpop.permute.xlu0 %2608
      %2611 = vset.pattern.permute.xlu0 2
      %2612 = vperm.xlu0 %2611, %v345
      %v2613 = vpop.permute.xlu0 %2612
      %2615 = vset.pattern.permute.xlu0 2
      %2616 = vperm.xlu0 %2615, %v346
      %v2617 = vpop.permute.xlu0 %2616
      %2619 = vset.pattern.permute.xlu0 2
      %2620 = vperm.xlu0 %2619, %v347
      %v2621 = vpop.permute.xlu0 %2620
      %2623 = vset.pattern.permute.xlu0 2
      %2624 = vperm.xlu0 %2623, %v348
      %v2625 = vpop.permute.xlu0 %2624
      %2627 = vset.pattern.permute.xlu0 2
      %2628 = vperm.xlu0 %2627, %v349
      %v2629 = vpop.permute.xlu0 %2628
      %2631 = vset.pattern.permute.xlu0 2
      %2632 = vperm.xlu0 %2631, %v350
      %v2633 = vpop.permute.xlu0 %2632
      %2635 = vset.pattern.permute.xlu0 2
      %2636 = vperm.xlu0 %2635, %v351
      %v2637 = vpop.permute.xlu0 %2636
      %2639 = vset.pattern.permute.xlu0 2
      %2640 = vperm.xlu0 %2639, %v352
      %v2641 = vpop.permute.xlu0 %2640
      %2643 = vset.pattern.permute.xlu0 2
      %2644 = vperm.xlu0 %2643, %v353
      %v2645 = vpop.permute.xlu0 %2644
      %2647 = vset.pattern.permute.xlu0 2
      %2648 = vperm.xlu0 %2647, %v354
      %v2649 = vpop.permute.xlu0 %2648
      %2651 = vset.pattern.permute.xlu0 2
      %2652 = vperm.xlu0 %2651, %v355
      %v2653 = vpop.permute.xlu0 %2652
      %2655 = vset.pattern.permute.xlu0 2
      %2656 = vperm.xlu0 %2655, %v356
      %v2657 = vpop.permute.xlu0 %2656
      %2659 = vset.pattern.permute.xlu0 2
      %2660 = vperm.xlu0 %2659, %v357
      %v2661 = vpop.permute.xlu0 %2660
      %2663 = vset.pattern.permute.xlu0 2
      %2664 = vperm.xlu0 %2663, %v358
      %v2665 = vpop.permute.xlu0 %2664
      %2667 = vset.pattern.permute.xlu0 2
      %2668 = vperm.xlu0 %2667, %v359
      %v2669 = vpop.permute.xlu0 %2668
      %2671 = vset.pattern.permute.xlu0 2
      %2672 = vperm.xlu0 %2671, %v360
      %v2673 = vpop.permute.xlu0 %2672
      %2675 = vset.pattern.permute.xlu0 2
      %2676 = vperm.xlu0 %2675, %v361
      %v2677 = vpop.permute.xlu0 %2676
      %2679 = vset.pattern.permute.xlu0 2
      %2680 = vperm.xlu0 %2679, %v362
      %v2681 = vpop.permute.xlu0 %2680
      %2683 = vset.pattern.permute.xlu0 2
      %2684 = vperm.xlu0 %2683, %v363
      %v2685 = vpop.permute.xlu0 %2684
      %2687 = vset.pattern.permute.xlu0 2
      %2688 = vperm.xlu0 %2687, %v364
      %v2689 = vpop.permute.xlu0 %2688
      %2691 = vset.pattern.permute.xlu0 2
      %2692 = vperm.xlu0 %2691, %v365
      %v2693 = vpop.permute.xlu0 %2692
      %2695 = vset.pattern.permute.xlu0 2
      %2696 = vperm.xlu0 %2695, %v366
      %v2697 = vpop.permute.xlu0 %2696
      %2699 = vset.pattern.permute.xlu0 2
      %2700 = vperm.xlu0 %2699, %v367
      %v2701 = vpop.permute.xlu0 %2700
      %2703 = vset.pattern.permute.xlu0 2
      %2704 = vperm.xlu0 %2703, %v368
      %v2705 = vpop.permute.xlu0 %2704
      %2707 = vset.pattern.permute.xlu0 2
      %2708 = vperm.xlu0 %2707, %v369
      %v2709 = vpop.permute.xlu0 %2708
      %2711 = vset.pattern.permute.xlu0 2
      %2712 = vperm.xlu0 %2711, %v370
      %v2713 = vpop.permute.xlu0 %2712
      %2715 = vset.pattern.permute.xlu0 2
      %2716 = vperm.xlu0 %2715, %v371
      %v2717 = vpop.permute.xlu0 %2716
      %2719 = vset.pattern.permute.xlu0 2
      %2720 = vperm.xlu0 %2719, %v372
      %v2721 = vpop.permute.xlu0 %2720
      %2723 = vset.pattern.permute.xlu0 2
      %2724 = vperm.xlu0 %2723, %v373
      %v2725 = vpop.permute.xlu0 %2724
      %2727 = vset.pattern.permute.xlu0 2
      %2728 = vperm.xlu0 %2727, %v374
      %v2729 = vpop.permute.xlu0 %2728
      %2731 = vset.pattern.permute.xlu0 2
      %2732 = vperm.xlu0 %2731, %v375
      %v2733 = vpop.permute.xlu0 %2732
      %2735 = vset.pattern.permute.xlu0 2
      %2736 = vperm.xlu0 %2735, %v376
      %v2737 = vpop.permute.xlu0 %2736
      %2739 = vset.pattern.permute.xlu0 2
      %2740 = vperm.xlu0 %2739, %v377
      %v2741 = vpop.permute.xlu0 %2740
      %2743 = vset.pattern.permute.xlu0 2
      %2744 = vperm.xlu0 %2743, %v378
      %v2745 = vpop.permute.xlu0 %2744
      %2747 = vset.pattern.permute.xlu0 2
      %2748 = vperm.xlu0 %2747, %v379
      %v2749 = vpop.permute.xlu0 %2748
      %2751 = vset.pattern.permute.xlu0 2
      %2752 = vperm.xlu0 %2751, %v380
      %v2753 = vpop.permute.xlu0 %2752
      %2755 = vset.pattern.permute.xlu0 2
      %2756 = vperm.xlu0 %2755, %v381
      %v2757 = vpop.permute.xlu0 %2756
      %2759 = vset.pattern.permute.xlu0 2
      %2760 = vperm.xlu0 %2759, %v382
      %v2761 = vpop.permute.xlu0 %2760
      %2763 = vset.pattern.permute.xlu0 2
      %2764 = vperm.xlu0 %2763, %v383
      %v2765 = vpop.permute.xlu0 %2764
      %2767 = vset.pattern.permute.xlu0 2
      %2768 = vperm.xlu0 %2767, %v384
      %v2769 = vpop.permute.xlu0 %2768
      %2771 = vset.pattern.permute.xlu0 2
      %2772 = vperm.xlu0 %2771, %v385
      %v2773 = vpop.permute.xlu0 %2772
      %2775 = vset.pattern.permute.xlu0 2
      %2776 = vperm.xlu0 %2775, %v386
      %v2777 = vpop.permute.xlu0 %2776
      %2779 = vset.pattern.permute.xlu0 2
      %2780 = vperm.xlu0 %2779, %v387
      %v2781 = vpop.permute.xlu0 %2780
      %2783 = vset.pattern.permute.xlu0 2
      %2784 = vperm.xlu0 %2783, %v388
      %v2785 = vpop.permute.xlu0 %2784
      %2787 = vset.pattern.permute.xlu0 2
      %2788 = vperm.xlu0 %2787, %v389
      %v2789 = vpop.permute.xlu0 %2788
      %2791 = vset.pattern.permute.xlu0 2
      %2792 = vperm.xlu0 %2791, %v390
      %v2793 = vpop.permute.xlu0 %2792
      %2795 = vset.pattern.permute.xlu0 2
      %2796 = vperm.xlu0 %2795, %v391
      %v2797 = vpop.permute.xlu0 %2796
      %2799 = vset.pattern.permute.xlu0 2
      %2800 = vperm.xlu0 %2799, %v392
      %v2801 = vpop.permute.xlu0 %2800
      %2803 = vset.pattern.permute.xlu0 2
      %2804 = vperm.xlu0 %2803, %v393
      %v2805 = vpop.permute.xlu0 %2804
      %2807 = vset.pattern.permute.xlu0 2
      %2808 = vperm.xlu0 %2807, %v394
      %v2809 = vpop.permute.xlu0 %2808
      %2811 = vset.pattern.permute.xlu0 2
      %2812 = vperm.xlu0 %2811, %v395
      %v2813 = vpop.permute.xlu0 %2812
      %2815 = vset.pattern.permute.xlu0 2
      %2816 = vperm.xlu0 %2815, %v396
      %v2817 = vpop.permute.xlu0 %2816
      %2819 = vset.pattern.permute.xlu0 2
      %2820 = vperm.xlu0 %2819, %v397
      %v2821 = vpop.permute.xlu0 %2820
      %2823 = vset.pattern.permute.xlu0 2
      %2824 = vperm.xlu0 %2823, %v398
      %v2825 = vpop.permute.xlu0 %2824
      %2827 = vset.pattern.permute.xlu0 2
      %2828 = vperm.xlu0 %2827, %v399
      %v2829 = vpop.permute.xlu0 %2828
      %2831 = vset.pattern.permute.xlu0 2
      %2832 = vperm.xlu0 %2831, %v400
      %v2833 = vpop.permute.xlu0 %2832
      %2835 = vset.pattern.permute.xlu0 2
      %2836 = vperm.xlu0 %2835, %v401
      %v2837 = vpop.permute.xlu0 %2836
      %2839 = vset.pattern.permute.xlu0 2
      %2840 = vperm.xlu0 %2839, %v402
      %v2841 = vpop.permute.xlu0 %2840
      %2843 = vset.pattern.permute.xlu0 2
      %2844 = vperm.xlu0 %2843, %v403
      %v2845 = vpop.permute.xlu0 %2844
      %2847 = vset.pattern.permute.xlu0 2
      %2848 = vperm.xlu0 %2847, %v404
      %v2849 = vpop.permute.xlu0 %2848
      %2851 = vset.pattern.permute.xlu0 2
      %2852 = vperm.xlu0 %2851, %v405
      %v2853 = vpop.permute.xlu0 %2852
      %2855 = vset.pattern.permute.xlu0 2
      %2856 = vperm.xlu0 %2855, %v406
      %v2857 = vpop.permute.xlu0 %2856
      %2859 = vset.pattern.permute.xlu0 2
      %2860 = vperm.xlu0 %2859, %v407
      %v2861 = vpop.permute.xlu0 %2860
      %2863 = vset.pattern.permute.xlu0 2
      %2864 = vperm.xlu0 %2863, %v408
      %v2865 = vpop.permute.xlu0 %2864
      %2867 = vset.pattern.permute.xlu0 2
      %2868 = vperm.xlu0 %2867, %v409
      %v2869 = vpop.permute.xlu0 %2868
      %2871 = vset.pattern.permute.xlu0 2
      %2872 = vperm.xlu0 %2871, %v410
      %v2873 = vpop.permute.xlu0 %2872
      %2875 = vset.pattern.permute.xlu0 2
      %2876 = vperm.xlu0 %2875, %v411
      %v2877 = vpop.permute.xlu0 %2876
      %2879 = vset.pattern.permute.xlu0 2
      %2880 = vperm.xlu0 %2879, %v412
      %v2881 = vpop.permute.xlu0 %2880
      %v2883 = vlaneseq
      %v2884 = vshrl.u32 %v2883, 7
      %v2885 = vsub.s32 2, %v2884
      %v2886 = vrot.slane %v413, %v2885
      %v2887 = vlaneseq
      %v2888 = vshrl.u32 %v2887, 7
      %v2889 = vsub.s32 6, %v2888
      %v2890 = vrot.slane %v413, %v2889
      %v2893 = vlaneseq
      %v2894 = vshrl.u32 %v2893, 7
      %v2895 = vsub.s32 2, %v2894
      %v2896 = vrot.slane %v2886, %v2895
      %v2897 = vlaneseq
      %v2898 = vshrl.u32 %v2897, 7
      %v2899 = vsub.s32 2, %v2898
      %v2900 = vrot.slane %v2890, %v2899
      %v2901 = vmul.f32 %v2373, %v2896
      %v2902 = vmul.f32 %v2373, %v2900
      %v2903 = vmul.f32 %v2377, %v2896
      %v2904 = vmul.f32 %v2377, %v2900
      %v2905 = vmul.f32 %v2381, %v2896
      %v2906 = vmul.f32 %v2381, %v2900
      %v2907 = vmul.f32 %v2385, %v2896
      %v2908 = vmul.f32 %v2385, %v2900
      %v2909 = vmul.f32 %v2389, %v2896
      %v2910 = vmul.f32 %v2389, %v2900
      %v2911 = vmul.f32 %v2393, %v2896
      %v2912 = vmul.f32 %v2393, %v2900
      %v2913 = vmul.f32 %v2397, %v2896
      %v2914 = vmul.f32 %v2397, %v2900
      %v2915 = vmul.f32 %v2401, %v2896
      %v2916 = vmul.f32 %v2401, %v2900
      %v2917 = vmul.f32 %v2405, %v2896
      %v2918 = vmul.f32 %v2405, %v2900
      %v2919 = vmul.f32 %v2409, %v2896
      %v2920 = vmul.f32 %v2409, %v2900
      %v2921 = vmul.f32 %v2413, %v2896
      %v2922 = vmul.f32 %v2413, %v2900
      %v2923 = vmul.f32 %v2417, %v2896
      %v2924 = vmul.f32 %v2417, %v2900
      %v2925 = vmul.f32 %v2421, %v2896
      %v2926 = vmul.f32 %v2421, %v2900
      %v2927 = vmul.f32 %v2425, %v2896
      %v2928 = vmul.f32 %v2425, %v2900
      %v2929 = vmul.f32 %v2429, %v2896
      %v2930 = vmul.f32 %v2429, %v2900
      %v2931 = vmul.f32 %v2433, %v2896
      %v2932 = vmul.f32 %v2433, %v2900
      %v2933 = vmul.f32 %v2437, %v2896
      %v2934 = vmul.f32 %v2437, %v2900
      %v2935 = vmul.f32 %v2441, %v2896
      %v2936 = vmul.f32 %v2441, %v2900
      %v2937 = vmul.f32 %v2445, %v2896
      %v2938 = vmul.f32 %v2445, %v2900
      %v2939 = vmul.f32 %v2449, %v2896
      %v2940 = vmul.f32 %v2449, %v2900
      %v2941 = vmul.f32 %v2453, %v2896
      %v2942 = vmul.f32 %v2453, %v2900
      %v2943 = vmul.f32 %v2457, %v2896
      %v2944 = vmul.f32 %v2457, %v2900
      %v2945 = vmul.f32 %v2461, %v2896
      %v2946 = vmul.f32 %v2461, %v2900
      %v2947 = vmul.f32 %v2465, %v2896
      %v2948 = vmul.f32 %v2465, %v2900
      %v2949 = vmul.f32 %v2469, %v2896
      %v2950 = vmul.f32 %v2469, %v2900
      %v2951 = vmul.f32 %v2473, %v2896
      %v2952 = vmul.f32 %v2473, %v2900
      %v2953 = vmul.f32 %v2477, %v2896
      %v2954 = vmul.f32 %v2477, %v2900
      %v2955 = vmul.f32 %v2481, %v2896
      %v2956 = vmul.f32 %v2481, %v2900
      %v2957 = vmul.f32 %v2485, %v2896
      %v2958 = vmul.f32 %v2485, %v2900
      %v2959 = vmul.f32 %v2489, %v2896
      %v2960 = vmul.f32 %v2489, %v2900
      %v2961 = vmul.f32 %v2493, %v2896
      %v2962 = vmul.f32 %v2493, %v2900
      %v2963 = vmul.f32 %v2497, %v2896
      %v2964 = vmul.f32 %v2497, %v2900
      %v2965 = vmul.f32 %v2501, %v2896
      %v2966 = vmul.f32 %v2501, %v2900
      %v2967 = vmul.f32 %v2505, %v2896
      %v2968 = vmul.f32 %v2505, %v2900
      %v2969 = vmul.f32 %v2509, %v2896
      %v2970 = vmul.f32 %v2509, %v2900
      %v2971 = vmul.f32 %v2513, %v2896
      %v2972 = vmul.f32 %v2513, %v2900
      %v2973 = vmul.f32 %v2517, %v2896
      %v2974 = vmul.f32 %v2517, %v2900
      %v2975 = vmul.f32 %v2521, %v2896
      %v2976 = vmul.f32 %v2521, %v2900
      %v2977 = vmul.f32 %v2525, %v2896
      %v2978 = vmul.f32 %v2525, %v2900
      %v2979 = vmul.f32 %v2529, %v2896
      %v2980 = vmul.f32 %v2529, %v2900
      %v2981 = vmul.f32 %v2533, %v2896
      %v2982 = vmul.f32 %v2533, %v2900
      %v2983 = vmul.f32 %v2537, %v2896
      %v2984 = vmul.f32 %v2537, %v2900
      %v2985 = vmul.f32 %v2541, %v2896
      %v2986 = vmul.f32 %v2541, %v2900
      %v2987 = vmul.f32 %v2545, %v2896
      %v2988 = vmul.f32 %v2545, %v2900
      %v2989 = vmul.f32 %v2549, %v2896
      %v2990 = vmul.f32 %v2549, %v2900
      %v2991 = vmul.f32 %v2553, %v2896
      %v2992 = vmul.f32 %v2553, %v2900
      %v2993 = vmul.f32 %v2557, %v2896
      %v2994 = vmul.f32 %v2557, %v2900
      %v2995 = vmul.f32 %v2561, %v2896
      %v2996 = vmul.f32 %v2561, %v2900
      %v2997 = vmul.f32 %v2565, %v2896
      %v2998 = vmul.f32 %v2565, %v2900
      %v2999 = vmul.f32 %v2569, %v2896
      %v3000 = vmul.f32 %v2569, %v2900
      %v3001 = vmul.f32 %v2573, %v2896
      %v3002 = vmul.f32 %v2573, %v2900
      %v3003 = vmul.f32 %v2577, %v2896
      %v3004 = vmul.f32 %v2577, %v2900
      %v3005 = vmul.f32 %v2581, %v2896
      %v3006 = vmul.f32 %v2581, %v2900
      %v3007 = vmul.f32 %v2585, %v2896
      %v3008 = vmul.f32 %v2585, %v2900
      %v3009 = vmul.f32 %v2589, %v2896
      %v3010 = vmul.f32 %v2589, %v2900
      %v3011 = vmul.f32 %v2593, %v2896
      %v3012 = vmul.f32 %v2593, %v2900
      %v3013 = vmul.f32 %v2597, %v2896
      %v3014 = vmul.f32 %v2597, %v2900
      %v3015 = vmul.f32 %v2601, %v2896
      %v3016 = vmul.f32 %v2601, %v2900
      %v3017 = vmul.f32 %v2605, %v2896
      %v3018 = vmul.f32 %v2605, %v2900
      %v3019 = vmul.f32 %v2609, %v2896
      %v3020 = vmul.f32 %v2609, %v2900
      %v3021 = vmul.f32 %v2613, %v2896
      %v3022 = vmul.f32 %v2613, %v2900
      %v3023 = vmul.f32 %v2617, %v2896
      %v3024 = vmul.f32 %v2617, %v2900
      %v3025 = vmul.f32 %v2621, %v2896
      %v3026 = vmul.f32 %v2621, %v2900
      %v3027 = vmul.f32 %v2625, %v2896
      %v3028 = vmul.f32 %v2625, %v2900
      %v3029 = vmul.f32 %v2629, %v2896
      %v3030 = vmul.f32 %v2629, %v2900
      %v3031 = vmul.f32 %v2633, %v2896
      %v3032 = vmul.f32 %v2633, %v2900
      %v3033 = vmul.f32 %v2637, %v2896
      %v3034 = vmul.f32 %v2637, %v2900
      %v3035 = vmul.f32 %v2641, %v2896
      %v3036 = vmul.f32 %v2641, %v2900
      %v3037 = vmul.f32 %v2645, %v2896
      %v3038 = vmul.f32 %v2645, %v2900
      %v3039 = vmul.f32 %v2649, %v2896
      %v3040 = vmul.f32 %v2649, %v2900
      %v3041 = vmul.f32 %v2653, %v2896
      %v3042 = vmul.f32 %v2653, %v2900
      %v3043 = vmul.f32 %v2657, %v2896
      %v3044 = vmul.f32 %v2657, %v2900
      %v3045 = vmul.f32 %v2661, %v2896
      %v3046 = vmul.f32 %v2661, %v2900
      %v3047 = vmul.f32 %v2665, %v2896
      %v3048 = vmul.f32 %v2665, %v2900
      %v3049 = vmul.f32 %v2669, %v2896
      %v3050 = vmul.f32 %v2669, %v2900
      %v3051 = vmul.f32 %v2673, %v2896
      %v3052 = vmul.f32 %v2673, %v2900
      %v3053 = vmul.f32 %v2677, %v2896
      %v3054 = vmul.f32 %v2677, %v2900
      %v3055 = vmul.f32 %v2681, %v2896
      %v3056 = vmul.f32 %v2681, %v2900
      %v3057 = vmul.f32 %v2685, %v2896
      %v3058 = vmul.f32 %v2685, %v2900
      %v3059 = vmul.f32 %v2689, %v2896
      %v3060 = vmul.f32 %v2689, %v2900
      %v3061 = vmul.f32 %v2693, %v2896
      %v3062 = vmul.f32 %v2693, %v2900
      %v3063 = vmul.f32 %v2697, %v2896
      %v3064 = vmul.f32 %v2697, %v2900
      %v3065 = vmul.f32 %v2701, %v2896
      %v3066 = vmul.f32 %v2701, %v2900
      %v3067 = vmul.f32 %v2705, %v2896
      %v3068 = vmul.f32 %v2705, %v2900
      %v3069 = vmul.f32 %v2709, %v2896
      %v3070 = vmul.f32 %v2709, %v2900
      %v3071 = vmul.f32 %v2713, %v2896
      %v3072 = vmul.f32 %v2713, %v2900
      %v3073 = vmul.f32 %v2717, %v2896
      %v3074 = vmul.f32 %v2717, %v2900
      %v3075 = vmul.f32 %v2721, %v2896
      %v3076 = vmul.f32 %v2721, %v2900
      %v3077 = vmul.f32 %v2725, %v2896
      %v3078 = vmul.f32 %v2725, %v2900
      %v3079 = vmul.f32 %v2729, %v2896
      %v3080 = vmul.f32 %v2729, %v2900
      %v3081 = vmul.f32 %v2733, %v2896
      %v3082 = vmul.f32 %v2733, %v2900
      %v3083 = vmul.f32 %v2737, %v2896
      %v3084 = vmul.f32 %v2737, %v2900
      %v3085 = vmul.f32 %v2741, %v2896
      %v3086 = vmul.f32 %v2741, %v2900
      %v3087 = vmul.f32 %v2745, %v2896
      %v3088 = vmul.f32 %v2745, %v2900
      %v3089 = vmul.f32 %v2749, %v2896
      %v3090 = vmul.f32 %v2749, %v2900
      %v3091 = vmul.f32 %v2753, %v2896
      %v3092 = vmul.f32 %v2753, %v2900
      %v3093 = vmul.f32 %v2757, %v2896
      %v3094 = vmul.f32 %v2757, %v2900
      %v3095 = vmul.f32 %v2761, %v2896
      %v3096 = vmul.f32 %v2761, %v2900
      %v3097 = vmul.f32 %v2765, %v2896
      %v3098 = vmul.f32 %v2765, %v2900
      %v3099 = vmul.f32 %v2769, %v2896
      %v3100 = vmul.f32 %v2769, %v2900
      %v3101 = vmul.f32 %v2773, %v2896
      %v3102 = vmul.f32 %v2773, %v2900
      %v3103 = vmul.f32 %v2777, %v2896
      %v3104 = vmul.f32 %v2777, %v2900
      %v3105 = vmul.f32 %v2781, %v2896
      %v3106 = vmul.f32 %v2781, %v2900
      %v3107 = vmul.f32 %v2785, %v2896
      %v3108 = vmul.f32 %v2785, %v2900
      %v3109 = vmul.f32 %v2789, %v2896
      %v3110 = vmul.f32 %v2789, %v2900
      %v3111 = vmul.f32 %v2793, %v2896
      %v3112 = vmul.f32 %v2793, %v2900
      %v3113 = vmul.f32 %v2797, %v2896
      %v3114 = vmul.f32 %v2797, %v2900
      %v3115 = vmul.f32 %v2801, %v2896
      %v3116 = vmul.f32 %v2801, %v2900
      %v3117 = vmul.f32 %v2805, %v2896
      %v3118 = vmul.f32 %v2805, %v2900
      %v3119 = vmul.f32 %v2809, %v2896
      %v3120 = vmul.f32 %v2809, %v2900
      %v3121 = vmul.f32 %v2813, %v2896
      %v3122 = vmul.f32 %v2813, %v2900
      %v3123 = vmul.f32 %v2817, %v2896
      %v3124 = vmul.f32 %v2817, %v2900
      %v3125 = vmul.f32 %v2821, %v2896
      %v3126 = vmul.f32 %v2821, %v2900
      %v3127 = vmul.f32 %v2825, %v2896
      %v3128 = vmul.f32 %v2825, %v2900
      %v3129 = vmul.f32 %v2829, %v2896
      %v3130 = vmul.f32 %v2829, %v2900
      %v3131 = vmul.f32 %v2833, %v2896
      %v3132 = vmul.f32 %v2833, %v2900
      %v3133 = vmul.f32 %v2837, %v2896
      %v3134 = vmul.f32 %v2837, %v2900
      %v3135 = vmul.f32 %v2841, %v2896
      %v3136 = vmul.f32 %v2841, %v2900
      %v3137 = vmul.f32 %v2845, %v2896
      %v3138 = vmul.f32 %v2845, %v2900
      %v3139 = vmul.f32 %v2849, %v2896
      %v3140 = vmul.f32 %v2849, %v2900
      %v3141 = vmul.f32 %v2853, %v2896
      %v3142 = vmul.f32 %v2853, %v2900
      %v3143 = vmul.f32 %v2857, %v2896
      %v3144 = vmul.f32 %v2857, %v2900
      %v3145 = vmul.f32 %v2861, %v2896
      %v3146 = vmul.f32 %v2861, %v2900
      %v3147 = vmul.f32 %v2865, %v2896
      %v3148 = vmul.f32 %v2865, %v2900
      %v3149 = vmul.f32 %v2869, %v2896
      %v3150 = vmul.f32 %v2869, %v2900
      %v3151 = vmul.f32 %v2873, %v2896
      %v3152 = vmul.f32 %v2873, %v2900
      %v3153 = vmul.f32 %v2877, %v2896
      %v3154 = vmul.f32 %v2877, %v2900
      %v3155 = vmul.f32 %v2881, %v2896
      %v3156 = vmul.f32 %v2881, %v2900
      %v3157 = vadd.f32 %v2115, %v2901
      %v3158 = vadd.f32 %v2116, %v2902
      %v3159 = vadd.f32 %v2117, %v2903
      %v3160 = vadd.f32 %v2118, %v2904
      %v3161 = vadd.f32 %v2119, %v2905
      %v3162 = vadd.f32 %v2120, %v2906
      %v3163 = vadd.f32 %v2121, %v2907
      %v3164 = vadd.f32 %v2122, %v2908
      %v3165 = vadd.f32 %v2123, %v2909
      %v3166 = vadd.f32 %v2124, %v2910
      %v3167 = vadd.f32 %v2125, %v2911
      %v3168 = vadd.f32 %v2126, %v2912
      %v3169 = vadd.f32 %v2127, %v2913
      %v3170 = vadd.f32 %v2128, %v2914
      %v3171 = vadd.f32 %v2129, %v2915
      %v3172 = vadd.f32 %v2130, %v2916
      %v3173 = vadd.f32 %v2131, %v2917
      %v3174 = vadd.f32 %v2132, %v2918
      %v3175 = vadd.f32 %v2133, %v2919
      %v3176 = vadd.f32 %v2134, %v2920
      %v3177 = vadd.f32 %v2135, %v2921
      %v3178 = vadd.f32 %v2136, %v2922
      %v3179 = vadd.f32 %v2137, %v2923
      %v3180 = vadd.f32 %v2138, %v2924
      %v3181 = vadd.f32 %v2139, %v2925
      %v3182 = vadd.f32 %v2140, %v2926
      %v3183 = vadd.f32 %v2141, %v2927
      %v3184 = vadd.f32 %v2142, %v2928
      %v3185 = vadd.f32 %v2143, %v2929
      %v3186 = vadd.f32 %v2144, %v2930
      %v3187 = vadd.f32 %v2145, %v2931
      %v3188 = vadd.f32 %v2146, %v2932
      %v3189 = vadd.f32 %v2147, %v2933
      %v3190 = vadd.f32 %v2148, %v2934
      %v3191 = vadd.f32 %v2149, %v2935
      %v3192 = vadd.f32 %v2150, %v2936
      %v3193 = vadd.f32 %v2151, %v2937
      %v3194 = vadd.f32 %v2152, %v2938
      %v3195 = vadd.f32 %v2153, %v2939
      %v3196 = vadd.f32 %v2154, %v2940
      %v3197 = vadd.f32 %v2155, %v2941
      %v3198 = vadd.f32 %v2156, %v2942
      %v3199 = vadd.f32 %v2157, %v2943
      %v3200 = vadd.f32 %v2158, %v2944
      %v3201 = vadd.f32 %v2159, %v2945
      %v3202 = vadd.f32 %v2160, %v2946
      %v3203 = vadd.f32 %v2161, %v2947
      %v3204 = vadd.f32 %v2162, %v2948
      %v3205 = vadd.f32 %v2163, %v2949
      %v3206 = vadd.f32 %v2164, %v2950
      %v3207 = vadd.f32 %v2165, %v2951
      %v3208 = vadd.f32 %v2166, %v2952
      %v3209 = vadd.f32 %v2167, %v2953
      %v3210 = vadd.f32 %v2168, %v2954
      %v3211 = vadd.f32 %v2169, %v2955
      %v3212 = vadd.f32 %v2170, %v2956
      %v3213 = vadd.f32 %v2171, %v2957
      %v3214 = vadd.f32 %v2172, %v2958
      %v3215 = vadd.f32 %v2173, %v2959
      %v3216 = vadd.f32 %v2174, %v2960
      %v3217 = vadd.f32 %v2175, %v2961
      %v3218 = vadd.f32 %v2176, %v2962
      %v3219 = vadd.f32 %v2177, %v2963
      %v3220 = vadd.f32 %v2178, %v2964
      %v3221 = vadd.f32 %v2179, %v2965
      %v3222 = vadd.f32 %v2180, %v2966
      %v3223 = vadd.f32 %v2181, %v2967
      %v3224 = vadd.f32 %v2182, %v2968
      %v3225 = vadd.f32 %v2183, %v2969
      %v3226 = vadd.f32 %v2184, %v2970
      %v3227 = vadd.f32 %v2185, %v2971
      %v3228 = vadd.f32 %v2186, %v2972
      %v3229 = vadd.f32 %v2187, %v2973
      %v3230 = vadd.f32 %v2188, %v2974
      %v3231 = vadd.f32 %v2189, %v2975
      %v3232 = vadd.f32 %v2190, %v2976
      %v3233 = vadd.f32 %v2191, %v2977
      %v3234 = vadd.f32 %v2192, %v2978
      %v3235 = vadd.f32 %v2193, %v2979
      %v3236 = vadd.f32 %v2194, %v2980
      %v3237 = vadd.f32 %v2195, %v2981
      %v3238 = vadd.f32 %v2196, %v2982
      %v3239 = vadd.f32 %v2197, %v2983
      %v3240 = vadd.f32 %v2198, %v2984
      %v3241 = vadd.f32 %v2199, %v2985
      %v3242 = vadd.f32 %v2200, %v2986
      %v3243 = vadd.f32 %v2201, %v2987
      %v3244 = vadd.f32 %v2202, %v2988
      %v3245 = vadd.f32 %v2203, %v2989
      %v3246 = vadd.f32 %v2204, %v2990
      %v3247 = vadd.f32 %v2205, %v2991
      %v3248 = vadd.f32 %v2206, %v2992
      %v3249 = vadd.f32 %v2207, %v2993
      %v3250 = vadd.f32 %v2208, %v2994
      %v3251 = vadd.f32 %v2209, %v2995
      %v3252 = vadd.f32 %v2210, %v2996
      %v3253 = vadd.f32 %v2211, %v2997
      %v3254 = vadd.f32 %v2212, %v2998
      %v3255 = vadd.f32 %v2213, %v2999
      %v3256 = vadd.f32 %v2214, %v3000
      %v3257 = vadd.f32 %v2215, %v3001
      %v3258 = vadd.f32 %v2216, %v3002
      %v3259 = vadd.f32 %v2217, %v3003
      %v3260 = vadd.f32 %v2218, %v3004
      %v3261 = vadd.f32 %v2219, %v3005
      %v3262 = vadd.f32 %v2220, %v3006
      %v3263 = vadd.f32 %v2221, %v3007
      %v3264 = vadd.f32 %v2222, %v3008
      %v3265 = vadd.f32 %v2223, %v3009
      %v3266 = vadd.f32 %v2224, %v3010
      %v3267 = vadd.f32 %v2225, %v3011
      %v3268 = vadd.f32 %v2226, %v3012
      %v3269 = vadd.f32 %v2227, %v3013
      %v3270 = vadd.f32 %v2228, %v3014
      %v3271 = vadd.f32 %v2229, %v3015
      %v3272 = vadd.f32 %v2230, %v3016
      %v3273 = vadd.f32 %v2231, %v3017
      %v3274 = vadd.f32 %v2232, %v3018
      %v3275 = vadd.f32 %v2233, %v3019
      %v3276 = vadd.f32 %v2234, %v3020
      %v3277 = vadd.f32 %v2235, %v3021
      %v3278 = vadd.f32 %v2236, %v3022
      %v3279 = vadd.f32 %v2237, %v3023
      %v3280 = vadd.f32 %v2238, %v3024
      %v3281 = vadd.f32 %v2239, %v3025
      %v3282 = vadd.f32 %v2240, %v3026
      %v3283 = vadd.f32 %v2241, %v3027
      %v3284 = vadd.f32 %v2242, %v3028
      %v3285 = vadd.f32 %v2243, %v3029
      %v3286 = vadd.f32 %v2244, %v3030
      %v3287 = vadd.f32 %v2245, %v3031
      %v3288 = vadd.f32 %v2246, %v3032
      %v3289 = vadd.f32 %v2247, %v3033
      %v3290 = vadd.f32 %v2248, %v3034
      %v3291 = vadd.f32 %v2249, %v3035
      %v3292 = vadd.f32 %v2250, %v3036
      %v3293 = vadd.f32 %v2251, %v3037
      %v3294 = vadd.f32 %v2252, %v3038
      %v3295 = vadd.f32 %v2253, %v3039
      %v3296 = vadd.f32 %v2254, %v3040
      %v3297 = vadd.f32 %v2255, %v3041
      %v3298 = vadd.f32 %v2256, %v3042
      %v3299 = vadd.f32 %v2257, %v3043
      %v3300 = vadd.f32 %v2258, %v3044
      %v3301 = vadd.f32 %v2259, %v3045
      %v3302 = vadd.f32 %v2260, %v3046
      %v3303 = vadd.f32 %v2261, %v3047
      %v3304 = vadd.f32 %v2262, %v3048
      %v3305 = vadd.f32 %v2263, %v3049
      %v3306 = vadd.f32 %v2264, %v3050
      %v3307 = vadd.f32 %v2265, %v3051
      %v3308 = vadd.f32 %v2266, %v3052
      %v3309 = vadd.f32 %v2267, %v3053
      %v3310 = vadd.f32 %v2268, %v3054
      %v3311 = vadd.f32 %v2269, %v3055
      %v3312 = vadd.f32 %v2270, %v3056
      %v3313 = vadd.f32 %v2271, %v3057
      %v3314 = vadd.f32 %v2272, %v3058
      %v3315 = vadd.f32 %v2273, %v3059
      %v3316 = vadd.f32 %v2274, %v3060
      %v3317 = vadd.f32 %v2275, %v3061
      %v3318 = vadd.f32 %v2276, %v3062
      %v3319 = vadd.f32 %v2277, %v3063
      %v3320 = vadd.f32 %v2278, %v3064
      %v3321 = vadd.f32 %v2279, %v3065
      %v3322 = vadd.f32 %v2280, %v3066
      %v3323 = vadd.f32 %v2281, %v3067
      %v3324 = vadd.f32 %v2282, %v3068
      %v3325 = vadd.f32 %v2283, %v3069
      %v3326 = vadd.f32 %v2284, %v3070
      %v3327 = vadd.f32 %v2285, %v3071
      %v3328 = vadd.f32 %v2286, %v3072
      %v3329 = vadd.f32 %v2287, %v3073
      %v3330 = vadd.f32 %v2288, %v3074
      %v3331 = vadd.f32 %v2289, %v3075
      %v3332 = vadd.f32 %v2290, %v3076
      %v3333 = vadd.f32 %v2291, %v3077
      %v3334 = vadd.f32 %v2292, %v3078
      %v3335 = vadd.f32 %v2293, %v3079
      %v3336 = vadd.f32 %v2294, %v3080
      %v3337 = vadd.f32 %v2295, %v3081
      %v3338 = vadd.f32 %v2296, %v3082
      %v3339 = vadd.f32 %v2297, %v3083
      %v3340 = vadd.f32 %v2298, %v3084
      %v3341 = vadd.f32 %v2299, %v3085
      %v3342 = vadd.f32 %v2300, %v3086
      %v3343 = vadd.f32 %v2301, %v3087
      %v3344 = vadd.f32 %v2302, %v3088
      %v3345 = vadd.f32 %v2303, %v3089
      %v3346 = vadd.f32 %v2304, %v3090
      %v3347 = vadd.f32 %v2305, %v3091
      %v3348 = vadd.f32 %v2306, %v3092
      %v3349 = vadd.f32 %v2307, %v3093
      %v3350 = vadd.f32 %v2308, %v3094
      %v3351 = vadd.f32 %v2309, %v3095
      %v3352 = vadd.f32 %v2310, %v3096
      %v3353 = vadd.f32 %v2311, %v3097
      %v3354 = vadd.f32 %v2312, %v3098
      %v3355 = vadd.f32 %v2313, %v3099
      %v3356 = vadd.f32 %v2314, %v3100
      %v3357 = vadd.f32 %v2315, %v3101
      %v3358 = vadd.f32 %v2316, %v3102
      %v3359 = vadd.f32 %v2317, %v3103
      %v3360 = vadd.f32 %v2318, %v3104
      %v3361 = vadd.f32 %v2319, %v3105
      %v3362 = vadd.f32 %v2320, %v3106
      %v3363 = vadd.f32 %v2321, %v3107
      %v3364 = vadd.f32 %v2322, %v3108
      %v3365 = vadd.f32 %v2323, %v3109
      %v3366 = vadd.f32 %v2324, %v3110
      %v3367 = vadd.f32 %v2325, %v3111
      %v3368 = vadd.f32 %v2326, %v3112
      %v3369 = vadd.f32 %v2327, %v3113
      %v3370 = vadd.f32 %v2328, %v3114
      %v3371 = vadd.f32 %v2329, %v3115
      %v3372 = vadd.f32 %v2330, %v3116
      %v3373 = vadd.f32 %v2331, %v3117
      %v3374 = vadd.f32 %v2332, %v3118
      %v3375 = vadd.f32 %v2333, %v3119
      %v3376 = vadd.f32 %v2334, %v3120
      %v3377 = vadd.f32 %v2335, %v3121
      %v3378 = vadd.f32 %v2336, %v3122
      %v3379 = vadd.f32 %v2337, %v3123
      %v3380 = vadd.f32 %v2338, %v3124
      %v3381 = vadd.f32 %v2339, %v3125
      %v3382 = vadd.f32 %v2340, %v3126
      %v3383 = vadd.f32 %v2341, %v3127
      %v3384 = vadd.f32 %v2342, %v3128
      %v3385 = vadd.f32 %v2343, %v3129
      %v3386 = vadd.f32 %v2344, %v3130
      %v3387 = vadd.f32 %v2345, %v3131
      %v3388 = vadd.f32 %v2346, %v3132
      %v3389 = vadd.f32 %v2347, %v3133
      %v3390 = vadd.f32 %v2348, %v3134
      %v3391 = vadd.f32 %v2349, %v3135
      %v3392 = vadd.f32 %v2350, %v3136
      %v3393 = vadd.f32 %v2351, %v3137
      %v3394 = vadd.f32 %v2352, %v3138
      %v3395 = vadd.f32 %v2353, %v3139
      %v3396 = vadd.f32 %v2354, %v3140
      %v3397 = vadd.f32 %v2355, %v3141
      %v3398 = vadd.f32 %v2356, %v3142
      %v3399 = vadd.f32 %v2357, %v3143
      %v3400 = vadd.f32 %v2358, %v3144
      %v3401 = vadd.f32 %v2359, %v3145
      %v3402 = vadd.f32 %v2360, %v3146
      %v3403 = vadd.f32 %v2361, %v3147
      %v3404 = vadd.f32 %v2362, %v3148
      %v3405 = vadd.f32 %v2363, %v3149
      %v3406 = vadd.f32 %v2364, %v3150
      %v3407 = vadd.f32 %v2365, %v3151
      %v3408 = vadd.f32 %v2366, %v3152
      %v3409 = vadd.f32 %v2367, %v3153
      %v3410 = vadd.f32 %v2368, %v3154
      %v3411 = vadd.f32 %v2369, %v3155
      %v3412 = vadd.f32 %v2370, %v3156
      %v3413 = vld [vmem:[%s2] sm:$0x3]
      %v3415 = vlaneseq
      %v3416 = vshrl.u32 %v3415, 7
      %v3417 = vsub.s32 0, %v3416
      %v3418 = vrot.slane %v3413, %v3417
      %v3419 = vlaneseq
      %v3420 = vshrl.u32 %v3419, 7
      %v3421 = vsub.s32 1, %v3420
      %v3422 = vrot.slane %v3413, %v3421
      %v3425 = vadd.f32 %v3157, %v3418
      %v3426 = vadd.f32 %v3158, %v3422
      %v3427 = vadd.f32 %v3159, %v3418
      %v3428 = vadd.f32 %v3160, %v3422
      %v3429 = vadd.f32 %v3161, %v3418
      %v3430 = vadd.f32 %v3162, %v3422
      %v3431 = vadd.f32 %v3163, %v3418
      %v3432 = vadd.f32 %v3164, %v3422
      %v3433 = vadd.f32 %v3165, %v3418
      %v3434 = vadd.f32 %v3166, %v3422
      %v3435 = vadd.f32 %v3167, %v3418
      %v3436 = vadd.f32 %v3168, %v3422
      %v3437 = vadd.f32 %v3169, %v3418
      %v3438 = vadd.f32 %v3170, %v3422
      %v3439 = vadd.f32 %v3171, %v3418
      %v3440 = vadd.f32 %v3172, %v3422
      %v3441 = vadd.f32 %v3173, %v3418
      %v3442 = vadd.f32 %v3174, %v3422
      %v3443 = vadd.f32 %v3175, %v3418
      %v3444 = vadd.f32 %v3176, %v3422
      %v3445 = vadd.f32 %v3177, %v3418
      %v3446 = vadd.f32 %v3178, %v3422
      %v3447 = vadd.f32 %v3179, %v3418
      %v3448 = vadd.f32 %v3180, %v3422
      %v3449 = vadd.f32 %v3181, %v3418
      %v3450 = vadd.f32 %v3182, %v3422
      %v3451 = vadd.f32 %v3183, %v3418
      %v3452 = vadd.f32 %v3184, %v3422
      %v3453 = vadd.f32 %v3185, %v3418
      %v3454 = vadd.f32 %v3186, %v3422
      %v3455 = vadd.f32 %v3187, %v3418
      %v3456 = vadd.f32 %v3188, %v3422
      %v3457 = vadd.f32 %v3189, %v3418
      %v3458 = vadd.f32 %v3190, %v3422
      %v3459 = vadd.f32 %v3191, %v3418
      %v3460 = vadd.f32 %v3192, %v3422
      %v3461 = vadd.f32 %v3193, %v3418
      %v3462 = vadd.f32 %v3194, %v3422
      %v3463 = vadd.f32 %v3195, %v3418
      %v3464 = vadd.f32 %v3196, %v3422
      %v3465 = vadd.f32 %v3197, %v3418
      %v3466 = vadd.f32 %v3198, %v3422
      %v3467 = vadd.f32 %v3199, %v3418
      %v3468 = vadd.f32 %v3200, %v3422
      %v3469 = vadd.f32 %v3201, %v3418
      %v3470 = vadd.f32 %v3202, %v3422
      %v3471 = vadd.f32 %v3203, %v3418
      %v3472 = vadd.f32 %v3204, %v3422
      %v3473 = vadd.f32 %v3205, %v3418
      %v3474 = vadd.f32 %v3206, %v3422
      %v3475 = vadd.f32 %v3207, %v3418
      %v3476 = vadd.f32 %v3208, %v3422
      %v3477 = vadd.f32 %v3209, %v3418
      %v3478 = vadd.f32 %v3210, %v3422
      %v3479 = vadd.f32 %v3211, %v3418
      %v3480 = vadd.f32 %v3212, %v3422
      %v3481 = vadd.f32 %v3213, %v3418
      %v3482 = vadd.f32 %v3214, %v3422
      %v3483 = vadd.f32 %v3215, %v3418
      %v3484 = vadd.f32 %v3216, %v3422
      %v3485 = vadd.f32 %v3217, %v3418
      %v3486 = vadd.f32 %v3218, %v3422
      %v3487 = vadd.f32 %v3219, %v3418
      %v3488 = vadd.f32 %v3220, %v3422
      %v3489 = vadd.f32 %v3221, %v3418
      %v3490 = vadd.f32 %v3222, %v3422
      %v3491 = vadd.f32 %v3223, %v3418
      %v3492 = vadd.f32 %v3224, %v3422
      %v3493 = vadd.f32 %v3225, %v3418
      %v3494 = vadd.f32 %v3226, %v3422
      %v3495 = vadd.f32 %v3227, %v3418
      %v3496 = vadd.f32 %v3228, %v3422
      %v3497 = vadd.f32 %v3229, %v3418
      %v3498 = vadd.f32 %v3230, %v3422
      %v3499 = vadd.f32 %v3231, %v3418
      %v3500 = vadd.f32 %v3232, %v3422
      %v3501 = vadd.f32 %v3233, %v3418
      %v3502 = vadd.f32 %v3234, %v3422
      %v3503 = vadd.f32 %v3235, %v3418
      %v3504 = vadd.f32 %v3236, %v3422
      %v3505 = vadd.f32 %v3237, %v3418
      %v3506 = vadd.f32 %v3238, %v3422
      %v3507 = vadd.f32 %v3239, %v3418
      %v3508 = vadd.f32 %v3240, %v3422
      %v3509 = vadd.f32 %v3241, %v3418
      %v3510 = vadd.f32 %v3242, %v3422
      %v3511 = vadd.f32 %v3243, %v3418
      %v3512 = vadd.f32 %v3244, %v3422
      %v3513 = vadd.f32 %v3245, %v3418
      %v3514 = vadd.f32 %v3246, %v3422
      %v3515 = vadd.f32 %v3247, %v3418
      %v3516 = vadd.f32 %v3248, %v3422
      %v3517 = vadd.f32 %v3249, %v3418
      %v3518 = vadd.f32 %v3250, %v3422
      %v3519 = vadd.f32 %v3251, %v3418
      %v3520 = vadd.f32 %v3252, %v3422
      %v3521 = vadd.f32 %v3253, %v3418
      %v3522 = vadd.f32 %v3254, %v3422
      %v3523 = vadd.f32 %v3255, %v3418
      %v3524 = vadd.f32 %v3256, %v3422
      %v3525 = vadd.f32 %v3257, %v3418
      %v3526 = vadd.f32 %v3258, %v3422
      %v3527 = vadd.f32 %v3259, %v3418
      %v3528 = vadd.f32 %v3260, %v3422
      %v3529 = vadd.f32 %v3261, %v3418
      %v3530 = vadd.f32 %v3262, %v3422
      %v3531 = vadd.f32 %v3263, %v3418
      %v3532 = vadd.f32 %v3264, %v3422
      %v3533 = vadd.f32 %v3265, %v3418
      %v3534 = vadd.f32 %v3266, %v3422
      %v3535 = vadd.f32 %v3267, %v3418
      %v3536 = vadd.f32 %v3268, %v3422
      %v3537 = vadd.f32 %v3269, %v3418
      %v3538 = vadd.f32 %v3270, %v3422
      %v3539 = vadd.f32 %v3271, %v3418
      %v3540 = vadd.f32 %v3272, %v3422
      %v3541 = vadd.f32 %v3273, %v3418
      %v3542 = vadd.f32 %v3274, %v3422
      %v3543 = vadd.f32 %v3275, %v3418
      %v3544 = vadd.f32 %v3276, %v3422
      %v3545 = vadd.f32 %v3277, %v3418
      %v3546 = vadd.f32 %v3278, %v3422
      %v3547 = vadd.f32 %v3279, %v3418
      %v3548 = vadd.f32 %v3280, %v3422
      %v3549 = vadd.f32 %v3281, %v3418
      %v3550 = vadd.f32 %v3282, %v3422
      %v3551 = vadd.f32 %v3283, %v3418
      %v3552 = vadd.f32 %v3284, %v3422
      %v3553 = vadd.f32 %v3285, %v3418
      %v3554 = vadd.f32 %v3286, %v3422
      %v3555 = vadd.f32 %v3287, %v3418
      %v3556 = vadd.f32 %v3288, %v3422
      %v3557 = vadd.f32 %v3289, %v3418
      %v3558 = vadd.f32 %v3290, %v3422
      %v3559 = vadd.f32 %v3291, %v3418
      %v3560 = vadd.f32 %v3292, %v3422
      %v3561 = vadd.f32 %v3293, %v3418
      %v3562 = vadd.f32 %v3294, %v3422
      %v3563 = vadd.f32 %v3295, %v3418
      %v3564 = vadd.f32 %v3296, %v3422
      %v3565 = vadd.f32 %v3297, %v3418
      %v3566 = vadd.f32 %v3298, %v3422
      %v3567 = vadd.f32 %v3299, %v3418
      %v3568 = vadd.f32 %v3300, %v3422
      %v3569 = vadd.f32 %v3301, %v3418
      %v3570 = vadd.f32 %v3302, %v3422
      %v3571 = vadd.f32 %v3303, %v3418
      %v3572 = vadd.f32 %v3304, %v3422
      %v3573 = vadd.f32 %v3305, %v3418
      %v3574 = vadd.f32 %v3306, %v3422
      %v3575 = vadd.f32 %v3307, %v3418
      %v3576 = vadd.f32 %v3308, %v3422
      %v3577 = vadd.f32 %v3309, %v3418
      %v3578 = vadd.f32 %v3310, %v3422
      %v3579 = vadd.f32 %v3311, %v3418
      %v3580 = vadd.f32 %v3312, %v3422
      %v3581 = vadd.f32 %v3313, %v3418
      %v3582 = vadd.f32 %v3314, %v3422
      %v3583 = vadd.f32 %v3315, %v3418
      %v3584 = vadd.f32 %v3316, %v3422
      %v3585 = vadd.f32 %v3317, %v3418
      %v3586 = vadd.f32 %v3318, %v3422
      %v3587 = vadd.f32 %v3319, %v3418
      %v3588 = vadd.f32 %v3320, %v3422
      %v3589 = vadd.f32 %v3321, %v3418
      %v3590 = vadd.f32 %v3322, %v3422
      %v3591 = vadd.f32 %v3323, %v3418
      %v3592 = vadd.f32 %v3324, %v3422
      %v3593 = vadd.f32 %v3325, %v3418
      %v3594 = vadd.f32 %v3326, %v3422
      %v3595 = vadd.f32 %v3327, %v3418
      %v3596 = vadd.f32 %v3328, %v3422
      %v3597 = vadd.f32 %v3329, %v3418
      %v3598 = vadd.f32 %v3330, %v3422
      %v3599 = vadd.f32 %v3331, %v3418
      %v3600 = vadd.f32 %v3332, %v3422
      %v3601 = vadd.f32 %v3333, %v3418
      %v3602 = vadd.f32 %v3334, %v3422
      %v3603 = vadd.f32 %v3335, %v3418
      %v3604 = vadd.f32 %v3336, %v3422
      %v3605 = vadd.f32 %v3337, %v3418
      %v3606 = vadd.f32 %v3338, %v3422
      %v3607 = vadd.f32 %v3339, %v3418
      %v3608 = vadd.f32 %v3340, %v3422
      %v3609 = vadd.f32 %v3341, %v3418
      %v3610 = vadd.f32 %v3342, %v3422
      %v3611 = vadd.f32 %v3343, %v3418
      %v3612 = vadd.f32 %v3344, %v3422
      %v3613 = vadd.f32 %v3345, %v3418
      %v3614 = vadd.f32 %v3346, %v3422
      %v3615 = vadd.f32 %v3347, %v3418
      %v3616 = vadd.f32 %v3348, %v3422
      %v3617 = vadd.f32 %v3349, %v3418
      %v3618 = vadd.f32 %v3350, %v3422
      %v3619 = vadd.f32 %v3351, %v3418
      %v3620 = vadd.f32 %v3352, %v3422
      %v3621 = vadd.f32 %v3353, %v3418
      %v3622 = vadd.f32 %v3354, %v3422
      %v3623 = vadd.f32 %v3355, %v3418
      %v3624 = vadd.f32 %v3356, %v3422
      %v3625 = vadd.f32 %v3357, %v3418
      %v3626 = vadd.f32 %v3358, %v3422
      %v3627 = vadd.f32 %v3359, %v3418
      %v3628 = vadd.f32 %v3360, %v3422
      %v3629 = vadd.f32 %v3361, %v3418
      %v3630 = vadd.f32 %v3362, %v3422
      %v3631 = vadd.f32 %v3363, %v3418
      %v3632 = vadd.f32 %v3364, %v3422
      %v3633 = vadd.f32 %v3365, %v3418
      %v3634 = vadd.f32 %v3366, %v3422
      %v3635 = vadd.f32 %v3367, %v3418
      %v3636 = vadd.f32 %v3368, %v3422
      %v3637 = vadd.f32 %v3369, %v3418
      %v3638 = vadd.f32 %v3370, %v3422
      %v3639 = vadd.f32 %v3371, %v3418
      %v3640 = vadd.f32 %v3372, %v3422
      %v3641 = vadd.f32 %v3373, %v3418
      %v3642 = vadd.f32 %v3374, %v3422
      %v3643 = vadd.f32 %v3375, %v3418
      %v3644 = vadd.f32 %v3376, %v3422
      %v3645 = vadd.f32 %v3377, %v3418
      %v3646 = vadd.f32 %v3378, %v3422
      %v3647 = vadd.f32 %v3379, %v3418
      %v3648 = vadd.f32 %v3380, %v3422
      %v3649 = vadd.f32 %v3381, %v3418
      %v3650 = vadd.f32 %v3382, %v3422
      %v3651 = vadd.f32 %v3383, %v3418
      %v3652 = vadd.f32 %v3384, %v3422
      %v3653 = vadd.f32 %v3385, %v3418
      %v3654 = vadd.f32 %v3386, %v3422
      %v3655 = vadd.f32 %v3387, %v3418
      %v3656 = vadd.f32 %v3388, %v3422
      %v3657 = vadd.f32 %v3389, %v3418
      %v3658 = vadd.f32 %v3390, %v3422
      %v3659 = vadd.f32 %v3391, %v3418
      %v3660 = vadd.f32 %v3392, %v3422
      %v3661 = vadd.f32 %v3393, %v3418
      %v3662 = vadd.f32 %v3394, %v3422
      %v3663 = vadd.f32 %v3395, %v3418
      %v3664 = vadd.f32 %v3396, %v3422
      %v3665 = vadd.f32 %v3397, %v3418
      %v3666 = vadd.f32 %v3398, %v3422
      %v3667 = vadd.f32 %v3399, %v3418
      %v3668 = vadd.f32 %v3400, %v3422
      %v3669 = vadd.f32 %v3401, %v3418
      %v3670 = vadd.f32 %v3402, %v3422
      %v3671 = vadd.f32 %v3403, %v3418
      %v3672 = vadd.f32 %v3404, %v3422
      %v3673 = vadd.f32 %v3405, %v3418
      %v3674 = vadd.f32 %v3406, %v3422
      %v3675 = vadd.f32 %v3407, %v3418
      %v3676 = vadd.f32 %v3408, %v3422
      %v3677 = vadd.f32 %v3409, %v3418
      %v3678 = vadd.f32 %v3410, %v3422
      %v3679 = vadd.f32 %v3411, %v3418
      %v3680 = vadd.f32 %v3412, %v3422
      %v3681 = vmax.f32 %v3425, 0.0
      %v3682 = vmax.f32 %v3426, 0.0
      %v3683 = vmax.f32 %v3427, 0.0
      %v3684 = vmax.f32 %v3428, 0.0
      %v3685 = vmax.f32 %v3429, 0.0
      %v3686 = vmax.f32 %v3430, 0.0
      %v3687 = vmax.f32 %v3431, 0.0
      %v3688 = vmax.f32 %v3432, 0.0
      %v3689 = vmax.f32 %v3433, 0.0
      %v3690 = vmax.f32 %v3434, 0.0
      %v3691 = vmax.f32 %v3435, 0.0
      %v3692 = vmax.f32 %v3436, 0.0
      %v3693 = vmax.f32 %v3437, 0.0
      %v3694 = vmax.f32 %v3438, 0.0
      %v3695 = vmax.f32 %v3439, 0.0
      %v3696 = vmax.f32 %v3440, 0.0
      %v3697 = vmax.f32 %v3441, 0.0
      %v3698 = vmax.f32 %v3442, 0.0
      %v3699 = vmax.f32 %v3443, 0.0
      %v3700 = vmax.f32 %v3444, 0.0
      %v3701 = vmax.f32 %v3445, 0.0
      %v3702 = vmax.f32 %v3446, 0.0
      %v3703 = vmax.f32 %v3447, 0.0
      %v3704 = vmax.f32 %v3448, 0.0
      %v3705 = vmax.f32 %v3449, 0.0
      %v3706 = vmax.f32 %v3450, 0.0
      %v3707 = vmax.f32 %v3451, 0.0
      %v3708 = vmax.f32 %v3452, 0.0
      %v3709 = vmax.f32 %v3453, 0.0
      %v3710 = vmax.f32 %v3454, 0.0
      %v3711 = vmax.f32 %v3455, 0.0
      %v3712 = vmax.f32 %v3456, 0.0
      %v3713 = vmax.f32 %v3457, 0.0
      %v3714 = vmax.f32 %v3458, 0.0
      %v3715 = vmax.f32 %v3459, 0.0
      %v3716 = vmax.f32 %v3460, 0.0
      %v3717 = vmax.f32 %v3461, 0.0
      %v3718 = vmax.f32 %v3462, 0.0
      %v3719 = vmax.f32 %v3463, 0.0
      %v3720 = vmax.f32 %v3464, 0.0
      %v3721 = vmax.f32 %v3465, 0.0
      %v3722 = vmax.f32 %v3466, 0.0
      %v3723 = vmax.f32 %v3467, 0.0
      %v3724 = vmax.f32 %v3468, 0.0
      %v3725 = vmax.f32 %v3469, 0.0
      %v3726 = vmax.f32 %v3470, 0.0
      %v3727 = vmax.f32 %v3471, 0.0
      %v3728 = vmax.f32 %v3472, 0.0
      %v3729 = vmax.f32 %v3473, 0.0
      %v3730 = vmax.f32 %v3474, 0.0
      %v3731 = vmax.f32 %v3475, 0.0
      %v3732 = vmax.f32 %v3476, 0.0
      %v3733 = vmax.f32 %v3477, 0.0
      %v3734 = vmax.f32 %v3478, 0.0
      %v3735 = vmax.f32 %v3479, 0.0
      %v3736 = vmax.f32 %v3480, 0.0
      %v3737 = vmax.f32 %v3481, 0.0
      %v3738 = vmax.f32 %v3482, 0.0
      %v3739 = vmax.f32 %v3483, 0.0
      %v3740 = vmax.f32 %v3484, 0.0
      %v3741 = vmax.f32 %v3485, 0.0
      %v3742 = vmax.f32 %v3486, 0.0
      %v3743 = vmax.f32 %v3487, 0.0
      %v3744 = vmax.f32 %v3488, 0.0
      %v3745 = vmax.f32 %v3489, 0.0
      %v3746 = vmax.f32 %v3490, 0.0
      %v3747 = vmax.f32 %v3491, 0.0
      %v3748 = vmax.f32 %v3492, 0.0
      %v3749 = vmax.f32 %v3493, 0.0
      %v3750 = vmax.f32 %v3494, 0.0
      %v3751 = vmax.f32 %v3495, 0.0
      %v3752 = vmax.f32 %v3496, 0.0
      %v3753 = vmax.f32 %v3497, 0.0
      %v3754 = vmax.f32 %v3498, 0.0
      %v3755 = vmax.f32 %v3499, 0.0
      %v3756 = vmax.f32 %v3500, 0.0
      %v3757 = vmax.f32 %v3501, 0.0
      %v3758 = vmax.f32 %v3502, 0.0
      %v3759 = vmax.f32 %v3503, 0.0
      %v3760 = vmax.f32 %v3504, 0.0
      %v3761 = vmax.f32 %v3505, 0.0
      %v3762 = vmax.f32 %v3506, 0.0
      %v3763 = vmax.f32 %v3507, 0.0
      %v3764 = vmax.f32 %v3508, 0.0
      %v3765 = vmax.f32 %v3509, 0.0
      %v3766 = vmax.f32 %v3510, 0.0
      %v3767 = vmax.f32 %v3511, 0.0
      %v3768 = vmax.f32 %v3512, 0.0
      %v3769 = vmax.f32 %v3513, 0.0
      %v3770 = vmax.f32 %v3514, 0.0
      %v3771 = vmax.f32 %v3515, 0.0
      %v3772 = vmax.f32 %v3516, 0.0
      %v3773 = vmax.f32 %v3517, 0.0
      %v3774 = vmax.f32 %v3518, 0.0
      %v3775 = vmax.f32 %v3519, 0.0
      %v3776 = vmax.f32 %v3520, 0.0
      %v3777 = vmax.f32 %v3521, 0.0
      %v3778 = vmax.f32 %v3522, 0.0
      %v3779 = vmax.f32 %v3523, 0.0
      %v3780 = vmax.f32 %v3524, 0.0
      %v3781 = vmax.f32 %v3525, 0.0
      %v3782 = vmax.f32 %v3526, 0.0
      %v3783 = vmax.f32 %v3527, 0.0
      %v3784 = vmax.f32 %v3528, 0.0
      %v3785 = vmax.f32 %v3529, 0.0
      %v3786 = vmax.f32 %v3530, 0.0
      %v3787 = vmax.f32 %v3531, 0.0
      %v3788 = vmax.f32 %v3532, 0.0
      %v3789 = vmax.f32 %v3533, 0.0
      %v3790 = vmax.f32 %v3534, 0.0
      %v3791 = vmax.f32 %v3535, 0.0
      %v3792 = vmax.f32 %v3536, 0.0
      %v3793 = vmax.f32 %v3537, 0.0
      %v3794 = vmax.f32 %v3538, 0.0
      %v3795 = vmax.f32 %v3539, 0.0
      %v3796 = vmax.f32 %v3540, 0.0
      %v3797 = vmax.f32 %v3541, 0.0
      %v3798 = vmax.f32 %v3542, 0.0
      %v3799 = vmax.f32 %v3543, 0.0
      %v3800 = vmax.f32 %v3544, 0.0
      %v3801 = vmax.f32 %v3545, 0.0
      %v3802 = vmax.f32 %v3546, 0.0
      %v3803 = vmax.f32 %v3547, 0.0
      %v3804 = vmax.f32 %v3548, 0.0
      %v3805 = vmax.f32 %v3549, 0.0
      %v3806 = vmax.f32 %v3550, 0.0
      %v3807 = vmax.f32 %v3551, 0.0
      %v3808 = vmax.f32 %v3552, 0.0
      %v3809 = vmax.f32 %v3553, 0.0
      %v3810 = vmax.f32 %v3554, 0.0
      %v3811 = vmax.f32 %v3555, 0.0
      %v3812 = vmax.f32 %v3556, 0.0
      %v3813 = vmax.f32 %v3557, 0.0
      %v3814 = vmax.f32 %v3558, 0.0
      %v3815 = vmax.f32 %v3559, 0.0
      %v3816 = vmax.f32 %v3560, 0.0
      %v3817 = vmax.f32 %v3561, 0.0
      %v3818 = vmax.f32 %v3562, 0.0
      %v3819 = vmax.f32 %v3563, 0.0
      %v3820 = vmax.f32 %v3564, 0.0
      %v3821 = vmax.f32 %v3565, 0.0
      %v3822 = vmax.f32 %v3566, 0.0
      %v3823 = vmax.f32 %v3567, 0.0
      %v3824 = vmax.f32 %v3568, 0.0
      %v3825 = vmax.f32 %v3569, 0.0
      %v3826 = vmax.f32 %v3570, 0.0
      %v3827 = vmax.f32 %v3571, 0.0
      %v3828 = vmax.f32 %v3572, 0.0
      %v3829 = vmax.f32 %v3573, 0.0
      %v3830 = vmax.f32 %v3574, 0.0
      %v3831 = vmax.f32 %v3575, 0.0
      %v3832 = vmax.f32 %v3576, 0.0
      %v3833 = vmax.f32 %v3577, 0.0
      %v3834 = vmax.f32 %v3578, 0.0
      %v3835 = vmax.f32 %v3579, 0.0
      %v3836 = vmax.f32 %v3580, 0.0
      %v3837 = vmax.f32 %v3581, 0.0
      %v3838 = vmax.f32 %v3582, 0.0
      %v3839 = vmax.f32 %v3583, 0.0
      %v3840 = vmax.f32 %v3584, 0.0
      %v3841 = vmax.f32 %v3585, 0.0
      %v3842 = vmax.f32 %v3586, 0.0
      %v3843 = vmax.f32 %v3587, 0.0
      %v3844 = vmax.f32 %v3588, 0.0
      %v3845 = vmax.f32 %v3589, 0.0
      %v3846 = vmax.f32 %v3590, 0.0
      %v3847 = vmax.f32 %v3591, 0.0
      %v3848 = vmax.f32 %v3592, 0.0
      %v3849 = vmax.f32 %v3593, 0.0
      %v3850 = vmax.f32 %v3594, 0.0
      %v3851 = vmax.f32 %v3595, 0.0
      %v3852 = vmax.f32 %v3596, 0.0
      %v3853 = vmax.f32 %v3597, 0.0
      %v3854 = vmax.f32 %v3598, 0.0
      %v3855 = vmax.f32 %v3599, 0.0
      %v3856 = vmax.f32 %v3600, 0.0
      %v3857 = vmax.f32 %v3601, 0.0
      %v3858 = vmax.f32 %v3602, 0.0
      %v3859 = vmax.f32 %v3603, 0.0
      %v3860 = vmax.f32 %v3604, 0.0
      %v3861 = vmax.f32 %v3605, 0.0
      %v3862 = vmax.f32 %v3606, 0.0
      %v3863 = vmax.f32 %v3607, 0.0
      %v3864 = vmax.f32 %v3608, 0.0
      %v3865 = vmax.f32 %v3609, 0.0
      %v3866 = vmax.f32 %v3610, 0.0
      %v3867 = vmax.f32 %v3611, 0.0
      %v3868 = vmax.f32 %v3612, 0.0
      %v3869 = vmax.f32 %v3613, 0.0
      %v3870 = vmax.f32 %v3614, 0.0
      %v3871 = vmax.f32 %v3615, 0.0
      %v3872 = vmax.f32 %v3616, 0.0
      %v3873 = vmax.f32 %v3617, 0.0
      %v3874 = vmax.f32 %v3618, 0.0
      %v3875 = vmax.f32 %v3619, 0.0
      %v3876 = vmax.f32 %v3620, 0.0
      %v3877 = vmax.f32 %v3621, 0.0
      %v3878 = vmax.f32 %v3622, 0.0
      %v3879 = vmax.f32 %v3623, 0.0
      %v3880 = vmax.f32 %v3624, 0.0
      %v3881 = vmax.f32 %v3625, 0.0
      %v3882 = vmax.f32 %v3626, 0.0
      %v3883 = vmax.f32 %v3627, 0.0
      %v3884 = vmax.f32 %v3628, 0.0
      %v3885 = vmax.f32 %v3629, 0.0
      %v3886 = vmax.f32 %v3630, 0.0
      %v3887 = vmax.f32 %v3631, 0.0
      %v3888 = vmax.f32 %v3632, 0.0
      %v3889 = vmax.f32 %v3633, 0.0
      %v3890 = vmax.f32 %v3634, 0.0
      %v3891 = vmax.f32 %v3635, 0.0
      %v3892 = vmax.f32 %v3636, 0.0
      %v3893 = vmax.f32 %v3637, 0.0
      %v3894 = vmax.f32 %v3638, 0.0
      %v3895 = vmax.f32 %v3639, 0.0
      %v3896 = vmax.f32 %v3640, 0.0
      %v3897 = vmax.f32 %v3641, 0.0
      %v3898 = vmax.f32 %v3642, 0.0
      %v3899 = vmax.f32 %v3643, 0.0
      %v3900 = vmax.f32 %v3644, 0.0
      %v3901 = vmax.f32 %v3645, 0.0
      %v3902 = vmax.f32 %v3646, 0.0
      %v3903 = vmax.f32 %v3647, 0.0
      %v3904 = vmax.f32 %v3648, 0.0
      %v3905 = vmax.f32 %v3649, 0.0
      %v3906 = vmax.f32 %v3650, 0.0
      %v3907 = vmax.f32 %v3651, 0.0
      %v3908 = vmax.f32 %v3652, 0.0
      %v3909 = vmax.f32 %v3653, 0.0
      %v3910 = vmax.f32 %v3654, 0.0
      %v3911 = vmax.f32 %v3655, 0.0
      %v3912 = vmax.f32 %v3656, 0.0
      %v3913 = vmax.f32 %v3657, 0.0
      %v3914 = vmax.f32 %v3658, 0.0
      %v3915 = vmax.f32 %v3659, 0.0
      %v3916 = vmax.f32 %v3660, 0.0
      %v3917 = vmax.f32 %v3661, 0.0
      %v3918 = vmax.f32 %v3662, 0.0
      %v3919 = vmax.f32 %v3663, 0.0
      %v3920 = vmax.f32 %v3664, 0.0
      %v3921 = vmax.f32 %v3665, 0.0
      %v3922 = vmax.f32 %v3666, 0.0
      %v3923 = vmax.f32 %v3667, 0.0
      %v3924 = vmax.f32 %v3668, 0.0
      %v3925 = vmax.f32 %v3669, 0.0
      %v3926 = vmax.f32 %v3670, 0.0
      %v3927 = vmax.f32 %v3671, 0.0
      %v3928 = vmax.f32 %v3672, 0.0
      %v3929 = vmax.f32 %v3673, 0.0
      %v3930 = vmax.f32 %v3674, 0.0
      %v3931 = vmax.f32 %v3675, 0.0
      %v3932 = vmax.f32 %v3676, 0.0
      %v3933 = vmax.f32 %v3677, 0.0
      %v3934 = vmax.f32 %v3678, 0.0
      %v3935 = vmax.f32 %v3679, 0.0
      %v3936 = vmax.f32 %v3680, 0.0
      %v3937 = vpack.c.bf16 %v3683, %v3681
      %v3938 = vpack.c.bf16 %v3684, %v3682
      %v3939 = vpack.c.bf16 %v3687, %v3685
      %v3940 = vpack.c.bf16 %v3688, %v3686
      %v3941 = vpack.c.bf16 %v3691, %v3689
      %v3942 = vpack.c.bf16 %v3692, %v3690
      %v3943 = vpack.c.bf16 %v3695, %v3693
      %v3944 = vpack.c.bf16 %v3696, %v3694
      %v3945 = vpack.c.bf16 %v3699, %v3697
      %v3946 = vpack.c.bf16 %v3700, %v3698
      %v3947 = vpack.c.bf16 %v3703, %v3701
      %v3948 = vpack.c.bf16 %v3704, %v3702
      %v3949 = vpack.c.bf16 %v3707, %v3705
      %v3950 = vpack.c.bf16 %v3708, %v3706
      %v3951 = vpack.c.bf16 %v3711, %v3709
      %v3952 = vpack.c.bf16 %v3712, %v3710
      %v3953 = vpack.c.bf16 %v3715, %v3713
      %v3954 = vpack.c.bf16 %v3716, %v3714
      %v3955 = vpack.c.bf16 %v3719, %v3717
      %v3956 = vpack.c.bf16 %v3720, %v3718
      %v3957 = vpack.c.bf16 %v3723, %v3721
      %v3958 = vpack.c.bf16 %v3724, %v3722
      %v3959 = vpack.c.bf16 %v3727, %v3725
      %v3960 = vpack.c.bf16 %v3728, %v3726
      %v3961 = vpack.c.bf16 %v3731, %v3729
      %v3962 = vpack.c.bf16 %v3732, %v3730
      %v3963 = vpack.c.bf16 %v3735, %v3733
      %v3964 = vpack.c.bf16 %v3736, %v3734
      %v3965 = vpack.c.bf16 %v3739, %v3737
      %v3966 = vpack.c.bf16 %v3740, %v3738
      %v3967 = vpack.c.bf16 %v3743, %v3741
      %v3968 = vpack.c.bf16 %v3744, %v3742
      %v3969 = vpack.c.bf16 %v3747, %v3745
      %v3970 = vpack.c.bf16 %v3748, %v3746
      %v3971 = vpack.c.bf16 %v3751, %v3749
      %v3972 = vpack.c.bf16 %v3752, %v3750
      %v3973 = vpack.c.bf16 %v3755, %v3753
      %v3974 = vpack.c.bf16 %v3756, %v3754
      %v3975 = vpack.c.bf16 %v3759, %v3757
      %v3976 = vpack.c.bf16 %v3760, %v3758
      %v3977 = vpack.c.bf16 %v3763, %v3761
      %v3978 = vpack.c.bf16 %v3764, %v3762
      %v3979 = vpack.c.bf16 %v3767, %v3765
      %v3980 = vpack.c.bf16 %v3768, %v3766
      %v3981 = vpack.c.bf16 %v3771, %v3769
      %v3982 = vpack.c.bf16 %v3772, %v3770
      %v3983 = vpack.c.bf16 %v3775, %v3773
      %v3984 = vpack.c.bf16 %v3776, %v3774
      %v3985 = vpack.c.bf16 %v3779, %v3777
      %v3986 = vpack.c.bf16 %v3780, %v3778
      %v3987 = vpack.c.bf16 %v3783, %v3781
      %v3988 = vpack.c.bf16 %v3784, %v3782
      %v3989 = vpack.c.bf16 %v3787, %v3785
      %v3990 = vpack.c.bf16 %v3788, %v3786
      %v3991 = vpack.c.bf16 %v3791, %v3789
      %v3992 = vpack.c.bf16 %v3792, %v3790
      %v3993 = vpack.c.bf16 %v3795, %v3793
      %v3994 = vpack.c.bf16 %v3796, %v3794
      %v3995 = vpack.c.bf16 %v3799, %v3797
      %v3996 = vpack.c.bf16 %v3800, %v3798
      %v3997 = vpack.c.bf16 %v3803, %v3801
      %v3998 = vpack.c.bf16 %v3804, %v3802
      %v3999 = vpack.c.bf16 %v3807, %v3805
      %v4000 = vpack.c.bf16 %v3808, %v3806
      %v4001 = vpack.c.bf16 %v3811, %v3809
      %v4002 = vpack.c.bf16 %v3812, %v3810
      %v4003 = vpack.c.bf16 %v3815, %v3813
      %v4004 = vpack.c.bf16 %v3816, %v3814
      %v4005 = vpack.c.bf16 %v3819, %v3817
      %v4006 = vpack.c.bf16 %v3820, %v3818
      %v4007 = vpack.c.bf16 %v3823, %v3821
      %v4008 = vpack.c.bf16 %v3824, %v3822
      %v4009 = vpack.c.bf16 %v3827, %v3825
      %v4010 = vpack.c.bf16 %v3828, %v3826
      %v4011 = vpack.c.bf16 %v3831, %v3829
      %v4012 = vpack.c.bf16 %v3832, %v3830
      %v4013 = vpack.c.bf16 %v3835, %v3833
      %v4014 = vpack.c.bf16 %v3836, %v3834
      %v4015 = vpack.c.bf16 %v3839, %v3837
      %v4016 = vpack.c.bf16 %v3840, %v3838
      %v4017 = vpack.c.bf16 %v3843, %v3841
      %v4018 = vpack.c.bf16 %v3844, %v3842
      %v4019 = vpack.c.bf16 %v3847, %v3845
      %v4020 = vpack.c.bf16 %v3848, %v3846
      %v4021 = vpack.c.bf16 %v3851, %v3849
      %v4022 = vpack.c.bf16 %v3852, %v3850
      %v4023 = vpack.c.bf16 %v3855, %v3853
      %v4024 = vpack.c.bf16 %v3856, %v3854
      %v4025 = vpack.c.bf16 %v3859, %v3857
      %v4026 = vpack.c.bf16 %v3860, %v3858
      %v4027 = vpack.c.bf16 %v3863, %v3861
      %v4028 = vpack.c.bf16 %v3864, %v3862
      %v4029 = vpack.c.bf16 %v3867, %v3865
      %v4030 = vpack.c.bf16 %v3868, %v3866
      %v4031 = vpack.c.bf16 %v3871, %v3869
      %v4032 = vpack.c.bf16 %v3872, %v3870
      %v4033 = vpack.c.bf16 %v3875, %v3873
      %v4034 = vpack.c.bf16 %v3876, %v3874
      %v4035 = vpack.c.bf16 %v3879, %v3877
      %v4036 = vpack.c.bf16 %v3880, %v3878
      %v4037 = vpack.c.bf16 %v3883, %v3881
      %v4038 = vpack.c.bf16 %v3884, %v3882
      %v4039 = vpack.c.bf16 %v3887, %v3885
      %v4040 = vpack.c.bf16 %v3888, %v3886
      %v4041 = vpack.c.bf16 %v3891, %v3889
      %v4042 = vpack.c.bf16 %v3892, %v3890
      %v4043 = vpack.c.bf16 %v3895, %v3893
      %v4044 = vpack.c.bf16 %v3896, %v3894
      %v4045 = vpack.c.bf16 %v3899, %v3897
      %v4046 = vpack.c.bf16 %v3900, %v3898
      %v4047 = vpack.c.bf16 %v3903, %v3901
      %v4048 = vpack.c.bf16 %v3904, %v3902
      %v4049 = vpack.c.bf16 %v3907, %v3905
      %v4050 = vpack.c.bf16 %v3908, %v3906
      %v4051 = vpack.c.bf16 %v3911, %v3909
      %v4052 = vpack.c.bf16 %v3912, %v3910
      %v4053 = vpack.c.bf16 %v3915, %v3913
      %v4054 = vpack.c.bf16 %v3916, %v3914
      %v4055 = vpack.c.bf16 %v3919, %v3917
      %v4056 = vpack.c.bf16 %v3920, %v3918
      %v4057 = vpack.c.bf16 %v3923, %v3921
      %v4058 = vpack.c.bf16 %v3924, %v3922
      %v4059 = vpack.c.bf16 %v3927, %v3925
      %v4060 = vpack.c.bf16 %v3928, %v3926
      %v4061 = vpack.c.bf16 %v3931, %v3929
      %v4062 = vpack.c.bf16 %v3932, %v3930
      %v4063 = vpack.c.bf16 %v3935, %v3933
      %v4064 = vpack.c.bf16 %v3936, %v3934
      %v4065 = vld [vmem:[%s3] sm:$0xff]
      %v4066 = vld [vmem:[%s3 + $0x8] sm:$0xff]
      %v4067 = vld [vmem:[%s3 + $0x10] sm:$0xff]
      %v4068 = vld [vmem:[%s3 + $0x18] sm:$0xff]
      %v4069 = vld [vmem:[%s3 + $0x20] sm:$0xff]
      %v4070 = vld [vmem:[%s3 + $0x28] sm:$0xff]
      %v4071 = vld [vmem:[%s3 + $0x30] sm:$0xff]
      %v4072 = vld [vmem:[%s3 + $0x38] sm:$0xff]
      %v4073 = vld [vmem:[%s3 + $0x40] sm:$0xff]
      %v4074 = vld [vmem:[%s3 + $0x48] sm:$0xff]
      %v4075 = vld [vmem:[%s3 + $0x50] sm:$0xff]
      %v4076 = vld [vmem:[%s3 + $0x58] sm:$0xff]
      %v4077 = vld [vmem:[%s3 + $0x60] sm:$0xff]
      %v4078 = vld [vmem:[%s3 + $0x68] sm:$0xff]
      %v4079 = vld [vmem:[%s3 + $0x70] sm:$0xff]
      %v4080 = vld [vmem:[%s3 + $0x78] sm:$0xff]
      %v4081 = vld [vmem:[%s3 + $0x80] sm:$0xff]
      %v4082 = vld [vmem:[%s3 + $0x88] sm:$0xff]
      %v4083 = vld [vmem:[%s3 + $0x90] sm:$0xff]
      %v4084 = vld [vmem:[%s3 + $0x98] sm:$0xff]
      %v4085 = vld [vmem:[%s3 + $0xa0] sm:$0xff]
      %v4086 = vld [vmem:[%s3 + $0xa8] sm:$0xff]
      %v4087 = vld [vmem:[%s3 + $0xb0] sm:$0xff]
      %v4088 = vld [vmem:[%s3 + $0xb8] sm:$0xff]
      %v4089 = vld [vmem:[%s3 + $0xc0] sm:$0xff]
      %v4090 = vld [vmem:[%s3 + $0xc8] sm:$0xff]
      %v4091 = vld [vmem:[%s3 + $0xd0] sm:$0xff]
      %v4092 = vld [vmem:[%s3 + $0xd8] sm:$0xff]
      %v4093 = vld [vmem:[%s3 + $0xe0] sm:$0xff]
      %v4094 = vld [vmem:[%s3 + $0xe8] sm:$0xff]
      %v4095 = vld [vmem:[%s3 + $0xf0] sm:$0xff]
      %v4096 = vld [vmem:[%s3 + $0xf8] sm:$0xff]
      %v4097 = vld [vmem:[%s4] sm:$0x3]
      %v4099 = vlaneseq
      %v4100 = vshrl.u32 %v4099, 7
      %v4101 = vsub.s32 0, %v4100
      %v4102 = vrot.slane %v4097, %v4101
      %v4103 = vlaneseq
      %v4104 = vshrl.u32 %v4103, 7
      %v4105 = vsub.s32 1, %v4104
      %v4106 = vrot.slane %v4097, %v4105
      %v4141 = vunpack.c.l.b16 %v4065
      %v4142 = vunpack.c.h.b16 %v4065
      %v4143 = vunpack.c.l.b16 %v4066
      %v4144 = vunpack.c.h.b16 %v4066
      %v4145 = vunpack.c.l.b16 %v4067
      %v4146 = vunpack.c.h.b16 %v4067
      %v4147 = vunpack.c.l.b16 %v4068
      %v4148 = vunpack.c.h.b16 %v4068
      %v4149 = vunpack.c.l.b16 %v4069
      %v4150 = vunpack.c.h.b16 %v4069
      %v4151 = vunpack.c.l.b16 %v4070
      %v4152 = vunpack.c.h.b16 %v4070
      %v4153 = vunpack.c.l.b16 %v4071
      %v4154 = vunpack.c.h.b16 %v4071
      %v4155 = vunpack.c.l.b16 %v4072
      %v4156 = vunpack.c.h.b16 %v4072
      %v4157 = vunpack.c.l.b16 %v4073
      %v4158 = vunpack.c.h.b16 %v4073
      %v4159 = vunpack.c.l.b16 %v4074
      %v4160 = vunpack.c.h.b16 %v4074
      %v4161 = vunpack.c.l.b16 %v4075
      %v4162 = vunpack.c.h.b16 %v4075
      %v4163 = vunpack.c.l.b16 %v4076
      %v4164 = vunpack.c.h.b16 %v4076
      %v4165 = vunpack.c.l.b16 %v4077
      %v4166 = vunpack.c.h.b16 %v4077
      %v4167 = vunpack.c.l.b16 %v4078
      %v4168 = vunpack.c.h.b16 %v4078
      %v4169 = vunpack.c.l.b16 %v4079
      %v4170 = vunpack.c.h.b16 %v4079
      %v4171 = vunpack.c.l.b16 %v4080
      %v4172 = vunpack.c.h.b16 %v4080
      %v4173 = vunpack.c.l.b16 %v4081
      %v4174 = vunpack.c.h.b16 %v4081
      %v4175 = vunpack.c.l.b16 %v4082
      %v4176 = vunpack.c.h.b16 %v4082
      %v4177 = vunpack.c.l.b16 %v4083
      %v4178 = vunpack.c.h.b16 %v4083
      %v4179 = vunpack.c.l.b16 %v4084
      %v4180 = vunpack.c.h.b16 %v4084
      %v4181 = vunpack.c.l.b16 %v4085
      %v4182 = vunpack.c.h.b16 %v4085
      %v4183 = vunpack.c.l.b16 %v4086
      %v4184 = vunpack.c.h.b16 %v4086
      %v4185 = vunpack.c.l.b16 %v4087
      %v4186 = vunpack.c.h.b16 %v4087
      %v4187 = vunpack.c.l.b16 %v4088
      %v4188 = vunpack.c.h.b16 %v4088
      %v4189 = vunpack.c.l.b16 %v4089
      %v4190 = vunpack.c.h.b16 %v4089
      %v4191 = vunpack.c.l.b16 %v4090
      %v4192 = vunpack.c.h.b16 %v4090
      %v4193 = vunpack.c.l.b16 %v4091
      %v4194 = vunpack.c.h.b16 %v4091
      %v4195 = vunpack.c.l.b16 %v4092
      %v4196 = vunpack.c.h.b16 %v4092
      %v4197 = vunpack.c.l.b16 %v4093
      %v4198 = vunpack.c.h.b16 %v4093
      %v4199 = vunpack.c.l.b16 %v4094
      %v4200 = vunpack.c.h.b16 %v4094
      %v4201 = vunpack.c.l.b16 %v4095
      %v4202 = vunpack.c.h.b16 %v4095
      %v4203 = vunpack.c.l.b16 %v4096
      %v4204 = vunpack.c.h.b16 %v4096
      %v4205 = vpack.c.b16 %v4143, %v4141
      %v4206 = vpack.c.b16 %v4144, %v4142
      %v4207 = vpack.c.b16 %v4147, %v4145
      %v4208 = vpack.c.b16 %v4148, %v4146
      %v4209 = vpack.c.b16 %v4151, %v4149
      %v4210 = vpack.c.b16 %v4152, %v4150
      %v4211 = vpack.c.b16 %v4155, %v4153
      %v4212 = vpack.c.b16 %v4156, %v4154
      %v4213 = vpack.c.b16 %v4159, %v4157
      %v4214 = vpack.c.b16 %v4160, %v4158
      %v4215 = vpack.c.b16 %v4163, %v4161
      %v4216 = vpack.c.b16 %v4164, %v4162
      %v4217 = vpack.c.b16 %v4167, %v4165
      %v4218 = vpack.c.b16 %v4168, %v4166
      %v4219 = vpack.c.b16 %v4171, %v4169
      %v4220 = vpack.c.b16 %v4172, %v4170
      %v4221 = vpack.c.b16 %v4175, %v4173
      %v4222 = vpack.c.b16 %v4176, %v4174
      %v4223 = vpack.c.b16 %v4179, %v4177
      %v4224 = vpack.c.b16 %v4180, %v4178
      %v4225 = vpack.c.b16 %v4183, %v4181
      %v4226 = vpack.c.b16 %v4184, %v4182
      %v4227 = vpack.c.b16 %v4187, %v4185
      %v4228 = vpack.c.b16 %v4188, %v4186
      %v4229 = vpack.c.b16 %v4191, %v4189
      %v4230 = vpack.c.b16 %v4192, %v4190
      %v4231 = vpack.c.b16 %v4195, %v4193
      %v4232 = vpack.c.b16 %v4196, %v4194
      %v4233 = vpack.c.b16 %v4199, %v4197
      %v4234 = vpack.c.b16 %v4200, %v4198
      %v4235 = vpack.c.b16 %v4203, %v4201
      %v4236 = vpack.c.b16 %v4204, %v4202
      %4269 = vmatprep.subr.bf16.mxu0 %v4220
      %4270 = vmatpush1.bf16.msra.mxu0 %v4219
      %4271 = vmatprep.subr.bf16.mxu0 %v4218
      %4272 = vmatpush1.bf16.msra.mxu0 %v4217
      %4273 = vmatprep.subr.bf16.mxu0 %v4216
      %4274 = vmatpush1.bf16.msra.mxu0 %v4215
      %4275 = vmatprep.subr.bf16.mxu0 %v4214
      %4276 = vmatpush1.bf16.msra.mxu0 %v4213
      %4277 = vmatprep.subr.bf16.mxu0 %v4212
      %4278 = vmatpush1.bf16.msra.mxu0 %v4211
      %4279 = vmatprep.subr.bf16.mxu0 %v4210
      %4280 = vmatpush1.bf16.msra.mxu0 %v4209
      %4281 = vmatprep.subr.bf16.mxu0 %v4208
      %4282 = vmatpush1.bf16.msra.mxu0 %v4207
      %4283 = vmatprep.subr.bf16.mxu0 %v4206
      %4284 = vmatpush1.bf16.msra.mxu0 %v4205
      %4285 = vmatprep.subr.bf16.mxu0 %v4236
      %4286 = vmatpush2.bf16.msra.mxu0 %v4235
      %4287 = vmatprep.subr.bf16.mxu0 %v4234
      %4288 = vmatpush2.bf16.msra.mxu0 %v4233
      %4289 = vmatprep.subr.bf16.mxu0 %v4232
      %4290 = vmatpush2.bf16.msra.mxu0 %v4231
      %4291 = vmatprep.subr.bf16.mxu0 %v4230
      %4292 = vmatpush2.bf16.msra.mxu0 %v4229
      %4293 = vmatprep.subr.bf16.mxu0 %v4228
      %4294 = vmatpush2.bf16.msra.mxu0 %v4227
      %4295 = vmatprep.subr.bf16.mxu0 %v4226
      %4296 = vmatpush2.bf16.msra.mxu0 %v4225
      %4297 = vmatprep.subr.bf16.mxu0 %v4224
      %4298 = vmatpush2.bf16.msra.mxu0 %v4223
      %4299 = vmatprep.subr.bf16.mxu0 %v4222
      %4300 = vmatpush2.bf16.msra.mxu0 %v4221
      %4301 = vmatprep.mubr.bf16.mxu0 %v3938
      %4302 = vmatmul.mubr.bf16.gmra.mxu0 %v3937
      %v4303 = vpop.f32.mrf.mxu0
      %v4304 = vadd.f32 %v4102, %v4303
      %v4305 = vpop.f32.mrf.mxu0
      %v4306 = vadd.f32 %v4106, %v4305
      %v4307 = vpop.f32.mrf.mxu0
      %v4308 = vadd.f32 %v4102, %v4307
      %v4309 = vpop.f32.mrf.mxu0
      %v4310 = vadd.f32 %v4106, %v4309
      %4311 = vmatprep.mubr.bf16.mxu0 %v3940
      %4312 = vmatmul.mubr.bf16.gmra.mxu0 %v3939
      %v4313 = vpop.f32.mrf.mxu0
      %v4314 = vadd.f32 %v4102, %v4313
      %v4315 = vpop.f32.mrf.mxu0
      %v4316 = vadd.f32 %v4106, %v4315
      %v4317 = vpop.f32.mrf.mxu0
      %v4318 = vadd.f32 %v4102, %v4317
      %v4319 = vpop.f32.mrf.mxu0
      %v4320 = vadd.f32 %v4106, %v4319
      %4321 = vmatprep.mubr.bf16.mxu0 %v3942
      %4322 = vmatmul.mubr.bf16.gmra.mxu0 %v3941
      %v4323 = vpop.f32.mrf.mxu0
      %v4324 = vadd.f32 %v4102, %v4323
      %v4325 = vpop.f32.mrf.mxu0
      %v4326 = vadd.f32 %v4106, %v4325
      %v4327 = vpop.f32.mrf.mxu0
      %v4328 = vadd.f32 %v4102, %v4327
      %v4329 = vpop.f32.mrf.mxu0
      %v4330 = vadd.f32 %v4106, %v4329
      %4331 = vmatprep.mubr.bf16.mxu0 %v3944
      %4332 = vmatmul.mubr.bf16.gmra.mxu0 %v3943
      %v4333 = vpop.f32.mrf.mxu0
      %v4334 = vadd.f32 %v4102, %v4333
      %v4335 = vpop.f32.mrf.mxu0
      %v4336 = vadd.f32 %v4106, %v4335
      %v4337 = vpop.f32.mrf.mxu0
      %v4338 = vadd.f32 %v4102, %v4337
      %v4339 = vpop.f32.mrf.mxu0
      %v4340 = vadd.f32 %v4106, %v4339
      %4341 = vmatprep.mubr.bf16.mxu0 %v3946
      %4342 = vmatmul.mubr.bf16.gmra.mxu0 %v3945
      %v4343 = vpop.f32.mrf.mxu0
      %v4344 = vadd.f32 %v4102, %v4343
      %v4345 = vpop.f32.mrf.mxu0
      %v4346 = vadd.f32 %v4106, %v4345
      %v4347 = vpop.f32.mrf.mxu0
      %v4348 = vadd.f32 %v4102, %v4347
      %v4349 = vpop.f32.mrf.mxu0
      %v4350 = vadd.f32 %v4106, %v4349
      %4351 = vmatprep.mubr.bf16.mxu0 %v3948
      %4352 = vmatmul.mubr.bf16.gmra.mxu0 %v3947
      %v4353 = vpop.f32.mrf.mxu0
      %v4354 = vadd.f32 %v4102, %v4353
      %v4355 = vpop.f32.mrf.mxu0
      %v4356 = vadd.f32 %v4106, %v4355
      %v4357 = vpop.f32.mrf.mxu0
      %v4358 = vadd.f32 %v4102, %v4357
      %v4359 = vpop.f32.mrf.mxu0
      %v4360 = vadd.f32 %v4106, %v4359
      %4361 = vmatprep.mubr.bf16.mxu0 %v3950
      %4362 = vmatmul.mubr.bf16.gmra.mxu0 %v3949
      %v4363 = vpop.f32.mrf.mxu0
      %v4364 = vadd.f32 %v4102, %v4363
      %v4365 = vpop.f32.mrf.mxu0
      %v4366 = vadd.f32 %v4106, %v4365
      %v4367 = vpop.f32.mrf.mxu0
      %v4368 = vadd.f32 %v4102, %v4367
      %v4369 = vpop.f32.mrf.mxu0
      %v4370 = vadd.f32 %v4106, %v4369
      %4371 = vmatprep.mubr.bf16.mxu0 %v3952
      %4372 = vmatmul.mubr.bf16.gmra.mxu0 %v3951
      %v4373 = vpop.f32.mrf.mxu0
      %v4374 = vadd.f32 %v4102, %v4373
      %v4375 = vpop.f32.mrf.mxu0
      %v4376 = vadd.f32 %v4106, %v4375
      %v4377 = vpop.f32.mrf.mxu0
      %v4378 = vadd.f32 %v4102, %v4377
      %v4379 = vpop.f32.mrf.mxu0
      %v4380 = vadd.f32 %v4106, %v4379
      %4381 = vmatprep.mubr.bf16.mxu0 %v3954
      %4382 = vmatmul.mubr.bf16.gmra.mxu0 %v3953
      %v4383 = vpop.f32.mrf.mxu0
      %v4384 = vadd.f32 %v4102, %v4383
      %v4385 = vpop.f32.mrf.mxu0
      %v4386 = vadd.f32 %v4106, %v4385
      %v4387 = vpop.f32.mrf.mxu0
      %v4388 = vadd.f32 %v4102, %v4387
      %v4389 = vpop.f32.mrf.mxu0
      %v4390 = vadd.f32 %v4106, %v4389
      %4391 = vmatprep.mubr.bf16.mxu0 %v3956
      %4392 = vmatmul.mubr.bf16.gmra.mxu0 %v3955
      %v4393 = vpop.f32.mrf.mxu0
      %v4394 = vadd.f32 %v4102, %v4393
      %v4395 = vpop.f32.mrf.mxu0
      %v4396 = vadd.f32 %v4106, %v4395
      %v4397 = vpop.f32.mrf.mxu0
      %v4398 = vadd.f32 %v4102, %v4397
      %v4399 = vpop.f32.mrf.mxu0
      %v4400 = vadd.f32 %v4106, %v4399
      %4401 = vmatprep.mubr.bf16.mxu0 %v3958
      %4402 = vmatmul.mubr.bf16.gmra.mxu0 %v3957
      %v4403 = vpop.f32.mrf.mxu0
      %v4404 = vadd.f32 %v4102, %v4403
      %v4405 = vpop.f32.mrf.mxu0
      %v4406 = vadd.f32 %v4106, %v4405
      %v4407 = vpop.f32.mrf.mxu0
      %v4408 = vadd.f32 %v4102, %v4407
      %v4409 = vpop.f32.mrf.mxu0
      %v4410 = vadd.f32 %v4106, %v4409
      %4411 = vmatprep.mubr.bf16.mxu0 %v3960
      %4412 = vmatmul.mubr.bf16.gmra.mxu0 %v3959
      %v4413 = vpop.f32.mrf.mxu0
      %v4414 = vadd.f32 %v4102, %v4413
      %v4415 = vpop.f32.mrf.mxu0
      %v4416 = vadd.f32 %v4106, %v4415
      %v4417 = vpop.f32.mrf.mxu0
      %v4418 = vadd.f32 %v4102, %v4417
      %v4419 = vpop.f32.mrf.mxu0
      %v4420 = vadd.f32 %v4106, %v4419
      %4421 = vmatprep.mubr.bf16.mxu0 %v3962
      %4422 = vmatmul.mubr.bf16.gmra.mxu0 %v3961
      %v4423 = vpop.f32.mrf.mxu0
      %v4424 = vadd.f32 %v4102, %v4423
      %v4425 = vpop.f32.mrf.mxu0
      %v4426 = vadd.f32 %v4106, %v4425
      %v4427 = vpop.f32.mrf.mxu0
      %v4428 = vadd.f32 %v4102, %v4427
      %v4429 = vpop.f32.mrf.mxu0
      %v4430 = vadd.f32 %v4106, %v4429
      %4431 = vmatprep.mubr.bf16.mxu0 %v3964
      %4432 = vmatmul.mubr.bf16.gmra.mxu0 %v3963
      %v4433 = vpop.f32.mrf.mxu0
      %v4434 = vadd.f32 %v4102, %v4433
      %v4435 = vpop.f32.mrf.mxu0
      %v4436 = vadd.f32 %v4106, %v4435
      %v4437 = vpop.f32.mrf.mxu0
      %v4438 = vadd.f32 %v4102, %v4437
      %v4439 = vpop.f32.mrf.mxu0
      %v4440 = vadd.f32 %v4106, %v4439
      %4441 = vmatprep.mubr.bf16.mxu0 %v3966
      %4442 = vmatmul.mubr.bf16.gmra.mxu0 %v3965
      %v4443 = vpop.f32.mrf.mxu0
      %v4444 = vadd.f32 %v4102, %v4443
      %v4445 = vpop.f32.mrf.mxu0
      %v4446 = vadd.f32 %v4106, %v4445
      %v4447 = vpop.f32.mrf.mxu0
      %v4448 = vadd.f32 %v4102, %v4447
      %v4449 = vpop.f32.mrf.mxu0
      %v4450 = vadd.f32 %v4106, %v4449
      %4451 = vmatprep.mubr.bf16.mxu0 %v3968
      %4452 = vmatmul.mubr.bf16.gmra.mxu0 %v3967
      %v4453 = vpop.f32.mrf.mxu0
      %v4454 = vadd.f32 %v4102, %v4453
      %v4455 = vpop.f32.mrf.mxu0
      %v4456 = vadd.f32 %v4106, %v4455
      %v4457 = vpop.f32.mrf.mxu0
      %v4458 = vadd.f32 %v4102, %v4457
      %v4459 = vpop.f32.mrf.mxu0
      %v4460 = vadd.f32 %v4106, %v4459
      %4461 = vmatprep.mubr.bf16.mxu0 %v3970
      %4462 = vmatmul.mubr.bf16.gmra.mxu0 %v3969
      %v4463 = vpop.f32.mrf.mxu0
      %v4464 = vadd.f32 %v4102, %v4463
      %v4465 = vpop.f32.mrf.mxu0
      %v4466 = vadd.f32 %v4106, %v4465
      %v4467 = vpop.f32.mrf.mxu0
      %v4468 = vadd.f32 %v4102, %v4467
      %v4469 = vpop.f32.mrf.mxu0
      %v4470 = vadd.f32 %v4106, %v4469
      %4471 = vmatprep.mubr.bf16.mxu0 %v3972
      %4472 = vmatmul.mubr.bf16.gmra.mxu0 %v3971
      %v4473 = vpop.f32.mrf.mxu0
      %v4474 = vadd.f32 %v4102, %v4473
      %v4475 = vpop.f32.mrf.mxu0
      %v4476 = vadd.f32 %v4106, %v4475
      %v4477 = vpop.f32.mrf.mxu0
      %v4478 = vadd.f32 %v4102, %v4477
      %v4479 = vpop.f32.mrf.mxu0
      %v4480 = vadd.f32 %v4106, %v4479
      %4481 = vmatprep.mubr.bf16.mxu0 %v3974
      %4482 = vmatmul.mubr.bf16.gmra.mxu0 %v3973
      %v4483 = vpop.f32.mrf.mxu0
      %v4484 = vadd.f32 %v4102, %v4483
      %v4485 = vpop.f32.mrf.mxu0
      %v4486 = vadd.f32 %v4106, %v4485
      %v4487 = vpop.f32.mrf.mxu0
      %v4488 = vadd.f32 %v4102, %v4487
      %v4489 = vpop.f32.mrf.mxu0
      %v4490 = vadd.f32 %v4106, %v4489
      %4491 = vmatprep.mubr.bf16.mxu0 %v3976
      %4492 = vmatmul.mubr.bf16.gmra.mxu0 %v3975
      %v4493 = vpop.f32.mrf.mxu0
      %v4494 = vadd.f32 %v4102, %v4493
      %v4495 = vpop.f32.mrf.mxu0
      %v4496 = vadd.f32 %v4106, %v4495
      %v4497 = vpop.f32.mrf.mxu0
      %v4498 = vadd.f32 %v4102, %v4497
      %v4499 = vpop.f32.mrf.mxu0
      %v4500 = vadd.f32 %v4106, %v4499
      %4501 = vmatprep.mubr.bf16.mxu0 %v3978
      %4502 = vmatmul.mubr.bf16.gmra.mxu0 %v3977
      %v4503 = vpop.f32.mrf.mxu0
      %v4504 = vadd.f32 %v4102, %v4503
      %v4505 = vpop.f32.mrf.mxu0
      %v4506 = vadd.f32 %v4106, %v4505
      %v4507 = vpop.f32.mrf.mxu0
      %v4508 = vadd.f32 %v4102, %v4507
      %v4509 = vpop.f32.mrf.mxu0
      %v4510 = vadd.f32 %v4106, %v4509
      %4511 = vmatprep.mubr.bf16.mxu0 %v3980
      %4512 = vmatmul.mubr.bf16.gmra.mxu0 %v3979
      %v4513 = vpop.f32.mrf.mxu0
      %v4514 = vadd.f32 %v4102, %v4513
      %v4515 = vpop.f32.mrf.mxu0
      %v4516 = vadd.f32 %v4106, %v4515
      %v4517 = vpop.f32.mrf.mxu0
      %v4518 = vadd.f32 %v4102, %v4517
      %v4519 = vpop.f32.mrf.mxu0
      %v4520 = vadd.f32 %v4106, %v4519
      %4521 = vmatprep.mubr.bf16.mxu0 %v3982
      %4522 = vmatmul.mubr.bf16.gmra.mxu0 %v3981
      %v4523 = vpop.f32.mrf.mxu0
      %v4524 = vadd.f32 %v4102, %v4523
      %v4525 = vpop.f32.mrf.mxu0
      %v4526 = vadd.f32 %v4106, %v4525
      %v4527 = vpop.f32.mrf.mxu0
      %v4528 = vadd.f32 %v4102, %v4527
      %v4529 = vpop.f32.mrf.mxu0
      %v4530 = vadd.f32 %v4106, %v4529
      %4531 = vmatprep.mubr.bf16.mxu0 %v3984
      %4532 = vmatmul.mubr.bf16.gmra.mxu0 %v3983
      %v4533 = vpop.f32.mrf.mxu0
      %v4534 = vadd.f32 %v4102, %v4533
      %v4535 = vpop.f32.mrf.mxu0
      %v4536 = vadd.f32 %v4106, %v4535
      %v4537 = vpop.f32.mrf.mxu0
      %v4538 = vadd.f32 %v4102, %v4537
      %v4539 = vpop.f32.mrf.mxu0
      %v4540 = vadd.f32 %v4106, %v4539
      %4541 = vmatprep.mubr.bf16.mxu0 %v3986
      %4542 = vmatmul.mubr.bf16.gmra.mxu0 %v3985
      %v4543 = vpop.f32.mrf.mxu0
      %v4544 = vadd.f32 %v4102, %v4543
      %v4545 = vpop.f32.mrf.mxu0
      %v4546 = vadd.f32 %v4106, %v4545
      %v4547 = vpop.f32.mrf.mxu0
      %v4548 = vadd.f32 %v4102, %v4547
      %v4549 = vpop.f32.mrf.mxu0
      %v4550 = vadd.f32 %v4106, %v4549
      %4551 = vmatprep.mubr.bf16.mxu0 %v3988
      %4552 = vmatmul.mubr.bf16.gmra.mxu0 %v3987
      %v4553 = vpop.f32.mrf.mxu0
      %v4554 = vadd.f32 %v4102, %v4553
      %v4555 = vpop.f32.mrf.mxu0
      %v4556 = vadd.f32 %v4106, %v4555
      %v4557 = vpop.f32.mrf.mxu0
      %v4558 = vadd.f32 %v4102, %v4557
      %v4559 = vpop.f32.mrf.mxu0
      %v4560 = vadd.f32 %v4106, %v4559
      %4561 = vmatprep.mubr.bf16.mxu0 %v3990
      %4562 = vmatmul.mubr.bf16.gmra.mxu0 %v3989
      %v4563 = vpop.f32.mrf.mxu0
      %v4564 = vadd.f32 %v4102, %v4563
      %v4565 = vpop.f32.mrf.mxu0
      %v4566 = vadd.f32 %v4106, %v4565
      %v4567 = vpop.f32.mrf.mxu0
      %v4568 = vadd.f32 %v4102, %v4567
      %v4569 = vpop.f32.mrf.mxu0
      %v4570 = vadd.f32 %v4106, %v4569
      %4571 = vmatprep.mubr.bf16.mxu0 %v3992
      %4572 = vmatmul.mubr.bf16.gmra.mxu0 %v3991
      %v4573 = vpop.f32.mrf.mxu0
      %v4574 = vadd.f32 %v4102, %v4573
      %v4575 = vpop.f32.mrf.mxu0
      %v4576 = vadd.f32 %v4106, %v4575
      %v4577 = vpop.f32.mrf.mxu0
      %v4578 = vadd.f32 %v4102, %v4577
      %v4579 = vpop.f32.mrf.mxu0
      %v4580 = vadd.f32 %v4106, %v4579
      %4581 = vmatprep.mubr.bf16.mxu0 %v3994
      %4582 = vmatmul.mubr.bf16.gmra.mxu0 %v3993
      %v4583 = vpop.f32.mrf.mxu0
      %v4584 = vadd.f32 %v4102, %v4583
      %v4585 = vpop.f32.mrf.mxu0
      %v4586 = vadd.f32 %v4106, %v4585
      %v4587 = vpop.f32.mrf.mxu0
      %v4588 = vadd.f32 %v4102, %v4587
      %v4589 = vpop.f32.mrf.mxu0
      %v4590 = vadd.f32 %v4106, %v4589
      %4591 = vmatprep.mubr.bf16.mxu0 %v3996
      %4592 = vmatmul.mubr.bf16.gmra.mxu0 %v3995
      %v4593 = vpop.f32.mrf.mxu0
      %v4594 = vadd.f32 %v4102, %v4593
      %v4595 = vpop.f32.mrf.mxu0
      %v4596 = vadd.f32 %v4106, %v4595
      %v4597 = vpop.f32.mrf.mxu0
      %v4598 = vadd.f32 %v4102, %v4597
      %v4599 = vpop.f32.mrf.mxu0
      %v4600 = vadd.f32 %v4106, %v4599
      %4601 = vmatprep.mubr.bf16.mxu0 %v3998
      %4602 = vmatmul.mubr.bf16.gmra.mxu0 %v3997
      %v4603 = vpop.f32.mrf.mxu0
      %v4604 = vadd.f32 %v4102, %v4603
      %v4605 = vpop.f32.mrf.mxu0
      %v4606 = vadd.f32 %v4106, %v4605
      %v4607 = vpop.f32.mrf.mxu0
      %v4608 = vadd.f32 %v4102, %v4607
      %v4609 = vpop.f32.mrf.mxu0
      %v4610 = vadd.f32 %v4106, %v4609
      %4611 = vmatprep.mubr.bf16.mxu0 %v4000
      %4612 = vmatmul.mubr.bf16.gmra.mxu0 %v3999
      %v4613 = vpop.f32.mrf.mxu0
      %v4614 = vadd.f32 %v4102, %v4613
      %v4615 = vpop.f32.mrf.mxu0
      %v4616 = vadd.f32 %v4106, %v4615
      %v4617 = vpop.f32.mrf.mxu0
      %v4618 = vadd.f32 %v4102, %v4617
      %v4619 = vpop.f32.mrf.mxu0
      %v4620 = vadd.f32 %v4106, %v4619
      %4621 = vmatprep.mubr.bf16.mxu0 %v4002
      %4622 = vmatmul.mubr.bf16.gmra.mxu0 %v4001
      %v4623 = vpop.f32.mrf.mxu0
      %v4624 = vadd.f32 %v4102, %v4623
      %v4625 = vpop.f32.mrf.mxu0
      %v4626 = vadd.f32 %v4106, %v4625
      %v4627 = vpop.f32.mrf.mxu0
      %v4628 = vadd.f32 %v4102, %v4627
      %v4629 = vpop.f32.mrf.mxu0
      %v4630 = vadd.f32 %v4106, %v4629
      %4631 = vmatprep.mubr.bf16.mxu0 %v4004
      %4632 = vmatmul.mubr.bf16.gmra.mxu0 %v4003
      %v4633 = vpop.f32.mrf.mxu0
      %v4634 = vadd.f32 %v4102, %v4633
      %v4635 = vpop.f32.mrf.mxu0
      %v4636 = vadd.f32 %v4106, %v4635
      %v4637 = vpop.f32.mrf.mxu0
      %v4638 = vadd.f32 %v4102, %v4637
      %v4639 = vpop.f32.mrf.mxu0
      %v4640 = vadd.f32 %v4106, %v4639
      %4641 = vmatprep.mubr.bf16.mxu0 %v4006
      %4642 = vmatmul.mubr.bf16.gmra.mxu0 %v4005
      %v4643 = vpop.f32.mrf.mxu0
      %v4644 = vadd.f32 %v4102, %v4643
      %v4645 = vpop.f32.mrf.mxu0
      %v4646 = vadd.f32 %v4106, %v4645
      %v4647 = vpop.f32.mrf.mxu0
      %v4648 = vadd.f32 %v4102, %v4647
      %v4649 = vpop.f32.mrf.mxu0
      %v4650 = vadd.f32 %v4106, %v4649
      %4651 = vmatprep.mubr.bf16.mxu0 %v4008
      %4652 = vmatmul.mubr.bf16.gmra.mxu0 %v4007
      %v4653 = vpop.f32.mrf.mxu0
      %v4654 = vadd.f32 %v4102, %v4653
      %v4655 = vpop.f32.mrf.mxu0
      %v4656 = vadd.f32 %v4106, %v4655
      %v4657 = vpop.f32.mrf.mxu0
      %v4658 = vadd.f32 %v4102, %v4657
      %v4659 = vpop.f32.mrf.mxu0
      %v4660 = vadd.f32 %v4106, %v4659
      %4661 = vmatprep.mubr.bf16.mxu0 %v4010
      %4662 = vmatmul.mubr.bf16.gmra.mxu0 %v4009
      %v4663 = vpop.f32.mrf.mxu0
      %v4664 = vadd.f32 %v4102, %v4663
      %v4665 = vpop.f32.mrf.mxu0
      %v4666 = vadd.f32 %v4106, %v4665
      %v4667 = vpop.f32.mrf.mxu0
      %v4668 = vadd.f32 %v4102, %v4667
      %v4669 = vpop.f32.mrf.mxu0
      %v4670 = vadd.f32 %v4106, %v4669
      %4671 = vmatprep.mubr.bf16.mxu0 %v4012
      %4672 = vmatmul.mubr.bf16.gmra.mxu0 %v4011
      %v4673 = vpop.f32.mrf.mxu0
      %v4674 = vadd.f32 %v4102, %v4673
      %v4675 = vpop.f32.mrf.mxu0
      %v4676 = vadd.f32 %v4106, %v4675
      %v4677 = vpop.f32.mrf.mxu0
      %v4678 = vadd.f32 %v4102, %v4677
      %v4679 = vpop.f32.mrf.mxu0
      %v4680 = vadd.f32 %v4106, %v4679
      %4681 = vmatprep.mubr.bf16.mxu0 %v4014
      %4682 = vmatmul.mubr.bf16.gmra.mxu0 %v4013
      %v4683 = vpop.f32.mrf.mxu0
      %v4684 = vadd.f32 %v4102, %v4683
      %v4685 = vpop.f32.mrf.mxu0
      %v4686 = vadd.f32 %v4106, %v4685
      %v4687 = vpop.f32.mrf.mxu0
      %v4688 = vadd.f32 %v4102, %v4687
      %v4689 = vpop.f32.mrf.mxu0
      %v4690 = vadd.f32 %v4106, %v4689
      %4691 = vmatprep.mubr.bf16.mxu0 %v4016
      %4692 = vmatmul.mubr.bf16.gmra.mxu0 %v4015
      %v4693 = vpop.f32.mrf.mxu0
      %v4694 = vadd.f32 %v4102, %v4693
      %v4695 = vpop.f32.mrf.mxu0
      %v4696 = vadd.f32 %v4106, %v4695
      %v4697 = vpop.f32.mrf.mxu0
      %v4698 = vadd.f32 %v4102, %v4697
      %v4699 = vpop.f32.mrf.mxu0
      %v4700 = vadd.f32 %v4106, %v4699
      %4701 = vmatprep.mubr.bf16.mxu0 %v4018
      %4702 = vmatmul.mubr.bf16.gmra.mxu0 %v4017
      %v4703 = vpop.f32.mrf.mxu0
      %v4704 = vadd.f32 %v4102, %v4703
      %v4705 = vpop.f32.mrf.mxu0
      %v4706 = vadd.f32 %v4106, %v4705
      %v4707 = vpop.f32.mrf.mxu0
      %v4708 = vadd.f32 %v4102, %v4707
      %v4709 = vpop.f32.mrf.mxu0
      %v4710 = vadd.f32 %v4106, %v4709
      %4711 = vmatprep.mubr.bf16.mxu0 %v4020
      %4712 = vmatmul.mubr.bf16.gmra.mxu0 %v4019
      %v4713 = vpop.f32.mrf.mxu0
      %v4714 = vadd.f32 %v4102, %v4713
      %v4715 = vpop.f32.mrf.mxu0
      %v4716 = vadd.f32 %v4106, %v4715
      %v4717 = vpop.f32.mrf.mxu0
      %v4718 = vadd.f32 %v4102, %v4717
      %v4719 = vpop.f32.mrf.mxu0
      %v4720 = vadd.f32 %v4106, %v4719
      %4721 = vmatprep.mubr.bf16.mxu0 %v4022
      %4722 = vmatmul.mubr.bf16.gmra.mxu0 %v4021
      %v4723 = vpop.f32.mrf.mxu0
      %v4724 = vadd.f32 %v4102, %v4723
      %v4725 = vpop.f32.mrf.mxu0
      %v4726 = vadd.f32 %v4106, %v4725
      %v4727 = vpop.f32.mrf.mxu0
      %v4728 = vadd.f32 %v4102, %v4727
      %v4729 = vpop.f32.mrf.mxu0
      %v4730 = vadd.f32 %v4106, %v4729
      %4731 = vmatprep.mubr.bf16.mxu0 %v4024
      %4732 = vmatmul.mubr.bf16.gmra.mxu0 %v4023
      %v4733 = vpop.f32.mrf.mxu0
      %v4734 = vadd.f32 %v4102, %v4733
      %v4735 = vpop.f32.mrf.mxu0
      %v4736 = vadd.f32 %v4106, %v4735
      %v4737 = vpop.f32.mrf.mxu0
      %v4738 = vadd.f32 %v4102, %v4737
      %v4739 = vpop.f32.mrf.mxu0
      %v4740 = vadd.f32 %v4106, %v4739
      %4741 = vmatprep.mubr.bf16.mxu0 %v4026
      %4742 = vmatmul.mubr.bf16.gmra.mxu0 %v4025
      %v4743 = vpop.f32.mrf.mxu0
      %v4744 = vadd.f32 %v4102, %v4743
      %v4745 = vpop.f32.mrf.mxu0
      %v4746 = vadd.f32 %v4106, %v4745
      %v4747 = vpop.f32.mrf.mxu0
      %v4748 = vadd.f32 %v4102, %v4747
      %v4749 = vpop.f32.mrf.mxu0
      %v4750 = vadd.f32 %v4106, %v4749
      %4751 = vmatprep.mubr.bf16.mxu0 %v4028
      %4752 = vmatmul.mubr.bf16.gmra.mxu0 %v4027
      %v4753 = vpop.f32.mrf.mxu0
      %v4754 = vadd.f32 %v4102, %v4753
      %v4755 = vpop.f32.mrf.mxu0
      %v4756 = vadd.f32 %v4106, %v4755
      %v4757 = vpop.f32.mrf.mxu0
      %v4758 = vadd.f32 %v4102, %v4757
      %v4759 = vpop.f32.mrf.mxu0
      %v4760 = vadd.f32 %v4106, %v4759
      %4761 = vmatprep.mubr.bf16.mxu0 %v4030
      %4762 = vmatmul.mubr.bf16.gmra.mxu0 %v4029
      %v4763 = vpop.f32.mrf.mxu0
      %v4764 = vadd.f32 %v4102, %v4763
      %v4765 = vpop.f32.mrf.mxu0
      %v4766 = vadd.f32 %v4106, %v4765
      %v4767 = vpop.f32.mrf.mxu0
      %v4768 = vadd.f32 %v4102, %v4767
      %v4769 = vpop.f32.mrf.mxu0
      %v4770 = vadd.f32 %v4106, %v4769
      %4771 = vmatprep.mubr.bf16.mxu0 %v4032
      %4772 = vmatmul.mubr.bf16.gmra.mxu0 %v4031
      %v4773 = vpop.f32.mrf.mxu0
      %v4774 = vadd.f32 %v4102, %v4773
      %v4775 = vpop.f32.mrf.mxu0
      %v4776 = vadd.f32 %v4106, %v4775
      %v4777 = vpop.f32.mrf.mxu0
      %v4778 = vadd.f32 %v4102, %v4777
      %v4779 = vpop.f32.mrf.mxu0
      %v4780 = vadd.f32 %v4106, %v4779
      %4781 = vmatprep.mubr.bf16.mxu0 %v4034
      %4782 = vmatmul.mubr.bf16.gmra.mxu0 %v4033
      %v4783 = vpop.f32.mrf.mxu0
      %v4784 = vadd.f32 %v4102, %v4783
      %v4785 = vpop.f32.mrf.mxu0
      %v4786 = vadd.f32 %v4106, %v4785
      %v4787 = vpop.f32.mrf.mxu0
      %v4788 = vadd.f32 %v4102, %v4787
      %v4789 = vpop.f32.mrf.mxu0
      %v4790 = vadd.f32 %v4106, %v4789
      %4791 = vmatprep.mubr.bf16.mxu0 %v4036
      %4792 = vmatmul.mubr.bf16.gmra.mxu0 %v4035
      %v4793 = vpop.f32.mrf.mxu0
      %v4794 = vadd.f32 %v4102, %v4793
      %v4795 = vpop.f32.mrf.mxu0
      %v4796 = vadd.f32 %v4106, %v4795
      %v4797 = vpop.f32.mrf.mxu0
      %v4798 = vadd.f32 %v4102, %v4797
      %v4799 = vpop.f32.mrf.mxu0
      %v4800 = vadd.f32 %v4106, %v4799
      %4801 = vmatprep.mubr.bf16.mxu0 %v4038
      %4802 = vmatmul.mubr.bf16.gmra.mxu0 %v4037
      %v4803 = vpop.f32.mrf.mxu0
      %v4804 = vadd.f32 %v4102, %v4803
      %v4805 = vpop.f32.mrf.mxu0
      %v4806 = vadd.f32 %v4106, %v4805
      %v4807 = vpop.f32.mrf.mxu0
      %v4808 = vadd.f32 %v4102, %v4807
      %v4809 = vpop.f32.mrf.mxu0
      %v4810 = vadd.f32 %v4106, %v4809
      %4811 = vmatprep.mubr.bf16.mxu0 %v4040
      %4812 = vmatmul.mubr.bf16.gmra.mxu0 %v4039
      %v4813 = vpop.f32.mrf.mxu0
      %v4814 = vadd.f32 %v4102, %v4813
      %v4815 = vpop.f32.mrf.mxu0
      %v4816 = vadd.f32 %v4106, %v4815
      %v4817 = vpop.f32.mrf.mxu0
      %v4818 = vadd.f32 %v4102, %v4817
      %v4819 = vpop.f32.mrf.mxu0
      %v4820 = vadd.f32 %v4106, %v4819
      %4821 = vmatprep.mubr.bf16.mxu0 %v4042
      %4822 = vmatmul.mubr.bf16.gmra.mxu0 %v4041
      %v4823 = vpop.f32.mrf.mxu0
      %v4824 = vadd.f32 %v4102, %v4823
      %v4825 = vpop.f32.mrf.mxu0
      %v4826 = vadd.f32 %v4106, %v4825
      %v4827 = vpop.f32.mrf.mxu0
      %v4828 = vadd.f32 %v4102, %v4827
      %v4829 = vpop.f32.mrf.mxu0
      %v4830 = vadd.f32 %v4106, %v4829
      %4831 = vmatprep.mubr.bf16.mxu0 %v4044
      %4832 = vmatmul.mubr.bf16.gmra.mxu0 %v4043
      %v4833 = vpop.f32.mrf.mxu0
      %v4834 = vadd.f32 %v4102, %v4833
      %v4835 = vpop.f32.mrf.mxu0
      %v4836 = vadd.f32 %v4106, %v4835
      %v4837 = vpop.f32.mrf.mxu0
      %v4838 = vadd.f32 %v4102, %v4837
      %v4839 = vpop.f32.mrf.mxu0
      %v4840 = vadd.f32 %v4106, %v4839
      %4841 = vmatprep.mubr.bf16.mxu0 %v4046
      %4842 = vmatmul.mubr.bf16.gmra.mxu0 %v4045
      %v4843 = vpop.f32.mrf.mxu0
      %v4844 = vadd.f32 %v4102, %v4843
      %v4845 = vpop.f32.mrf.mxu0
      %v4846 = vadd.f32 %v4106, %v4845
      %v4847 = vpop.f32.mrf.mxu0
      %v4848 = vadd.f32 %v4102, %v4847
      %v4849 = vpop.f32.mrf.mxu0
      %v4850 = vadd.f32 %v4106, %v4849
      %4851 = vmatprep.mubr.bf16.mxu0 %v4048
      %4852 = vmatmul.mubr.bf16.gmra.mxu0 %v4047
      %v4853 = vpop.f32.mrf.mxu0
      %v4854 = vadd.f32 %v4102, %v4853
      %v4855 = vpop.f32.mrf.mxu0
      %v4856 = vadd.f32 %v4106, %v4855
      %v4857 = vpop.f32.mrf.mxu0
      %v4858 = vadd.f32 %v4102, %v4857
      %v4859 = vpop.f32.mrf.mxu0
      %v4860 = vadd.f32 %v4106, %v4859
      %4861 = vmatprep.mubr.bf16.mxu0 %v4050
      %4862 = vmatmul.mubr.bf16.gmra.mxu0 %v4049
      %v4863 = vpop.f32.mrf.mxu0
      %v4864 = vadd.f32 %v4102, %v4863
      %v4865 = vpop.f32.mrf.mxu0
      %v4866 = vadd.f32 %v4106, %v4865
      %v4867 = vpop.f32.mrf.mxu0
      %v4868 = vadd.f32 %v4102, %v4867
      %v4869 = vpop.f32.mrf.mxu0
      %v4870 = vadd.f32 %v4106, %v4869
      %4871 = vmatprep.mubr.bf16.mxu0 %v4052
      %4872 = vmatmul.mubr.bf16.gmra.mxu0 %v4051
      %v4873 = vpop.f32.mrf.mxu0
      %v4874 = vadd.f32 %v4102, %v4873
      %v4875 = vpop.f32.mrf.mxu0
      %v4876 = vadd.f32 %v4106, %v4875
      %v4877 = vpop.f32.mrf.mxu0
      %v4878 = vadd.f32 %v4102, %v4877
      %v4879 = vpop.f32.mrf.mxu0
      %v4880 = vadd.f32 %v4106, %v4879
      %4881 = vmatprep.mubr.bf16.mxu0 %v4054
      %4882 = vmatmul.mubr.bf16.gmra.mxu0 %v4053
      %v4883 = vpop.f32.mrf.mxu0
      %v4884 = vadd.f32 %v4102, %v4883
      %v4885 = vpop.f32.mrf.mxu0
      %v4886 = vadd.f32 %v4106, %v4885
      %v4887 = vpop.f32.mrf.mxu0
      %v4888 = vadd.f32 %v4102, %v4887
      %v4889 = vpop.f32.mrf.mxu0
      %v4890 = vadd.f32 %v4106, %v4889
      %4891 = vmatprep.mubr.bf16.mxu0 %v4056
      %4892 = vmatmul.mubr.bf16.gmra.mxu0 %v4055
      %v4893 = vpop.f32.mrf.mxu0
      %v4894 = vadd.f32 %v4102, %v4893
      %v4895 = vpop.f32.mrf.mxu0
      %v4896 = vadd.f32 %v4106, %v4895
      %v4897 = vpop.f32.mrf.mxu0
      %v4898 = vadd.f32 %v4102, %v4897
      %v4899 = vpop.f32.mrf.mxu0
      %v4900 = vadd.f32 %v4106, %v4899
      %4901 = vmatprep.mubr.bf16.mxu0 %v4058
      %4902 = vmatmul.mubr.bf16.gmra.mxu0 %v4057
      %v4903 = vpop.f32.mrf.mxu0
      %v4904 = vadd.f32 %v4102, %v4903
      %v4905 = vpop.f32.mrf.mxu0
      %v4906 = vadd.f32 %v4106, %v4905
      %v4907 = vpop.f32.mrf.mxu0
      %v4908 = vadd.f32 %v4102, %v4907
      %v4909 = vpop.f32.mrf.mxu0
      %v4910 = vadd.f32 %v4106, %v4909
      %4911 = vmatprep.mubr.bf16.mxu0 %v4060
      %4912 = vmatmul.mubr.bf16.gmra.mxu0 %v4059
      %v4913 = vpop.f32.mrf.mxu0
      %v4914 = vadd.f32 %v4102, %v4913
      %v4915 = vpop.f32.mrf.mxu0
      %v4916 = vadd.f32 %v4106, %v4915
      %v4917 = vpop.f32.mrf.mxu0
      %v4918 = vadd.f32 %v4102, %v4917
      %v4919 = vpop.f32.mrf.mxu0
      %v4920 = vadd.f32 %v4106, %v4919
      %4921 = vmatprep.mubr.bf16.mxu0 %v4062
      %4922 = vmatmul.mubr.bf16.gmra.mxu0 %v4061
      %v4923 = vpop.f32.mrf.mxu0
      %v4924 = vadd.f32 %v4102, %v4923
      %v4925 = vpop.f32.mrf.mxu0
      %v4926 = vadd.f32 %v4106, %v4925
      %v4927 = vpop.f32.mrf.mxu0
      %v4928 = vadd.f32 %v4102, %v4927
      %v4929 = vpop.f32.mrf.mxu0
      %v4930 = vadd.f32 %v4106, %v4929
      %4931 = vmatprep.mubr.bf16.mxu0 %v4064
      %4932 = vmatmul.mubr.bf16.gmra.mxu0 %v4063
      %v4933 = vpop.f32.mrf.mxu0
      %v4934 = vadd.f32 %v4102, %v4933
      %v4935 = vpop.f32.mrf.mxu0
      %v4936 = vadd.f32 %v4106, %v4935
      %v4937 = vpop.f32.mrf.mxu0
      %v4938 = vadd.f32 %v4102, %v4937
      %v4939 = vpop.f32.mrf.mxu0
      %v4940 = vadd.f32 %v4106, %v4939
      %4941 = vdwg.mxu0
      %v4942 = vmax.f32 %v4304, 0.0
      %v4943 = vmax.f32 %v4306, 0.0
      %v4944 = vmax.f32 %v4308, 0.0
      %v4945 = vmax.f32 %v4310, 0.0
      %v4946 = vmax.f32 %v4314, 0.0
      %v4947 = vmax.f32 %v4316, 0.0
      %v4948 = vmax.f32 %v4318, 0.0
      %v4949 = vmax.f32 %v4320, 0.0
      %v4950 = vmax.f32 %v4324, 0.0
      %v4951 = vmax.f32 %v4326, 0.0
      %v4952 = vmax.f32 %v4328, 0.0
      %v4953 = vmax.f32 %v4330, 0.0
      %v4954 = vmax.f32 %v4334, 0.0
      %v4955 = vmax.f32 %v4336, 0.0
      %v4956 = vmax.f32 %v4338, 0.0
      %v4957 = vmax.f32 %v4340, 0.0
      %v4958 = vmax.f32 %v4344, 0.0
      %v4959 = vmax.f32 %v4346, 0.0
      %v4960 = vmax.f32 %v4348, 0.0
      %v4961 = vmax.f32 %v4350, 0.0
      %v4962 = vmax.f32 %v4354, 0.0
      %v4963 = vmax.f32 %v4356, 0.0
      %v4964 = vmax.f32 %v4358, 0.0
      %v4965 = vmax.f32 %v4360, 0.0
      %v4966 = vmax.f32 %v4364, 0.0
      %v4967 = vmax.f32 %v4366, 0.0
      %v4968 = vmax.f32 %v4368, 0.0
      %v4969 = vmax.f32 %v4370, 0.0
      %v4970 = vmax.f32 %v4374, 0.0
      %v4971 = vmax.f32 %v4376, 0.0
      %v4972 = vmax.f32 %v4378, 0.0
      %v4973 = vmax.f32 %v4380, 0.0
      %v4974 = vmax.f32 %v4384, 0.0
      %v4975 = vmax.f32 %v4386, 0.0
      %v4976 = vmax.f32 %v4388, 0.0
      %v4977 = vmax.f32 %v4390, 0.0
      %v4978 = vmax.f32 %v4394, 0.0
      %v4979 = vmax.f32 %v4396, 0.0
      %v4980 = vmax.f32 %v4398, 0.0
      %v4981 = vmax.f32 %v4400, 0.0
      %v4982 = vmax.f32 %v4404, 0.0
      %v4983 = vmax.f32 %v4406, 0.0
      %v4984 = vmax.f32 %v4408, 0.0
      %v4985 = vmax.f32 %v4410, 0.0
      %v4986 = vmax.f32 %v4414, 0.0
      %v4987 = vmax.f32 %v4416, 0.0
      %v4988 = vmax.f32 %v4418, 0.0
      %v4989 = vmax.f32 %v4420, 0.0
      %v4990 = vmax.f32 %v4424, 0.0
      %v4991 = vmax.f32 %v4426, 0.0
      %v4992 = vmax.f32 %v4428, 0.0
      %v4993 = vmax.f32 %v4430, 0.0
      %v4994 = vmax.f32 %v4434, 0.0
      %v4995 = vmax.f32 %v4436, 0.0
      %v4996 = vmax.f32 %v4438, 0.0
      %v4997 = vmax.f32 %v4440, 0.0
      %v4998 = vmax.f32 %v4444, 0.0
      %v4999 = vmax.f32 %v4446, 0.0
      %v5000 = vmax.f32 %v4448, 0.0
      %v5001 = vmax.f32 %v4450, 0.0
      %v5002 = vmax.f32 %v4454, 0.0
      %v5003 = vmax.f32 %v4456, 0.0
      %v5004 = vmax.f32 %v4458, 0.0
      %v5005 = vmax.f32 %v4460, 0.0
      %v5006 = vmax.f32 %v4464, 0.0
      %v5007 = vmax.f32 %v4466, 0.0
      %v5008 = vmax.f32 %v4468, 0.0
      %v5009 = vmax.f32 %v4470, 0.0
      %v5010 = vmax.f32 %v4474, 0.0
      %v5011 = vmax.f32 %v4476, 0.0
      %v5012 = vmax.f32 %v4478, 0.0
      %v5013 = vmax.f32 %v4480, 0.0
      %v5014 = vmax.f32 %v4484, 0.0
      %v5015 = vmax.f32 %v4486, 0.0
      %v5016 = vmax.f32 %v4488, 0.0
      %v5017 = vmax.f32 %v4490, 0.0
      %v5018 = vmax.f32 %v4494, 0.0
      %v5019 = vmax.f32 %v4496, 0.0
      %v5020 = vmax.f32 %v4498, 0.0
      %v5021 = vmax.f32 %v4500, 0.0
      %v5022 = vmax.f32 %v4504, 0.0
      %v5023 = vmax.f32 %v4506, 0.0
      %v5024 = vmax.f32 %v4508, 0.0
      %v5025 = vmax.f32 %v4510, 0.0
      %v5026 = vmax.f32 %v4514, 0.0
      %v5027 = vmax.f32 %v4516, 0.0
      %v5028 = vmax.f32 %v4518, 0.0
      %v5029 = vmax.f32 %v4520, 0.0
      %v5030 = vmax.f32 %v4524, 0.0
      %v5031 = vmax.f32 %v4526, 0.0
      %v5032 = vmax.f32 %v4528, 0.0
      %v5033 = vmax.f32 %v4530, 0.0
      %v5034 = vmax.f32 %v4534, 0.0
      %v5035 = vmax.f32 %v4536, 0.0
      %v5036 = vmax.f32 %v4538, 0.0
      %v5037 = vmax.f32 %v4540, 0.0
      %v5038 = vmax.f32 %v4544, 0.0
      %v5039 = vmax.f32 %v4546, 0.0
      %v5040 = vmax.f32 %v4548, 0.0
      %v5041 = vmax.f32 %v4550, 0.0
      %v5042 = vmax.f32 %v4554, 0.0
      %v5043 = vmax.f32 %v4556, 0.0
      %v5044 = vmax.f32 %v4558, 0.0
      %v5045 = vmax.f32 %v4560, 0.0
      %v5046 = vmax.f32 %v4564, 0.0
      %v5047 = vmax.f32 %v4566, 0.0
      %v5048 = vmax.f32 %v4568, 0.0
      %v5049 = vmax.f32 %v4570, 0.0
      %v5050 = vmax.f32 %v4574, 0.0
      %v5051 = vmax.f32 %v4576, 0.0
      %v5052 = vmax.f32 %v4578, 0.0
      %v5053 = vmax.f32 %v4580, 0.0
      %v5054 = vmax.f32 %v4584, 0.0
      %v5055 = vmax.f32 %v4586, 0.0
      %v5056 = vmax.f32 %v4588, 0.0
      %v5057 = vmax.f32 %v4590, 0.0
      %v5058 = vmax.f32 %v4594, 0.0
      %v5059 = vmax.f32 %v4596, 0.0
      %v5060 = vmax.f32 %v4598, 0.0
      %v5061 = vmax.f32 %v4600, 0.0
      %v5062 = vmax.f32 %v4604, 0.0
      %v5063 = vmax.f32 %v4606, 0.0
      %v5064 = vmax.f32 %v4608, 0.0
      %v5065 = vmax.f32 %v4610, 0.0
      %v5066 = vmax.f32 %v4614, 0.0
      %v5067 = vmax.f32 %v4616, 0.0
      %v5068 = vmax.f32 %v4618, 0.0
      %v5069 = vmax.f32 %v4620, 0.0
      %v5070 = vmax.f32 %v4624, 0.0
      %v5071 = vmax.f32 %v4626, 0.0
      %v5072 = vmax.f32 %v4628, 0.0
      %v5073 = vmax.f32 %v4630, 0.0
      %v5074 = vmax.f32 %v4634, 0.0
      %v5075 = vmax.f32 %v4636, 0.0
      %v5076 = vmax.f32 %v4638, 0.0
      %v5077 = vmax.f32 %v4640, 0.0
      %v5078 = vmax.f32 %v4644, 0.0
      %v5079 = vmax.f32 %v4646, 0.0
      %v5080 = vmax.f32 %v4648, 0.0
      %v5081 = vmax.f32 %v4650, 0.0
      %v5082 = vmax.f32 %v4654, 0.0
      %v5083 = vmax.f32 %v4656, 0.0
      %v5084 = vmax.f32 %v4658, 0.0
      %v5085 = vmax.f32 %v4660, 0.0
      %v5086 = vmax.f32 %v4664, 0.0
      %v5087 = vmax.f32 %v4666, 0.0
      %v5088 = vmax.f32 %v4668, 0.0
      %v5089 = vmax.f32 %v4670, 0.0
      %v5090 = vmax.f32 %v4674, 0.0
      %v5091 = vmax.f32 %v4676, 0.0
      %v5092 = vmax.f32 %v4678, 0.0
      %v5093 = vmax.f32 %v4680, 0.0
      %v5094 = vmax.f32 %v4684, 0.0
      %v5095 = vmax.f32 %v4686, 0.0
      %v5096 = vmax.f32 %v4688, 0.0
      %v5097 = vmax.f32 %v4690, 0.0
      %v5098 = vmax.f32 %v4694, 0.0
      %v5099 = vmax.f32 %v4696, 0.0
      %v5100 = vmax.f32 %v4698, 0.0
      %v5101 = vmax.f32 %v4700, 0.0
      %v5102 = vmax.f32 %v4704, 0.0
      %v5103 = vmax.f32 %v4706, 0.0
      %v5104 = vmax.f32 %v4708, 0.0
      %v5105 = vmax.f32 %v4710, 0.0
      %v5106 = vmax.f32 %v4714, 0.0
      %v5107 = vmax.f32 %v4716, 0.0
      %v5108 = vmax.f32 %v4718, 0.0
      %v5109 = vmax.f32 %v4720, 0.0
      %v5110 = vmax.f32 %v4724, 0.0
      %v5111 = vmax.f32 %v4726, 0.0
      %v5112 = vmax.f32 %v4728, 0.0
      %v5113 = vmax.f32 %v4730, 0.0
      %v5114 = vmax.f32 %v4734, 0.0
      %v5115 = vmax.f32 %v4736, 0.0
      %v5116 = vmax.f32 %v4738, 0.0
      %v5117 = vmax.f32 %v4740, 0.0
      %v5118 = vmax.f32 %v4744, 0.0
      %v5119 = vmax.f32 %v4746, 0.0
      %v5120 = vmax.f32 %v4748, 0.0
      %v5121 = vmax.f32 %v4750, 0.0
      %v5122 = vmax.f32 %v4754, 0.0
      %v5123 = vmax.f32 %v4756, 0.0
      %v5124 = vmax.f32 %v4758, 0.0
      %v5125 = vmax.f32 %v4760, 0.0
      %v5126 = vmax.f32 %v4764, 0.0
      %v5127 = vmax.f32 %v4766, 0.0
      %v5128 = vmax.f32 %v4768, 0.0
      %v5129 = vmax.f32 %v4770, 0.0
      %v5130 = vmax.f32 %v4774, 0.0
      %v5131 = vmax.f32 %v4776, 0.0
      %v5132 = vmax.f32 %v4778, 0.0
      %v5133 = vmax.f32 %v4780, 0.0
      %v5134 = vmax.f32 %v4784, 0.0
      %v5135 = vmax.f32 %v4786, 0.0
      %v5136 = vmax.f32 %v4788, 0.0
      %v5137 = vmax.f32 %v4790, 0.0
      %v5138 = vmax.f32 %v4794, 0.0
      %v5139 = vmax.f32 %v4796, 0.0
      %v5140 = vmax.f32 %v4798, 0.0
      %v5141 = vmax.f32 %v4800, 0.0
      %v5142 = vmax.f32 %v4804, 0.0
      %v5143 = vmax.f32 %v4806, 0.0
      %v5144 = vmax.f32 %v4808, 0.0
      %v5145 = vmax.f32 %v4810, 0.0
      %v5146 = vmax.f32 %v4814, 0.0
      %v5147 = vmax.f32 %v4816, 0.0
      %v5148 = vmax.f32 %v4818, 0.0
      %v5149 = vmax.f32 %v4820, 0.0
      %v5150 = vmax.f32 %v4824, 0.0
      %v5151 = vmax.f32 %v4826, 0.0
      %v5152 = vmax.f32 %v4828, 0.0
      %v5153 = vmax.f32 %v4830, 0.0
      %v5154 = vmax.f32 %v4834, 0.0
      %v5155 = vmax.f32 %v4836, 0.0
      %v5156 = vmax.f32 %v4838, 0.0
      %v5157 = vmax.f32 %v4840, 0.0
      %v5158 = vmax.f32 %v4844, 0.0
      %v5159 = vmax.f32 %v4846, 0.0
      %v5160 = vmax.f32 %v4848, 0.0
      %v5161 = vmax.f32 %v4850, 0.0
      %v5162 = vmax.f32 %v4854, 0.0
      %v5163 = vmax.f32 %v4856, 0.0
      %v5164 = vmax.f32 %v4858, 0.0
      %v5165 = vmax.f32 %v4860, 0.0
      %v5166 = vmax.f32 %v4864, 0.0
      %v5167 = vmax.f32 %v4866, 0.0
      %v5168 = vmax.f32 %v4868, 0.0
      %v5169 = vmax.f32 %v4870, 0.0
      %v5170 = vmax.f32 %v4874, 0.0
      %v5171 = vmax.f32 %v4876, 0.0
      %v5172 = vmax.f32 %v4878, 0.0
      %v5173 = vmax.f32 %v4880, 0.0
      %v5174 = vmax.f32 %v4884, 0.0
      %v5175 = vmax.f32 %v4886, 0.0
      %v5176 = vmax.f32 %v4888, 0.0
      %v5177 = vmax.f32 %v4890, 0.0
      %v5178 = vmax.f32 %v4894, 0.0
      %v5179 = vmax.f32 %v4896, 0.0
      %v5180 = vmax.f32 %v4898, 0.0
      %v5181 = vmax.f32 %v4900, 0.0
      %v5182 = vmax.f32 %v4904, 0.0
      %v5183 = vmax.f32 %v4906, 0.0
      %v5184 = vmax.f32 %v4908, 0.0
      %v5185 = vmax.f32 %v4910, 0.0
      %v5186 = vmax.f32 %v4914, 0.0
      %v5187 = vmax.f32 %v4916, 0.0
      %v5188 = vmax.f32 %v4918, 0.0
      %v5189 = vmax.f32 %v4920, 0.0
      %v5190 = vmax.f32 %v4924, 0.0
      %v5191 = vmax.f32 %v4926, 0.0
      %v5192 = vmax.f32 %v4928, 0.0
      %v5193 = vmax.f32 %v4930, 0.0
      %v5194 = vmax.f32 %v4934, 0.0
      %v5195 = vmax.f32 %v4936, 0.0
      %v5196 = vmax.f32 %v4938, 0.0
      %v5197 = vmax.f32 %v4940, 0.0
      %v5198 = vpack.c.bf16 %v4944, %v4942
      %v5199 = vpack.c.bf16 %v4945, %v4943
      %v5200 = vpack.c.bf16 %v4948, %v4946
      %v5201 = vpack.c.bf16 %v4949, %v4947
      %v5202 = vpack.c.bf16 %v4952, %v4950
      %v5203 = vpack.c.bf16 %v4953, %v4951
      %v5204 = vpack.c.bf16 %v4956, %v4954
      %v5205 = vpack.c.bf16 %v4957, %v4955
      %v5206 = vpack.c.bf16 %v4960, %v4958
      %v5207 = vpack.c.bf16 %v4961, %v4959
      %v5208 = vpack.c.bf16 %v4964, %v4962
      %v5209 = vpack.c.bf16 %v4965, %v4963
      %v5210 = vpack.c.bf16 %v4968, %v4966
      %v5211 = vpack.c.bf16 %v4969, %v4967
      %v5212 = vpack.c.bf16 %v4972, %v4970
      %v5213 = vpack.c.bf16 %v4973, %v4971
      %v5214 = vpack.c.bf16 %v4976, %v4974
      %v5215 = vpack.c.bf16 %v4977, %v4975
      %v5216 = vpack.c.bf16 %v4980, %v4978
      %v5217 = vpack.c.bf16 %v4981, %v4979
      %v5218 = vpack.c.bf16 %v4984, %v4982
      %v5219 = vpack.c.bf16 %v4985, %v4983
      %v5220 = vpack.c.bf16 %v4988, %v4986
      %v5221 = vpack.c.bf16 %v4989, %v4987
      %v5222 = vpack.c.bf16 %v4992, %v4990
      %v5223 = vpack.c.bf16 %v4993, %v4991
      %v5224 = vpack.c.bf16 %v4996, %v4994
      %v5225 = vpack.c.bf16 %v4997, %v4995
      %v5226 = vpack.c.bf16 %v5000, %v4998
      %v5227 = vpack.c.bf16 %v5001, %v4999
      %v5228 = vpack.c.bf16 %v5004, %v5002
      %v5229 = vpack.c.bf16 %v5005, %v5003
      %v5230 = vpack.c.bf16 %v5008, %v5006
      %v5231 = vpack.c.bf16 %v5009, %v5007
      %v5232 = vpack.c.bf16 %v5012, %v5010
      %v5233 = vpack.c.bf16 %v5013, %v5011
      %v5234 = vpack.c.bf16 %v5016, %v5014
      %v5235 = vpack.c.bf16 %v5017, %v5015
      %v5236 = vpack.c.bf16 %v5020, %v5018
      %v5237 = vpack.c.bf16 %v5021, %v5019
      %v5238 = vpack.c.bf16 %v5024, %v5022
      %v5239 = vpack.c.bf16 %v5025, %v5023
      %v5240 = vpack.c.bf16 %v5028, %v5026
      %v5241 = vpack.c.bf16 %v5029, %v5027
      %v5242 = vpack.c.bf16 %v5032, %v5030
      %v5243 = vpack.c.bf16 %v5033, %v5031
      %v5244 = vpack.c.bf16 %v5036, %v5034
      %v5245 = vpack.c.bf16 %v5037, %v5035
      %v5246 = vpack.c.bf16 %v5040, %v5038
      %v5247 = vpack.c.bf16 %v5041, %v5039
      %v5248 = vpack.c.bf16 %v5044, %v5042
      %v5249 = vpack.c.bf16 %v5045, %v5043
      %v5250 = vpack.c.bf16 %v5048, %v5046
      %v5251 = vpack.c.bf16 %v5049, %v5047
      %v5252 = vpack.c.bf16 %v5052, %v5050
      %v5253 = vpack.c.bf16 %v5053, %v5051
      %v5254 = vpack.c.bf16 %v5056, %v5054
      %v5255 = vpack.c.bf16 %v5057, %v5055
      %v5256 = vpack.c.bf16 %v5060, %v5058
      %v5257 = vpack.c.bf16 %v5061, %v5059
      %v5258 = vpack.c.bf16 %v5064, %v5062
      %v5259 = vpack.c.bf16 %v5065, %v5063
      %v5260 = vpack.c.bf16 %v5068, %v5066
      %v5261 = vpack.c.bf16 %v5069, %v5067
      %v5262 = vpack.c.bf16 %v5072, %v5070
      %v5263 = vpack.c.bf16 %v5073, %v5071
      %v5264 = vpack.c.bf16 %v5076, %v5074
      %v5265 = vpack.c.bf16 %v5077, %v5075
      %v5266 = vpack.c.bf16 %v5080, %v5078
      %v5267 = vpack.c.bf16 %v5081, %v5079
      %v5268 = vpack.c.bf16 %v5084, %v5082
      %v5269 = vpack.c.bf16 %v5085, %v5083
      %v5270 = vpack.c.bf16 %v5088, %v5086
      %v5271 = vpack.c.bf16 %v5089, %v5087
      %v5272 = vpack.c.bf16 %v5092, %v5090
      %v5273 = vpack.c.bf16 %v5093, %v5091
      %v5274 = vpack.c.bf16 %v5096, %v5094
      %v5275 = vpack.c.bf16 %v5097, %v5095
      %v5276 = vpack.c.bf16 %v5100, %v5098
      %v5277 = vpack.c.bf16 %v5101, %v5099
      %v5278 = vpack.c.bf16 %v5104, %v5102
      %v5279 = vpack.c.bf16 %v5105, %v5103
      %v5280 = vpack.c.bf16 %v5108, %v5106
      %v5281 = vpack.c.bf16 %v5109, %v5107
      %v5282 = vpack.c.bf16 %v5112, %v5110
      %v5283 = vpack.c.bf16 %v5113, %v5111
      %v5284 = vpack.c.bf16 %v5116, %v5114
      %v5285 = vpack.c.bf16 %v5117, %v5115
      %v5286 = vpack.c.bf16 %v5120, %v5118
      %v5287 = vpack.c.bf16 %v5121, %v5119
      %v5288 = vpack.c.bf16 %v5124, %v5122
      %v5289 = vpack.c.bf16 %v5125, %v5123
      %v5290 = vpack.c.bf16 %v5128, %v5126
      %v5291 = vpack.c.bf16 %v5129, %v5127
      %v5292 = vpack.c.bf16 %v5132, %v5130
      %v5293 = vpack.c.bf16 %v5133, %v5131
      %v5294 = vpack.c.bf16 %v5136, %v5134
      %v5295 = vpack.c.bf16 %v5137, %v5135
      %v5296 = vpack.c.bf16 %v5140, %v5138
      %v5297 = vpack.c.bf16 %v5141, %v5139
      %v5298 = vpack.c.bf16 %v5144, %v5142
      %v5299 = vpack.c.bf16 %v5145, %v5143
      %v5300 = vpack.c.bf16 %v5148, %v5146
      %v5301 = vpack.c.bf16 %v5149, %v5147
      %v5302 = vpack.c.bf16 %v5152, %v5150
      %v5303 = vpack.c.bf16 %v5153, %v5151
      %v5304 = vpack.c.bf16 %v5156, %v5154
      %v5305 = vpack.c.bf16 %v5157, %v5155
      %v5306 = vpack.c.bf16 %v5160, %v5158
      %v5307 = vpack.c.bf16 %v5161, %v5159
      %v5308 = vpack.c.bf16 %v5164, %v5162
      %v5309 = vpack.c.bf16 %v5165, %v5163
      %v5310 = vpack.c.bf16 %v5168, %v5166
      %v5311 = vpack.c.bf16 %v5169, %v5167
      %v5312 = vpack.c.bf16 %v5172, %v5170
      %v5313 = vpack.c.bf16 %v5173, %v5171
      %v5314 = vpack.c.bf16 %v5176, %v5174
      %v5315 = vpack.c.bf16 %v5177, %v5175
      %v5316 = vpack.c.bf16 %v5180, %v5178
      %v5317 = vpack.c.bf16 %v5181, %v5179
      %v5318 = vpack.c.bf16 %v5184, %v5182
      %v5319 = vpack.c.bf16 %v5185, %v5183
      %v5320 = vpack.c.bf16 %v5188, %v5186
      %v5321 = vpack.c.bf16 %v5189, %v5187
      %v5322 = vpack.c.bf16 %v5192, %v5190
      %v5323 = vpack.c.bf16 %v5193, %v5191
      %v5324 = vpack.c.bf16 %v5196, %v5194
      %v5325 = vpack.c.bf16 %v5197, %v5195
      %v5326 = vld [vmem:[%s5] sm:$0xf]
      %v5327 = vld [vmem:[%s5 + $0x4] sm:$0xf]
      %v5328 = vld [vmem:[%s5 + $0x8] sm:$0xf]
      %v5329 = vld [vmem:[%s5 + $0xc] sm:$0xf]
      %v5330 = vld [vmem:[%s5 + $0x10] sm:$0xf]
      %v5331 = vld [vmem:[%s5 + $0x14] sm:$0xf]
      %v5332 = vld [vmem:[%s5 + $0x18] sm:$0xf]
      %v5333 = vld [vmem:[%s5 + $0x1c] sm:$0xf]
      %v5334 = vld [vmem:[%s5 + $0x20] sm:$0xf]
      %v5335 = vld [vmem:[%s5 + $0x24] sm:$0xf]
      %v5336 = vld [vmem:[%s5 + $0x28] sm:$0xf]
      %v5337 = vld [vmem:[%s5 + $0x2c] sm:$0xf]
      %v5338 = vld [vmem:[%s5 + $0x30] sm:$0xf]
      %v5339 = vld [vmem:[%s5 + $0x34] sm:$0xf]
      %v5340 = vld [vmem:[%s5 + $0x38] sm:$0xf]
      %v5341 = vld [vmem:[%s5 + $0x3c] sm:$0xf]
      %v5342 = vld [vmem:[%s5 + $0x40] sm:$0xf]
      %v5343 = vld [vmem:[%s5 + $0x44] sm:$0xf]
      %v5344 = vld [vmem:[%s5 + $0x48] sm:$0xf]
      %v5345 = vld [vmem:[%s5 + $0x4c] sm:$0xf]
      %v5346 = vld [vmem:[%s5 + $0x50] sm:$0xf]
      %v5347 = vld [vmem:[%s5 + $0x54] sm:$0xf]
      %v5348 = vld [vmem:[%s5 + $0x58] sm:$0xf]
      %v5349 = vld [vmem:[%s5 + $0x5c] sm:$0xf]
      %v5350 = vld [vmem:[%s5 + $0x60] sm:$0xf]
      %v5351 = vld [vmem:[%s5 + $0x64] sm:$0xf]
      %v5352 = vld [vmem:[%s5 + $0x68] sm:$0xf]
      %v5353 = vld [vmem:[%s5 + $0x6c] sm:$0xf]
      %v5354 = vld [vmem:[%s5 + $0x70] sm:$0xf]
      %v5355 = vld [vmem:[%s5 + $0x74] sm:$0xf]
      %v5356 = vld [vmem:[%s5 + $0x78] sm:$0xf]
      %v5357 = vld [vmem:[%s5 + $0x7c] sm:$0xf]
      %v5358 = vld [vmem:[#allocation2] sm:$0x1]
      %v5360 = vlaneseq
      %v5361 = vshrl.u32 %v5360, 7
      %v5362 = vsub.s32 0, %v5361
      %v5363 = vrot.slane %v5358, %v5362
      %v5397 = vunpack.c.l.b16 %v5326
      %v5398 = vunpack.c.l.b16 %v5327
      %v5399 = vunpack.c.l.b16 %v5328
      %v5400 = vunpack.c.l.b16 %v5329
      %v5401 = vunpack.c.l.b16 %v5330
      %v5402 = vunpack.c.l.b16 %v5331
      %v5403 = vunpack.c.l.b16 %v5332
      %v5404 = vunpack.c.l.b16 %v5333
      %v5405 = vunpack.c.l.b16 %v5334
      %v5406 = vunpack.c.l.b16 %v5335
      %v5407 = vunpack.c.l.b16 %v5336
      %v5408 = vunpack.c.l.b16 %v5337
      %v5409 = vunpack.c.l.b16 %v5338
      %v5410 = vunpack.c.l.b16 %v5339
      %v5411 = vunpack.c.l.b16 %v5340
      %v5412 = vunpack.c.l.b16 %v5341
      %v5413 = vunpack.c.l.b16 %v5342
      %v5414 = vunpack.c.l.b16 %v5343
      %v5415 = vunpack.c.l.b16 %v5344
      %v5416 = vunpack.c.l.b16 %v5345
      %v5417 = vunpack.c.l.b16 %v5346
      %v5418 = vunpack.c.l.b16 %v5347
      %v5419 = vunpack.c.l.b16 %v5348
      %v5420 = vunpack.c.l.b16 %v5349
      %v5421 = vunpack.c.l.b16 %v5350
      %v5422 = vunpack.c.l.b16 %v5351
      %v5423 = vunpack.c.l.b16 %v5352
      %v5424 = vunpack.c.l.b16 %v5353
      %v5425 = vunpack.c.l.b16 %v5354
      %v5426 = vunpack.c.l.b16 %v5355
      %v5427 = vunpack.c.l.b16 %v5356
      %v5428 = vunpack.c.l.b16 %v5357
      %v5429 = vpack.c.b16 %v5398, %v5397
      %v5430 = vpack.c.b16 %v5400, %v5399
      %v5431 = vpack.c.b16 %v5402, %v5401
      %v5432 = vpack.c.b16 %v5404, %v5403
      %v5433 = vpack.c.b16 %v5406, %v5405
      %v5434 = vpack.c.b16 %v5408, %v5407
      %v5435 = vpack.c.b16 %v5410, %v5409
      %v5436 = vpack.c.b16 %v5412, %v5411
      %v5437 = vpack.c.b16 %v5414, %v5413
      %v5438 = vpack.c.b16 %v5416, %v5415
      %v5439 = vpack.c.b16 %v5418, %v5417
      %v5440 = vpack.c.b16 %v5420, %v5419
      %v5441 = vpack.c.b16 %v5422, %v5421
      %v5442 = vpack.c.b16 %v5424, %v5423
      %v5443 = vpack.c.b16 %v5426, %v5425
      %v5444 = vpack.c.b16 %v5428, %v5427
      %5461 = vmatprep.subr.bf16.mxu0 0
      %5462 = vmatpush1.bf16.msra.mxu0 %v5436
      %5463 = vmatprep.subr.bf16.mxu0 0
      %5464 = vmatpush1.bf16.msra.mxu0 %v5435
      %5465 = vmatprep.subr.bf16.mxu0 0
      %5466 = vmatpush1.bf16.msra.mxu0 %v5434
      %5467 = vmatprep.subr.bf16.mxu0 0
      %5468 = vmatpush1.bf16.msra.mxu0 %v5433
      %5469 = vmatprep.subr.bf16.mxu0 0
      %5470 = vmatpush1.bf16.msra.mxu0 %v5432
      %5471 = vmatprep.subr.bf16.mxu0 0
      %5472 = vmatpush1.bf16.msra.mxu0 %v5431
      %5473 = vmatprep.subr.bf16.mxu0 0
      %5474 = vmatpush1.bf16.msra.mxu0 %v5430
      %5475 = vmatprep.subr.bf16.mxu0 0
      %5476 = vmatpush1.bf16.msra.mxu0 %v5429
      %5477 = vmatprep.subr.bf16.mxu0 0
      %5478 = vmatpush2.bf16.msra.mxu0 %v5444
      %5479 = vmatprep.subr.bf16.mxu0 0
      %5480 = vmatpush2.bf16.msra.mxu0 %v5443
      %5481 = vmatprep.subr.bf16.mxu0 0
      %5482 = vmatpush2.bf16.msra.mxu0 %v5442
      %5483 = vmatprep.subr.bf16.mxu0 0
      %5484 = vmatpush2.bf16.msra.mxu0 %v5441
      %5485 = vmatprep.subr.bf16.mxu0 0
      %5486 = vmatpush2.bf16.msra.mxu0 %v5440
      %5487 = vmatprep.subr.bf16.mxu0 0
      %5488 = vmatpush2.bf16.msra.mxu0 %v5439
      %5489 = vmatprep.subr.bf16.mxu0 0
      %5490 = vmatpush2.bf16.msra.mxu0 %v5438
      %5491 = vmatprep.subr.bf16.mxu0 0
      %5492 = vmatpush2.bf16.msra.mxu0 %v5437
      %5493 = vmatprep.mubr.bf16.mxu0 %v5199
      %5494 = vmatmul.mubr.bf16.gmra.mxu0 %v5198
      %v5495 = vpop.f32.mrf.mxu0
      %v5496 = vadd.f32 %v5363, %v5495
      %v5497 = vpop.f32.mrf.mxu0
      %v5498 = vpop.f32.mrf.mxu0
      %v5499 = vadd.f32 %v5363, %v5498
      %v5500 = vpop.f32.mrf.mxu0
      %5501 = vmatprep.mubr.bf16.mxu0 %v5201
      %5502 = vmatmul.mubr.bf16.gmra.mxu0 %v5200
      %v5503 = vpop.f32.mrf.mxu0
      %v5504 = vadd.f32 %v5363, %v5503
      %v5505 = vpop.f32.mrf.mxu0
      %v5506 = vpop.f32.mrf.mxu0
      %v5507 = vadd.f32 %v5363, %v5506
      %v5508 = vpop.f32.mrf.mxu0
      %5509 = vmatprep.mubr.bf16.mxu0 %v5203
      %5510 = vmatmul.mubr.bf16.gmra.mxu0 %v5202
      %v5511 = vpop.f32.mrf.mxu0
      %v5512 = vadd.f32 %v5363, %v5511
      %v5513 = vpop.f32.mrf.mxu0
      %v5514 = vpop.f32.mrf.mxu0
      %v5515 = vadd.f32 %v5363, %v5514
      %v5516 = vpop.f32.mrf.mxu0
      %5517 = vmatprep.mubr.bf16.mxu0 %v5205
      %5518 = vmatmul.mubr.bf16.gmra.mxu0 %v5204
      %v5519 = vpop.f32.mrf.mxu0
      %v5520 = vadd.f32 %v5363, %v5519
      %v5521 = vpop.f32.mrf.mxu0
      %v5522 = vpop.f32.mrf.mxu0
      %v5523 = vadd.f32 %v5363, %v5522
      %v5524 = vpop.f32.mrf.mxu0
      %5525 = vmatprep.mubr.bf16.mxu0 %v5207
      %5526 = vmatmul.mubr.bf16.gmra.mxu0 %v5206
      %v5527 = vpop.f32.mrf.mxu0
      %v5528 = vadd.f32 %v5363, %v5527
      %v5529 = vpop.f32.mrf.mxu0
      %v5530 = vpop.f32.mrf.mxu0
      %v5531 = vadd.f32 %v5363, %v5530
      %v5532 = vpop.f32.mrf.mxu0
      %5533 = vmatprep.mubr.bf16.mxu0 %v5209
      %5534 = vmatmul.mubr.bf16.gmra.mxu0 %v5208
      %v5535 = vpop.f32.mrf.mxu0
      %v5536 = vadd.f32 %v5363, %v5535
      %v5537 = vpop.f32.mrf.mxu0
      %v5538 = vpop.f32.mrf.mxu0
      %v5539 = vadd.f32 %v5363, %v5538
      %v5540 = vpop.f32.mrf.mxu0
      %5541 = vmatprep.mubr.bf16.mxu0 %v5211
      %5542 = vmatmul.mubr.bf16.gmra.mxu0 %v5210
      %v5543 = vpop.f32.mrf.mxu0
      %v5544 = vadd.f32 %v5363, %v5543
      %v5545 = vpop.f32.mrf.mxu0
      %v5546 = vpop.f32.mrf.mxu0
      %v5547 = vadd.f32 %v5363, %v5546
      %v5548 = vpop.f32.mrf.mxu0
      %5549 = vmatprep.mubr.bf16.mxu0 %v5213
      %5550 = vmatmul.mubr.bf16.gmra.mxu0 %v5212
      %v5551 = vpop.f32.mrf.mxu0
      %v5552 = vadd.f32 %v5363, %v5551
      %v5553 = vpop.f32.mrf.mxu0
      %v5554 = vpop.f32.mrf.mxu0
      %v5555 = vadd.f32 %v5363, %v5554
      %v5556 = vpop.f32.mrf.mxu0
      %5557 = vmatprep.mubr.bf16.mxu0 %v5215
      %5558 = vmatmul.mubr.bf16.gmra.mxu0 %v5214
      %v5559 = vpop.f32.mrf.mxu0
      %v5560 = vadd.f32 %v5363, %v5559
      %v5561 = vpop.f32.mrf.mxu0
      %v5562 = vpop.f32.mrf.mxu0
      %v5563 = vadd.f32 %v5363, %v5562
      %v5564 = vpop.f32.mrf.mxu0
      %5565 = vmatprep.mubr.bf16.mxu0 %v5217
      %5566 = vmatmul.mubr.bf16.gmra.mxu0 %v5216
      %v5567 = vpop.f32.mrf.mxu0
      %v5568 = vadd.f32 %v5363, %v5567
      %v5569 = vpop.f32.mrf.mxu0
      %v5570 = vpop.f32.mrf.mxu0
      %v5571 = vadd.f32 %v5363, %v5570
      %v5572 = vpop.f32.mrf.mxu0
      %5573 = vmatprep.mubr.bf16.mxu0 %v5219
      %5574 = vmatmul.mubr.bf16.gmra.mxu0 %v5218
      %v5575 = vpop.f32.mrf.mxu0
      %v5576 = vadd.f32 %v5363, %v5575
      %v5577 = vpop.f32.mrf.mxu0
      %v5578 = vpop.f32.mrf.mxu0
      %v5579 = vadd.f32 %v5363, %v5578
      %v5580 = vpop.f32.mrf.mxu0
      %5581 = vmatprep.mubr.bf16.mxu0 %v5221
      %5582 = vmatmul.mubr.bf16.gmra.mxu0 %v5220
      %v5583 = vpop.f32.mrf.mxu0
      %v5584 = vadd.f32 %v5363, %v5583
      %v5585 = vpop.f32.mrf.mxu0
      %v5586 = vpop.f32.mrf.mxu0
      %v5587 = vadd.f32 %v5363, %v5586
      %v5588 = vpop.f32.mrf.mxu0
      %5589 = vmatprep.mubr.bf16.mxu0 %v5223
      %5590 = vmatmul.mubr.bf16.gmra.mxu0 %v5222
      %v5591 = vpop.f32.mrf.mxu0
      %v5592 = vadd.f32 %v5363, %v5591
      %v5593 = vpop.f32.mrf.mxu0
      %v5594 = vpop.f32.mrf.mxu0
      %v5595 = vadd.f32 %v5363, %v5594
      %v5596 = vpop.f32.mrf.mxu0
      %5597 = vmatprep.mubr.bf16.mxu0 %v5225
      %5598 = vmatmul.mubr.bf16.gmra.mxu0 %v5224
      %v5599 = vpop.f32.mrf.mxu0
      %v5600 = vadd.f32 %v5363, %v5599
      %v5601 = vpop.f32.mrf.mxu0
      %v5602 = vpop.f32.mrf.mxu0
      %v5603 = vadd.f32 %v5363, %v5602
      %v5604 = vpop.f32.mrf.mxu0
      %5605 = vmatprep.mubr.bf16.mxu0 %v5227
      %5606 = vmatmul.mubr.bf16.gmra.mxu0 %v5226
      %v5607 = vpop.f32.mrf.mxu0
      %v5608 = vadd.f32 %v5363, %v5607
      %v5609 = vpop.f32.mrf.mxu0
      %v5610 = vpop.f32.mrf.mxu0
      %v5611 = vadd.f32 %v5363, %v5610
      %v5612 = vpop.f32.mrf.mxu0
      %5613 = vmatprep.mubr.bf16.mxu0 %v5229
      %5614 = vmatmul.mubr.bf16.gmra.mxu0 %v5228
      %v5615 = vpop.f32.mrf.mxu0
      %v5616 = vadd.f32 %v5363, %v5615
      %v5617 = vpop.f32.mrf.mxu0
      %v5618 = vpop.f32.mrf.mxu0
      %v5619 = vadd.f32 %v5363, %v5618
      %v5620 = vpop.f32.mrf.mxu0
      %5621 = vmatprep.mubr.bf16.mxu0 %v5231
      %5622 = vmatmul.mubr.bf16.gmra.mxu0 %v5230
      %v5623 = vpop.f32.mrf.mxu0
      %v5624 = vadd.f32 %v5363, %v5623
      %v5625 = vpop.f32.mrf.mxu0
      %v5626 = vpop.f32.mrf.mxu0
      %v5627 = vadd.f32 %v5363, %v5626
      %v5628 = vpop.f32.mrf.mxu0
      %5629 = vmatprep.mubr.bf16.mxu0 %v5233
      %5630 = vmatmul.mubr.bf16.gmra.mxu0 %v5232
      %v5631 = vpop.f32.mrf.mxu0
      %v5632 = vadd.f32 %v5363, %v5631
      %v5633 = vpop.f32.mrf.mxu0
      %v5634 = vpop.f32.mrf.mxu0
      %v5635 = vadd.f32 %v5363, %v5634
      %v5636 = vpop.f32.mrf.mxu0
      %5637 = vmatprep.mubr.bf16.mxu0 %v5235
      %5638 = vmatmul.mubr.bf16.gmra.mxu0 %v5234
      %v5639 = vpop.f32.mrf.mxu0
      %v5640 = vadd.f32 %v5363, %v5639
      %v5641 = vpop.f32.mrf.mxu0
      %v5642 = vpop.f32.mrf.mxu0
      %v5643 = vadd.f32 %v5363, %v5642
      %v5644 = vpop.f32.mrf.mxu0
      %5645 = vmatprep.mubr.bf16.mxu0 %v5237
      %5646 = vmatmul.mubr.bf16.gmra.mxu0 %v5236
      %v5647 = vpop.f32.mrf.mxu0
      %v5648 = vadd.f32 %v5363, %v5647
      %v5649 = vpop.f32.mrf.mxu0
      %v5650 = vpop.f32.mrf.mxu0
      %v5651 = vadd.f32 %v5363, %v5650
      %v5652 = vpop.f32.mrf.mxu0
      %5653 = vmatprep.mubr.bf16.mxu0 %v5239
      %5654 = vmatmul.mubr.bf16.gmra.mxu0 %v5238
      %v5655 = vpop.f32.mrf.mxu0
      %v5656 = vadd.f32 %v5363, %v5655
      %v5657 = vpop.f32.mrf.mxu0
      %v5658 = vpop.f32.mrf.mxu0
      %v5659 = vadd.f32 %v5363, %v5658
      %v5660 = vpop.f32.mrf.mxu0
      %5661 = vmatprep.mubr.bf16.mxu0 %v5241
      %5662 = vmatmul.mubr.bf16.gmra.mxu0 %v5240
      %v5663 = vpop.f32.mrf.mxu0
      %v5664 = vadd.f32 %v5363, %v5663
      %v5665 = vpop.f32.mrf.mxu0
      %v5666 = vpop.f32.mrf.mxu0
      %v5667 = vadd.f32 %v5363, %v5666
      %v5668 = vpop.f32.mrf.mxu0
      %5669 = vmatprep.mubr.bf16.mxu0 %v5243
      %5670 = vmatmul.mubr.bf16.gmra.mxu0 %v5242
      %v5671 = vpop.f32.mrf.mxu0
      %v5672 = vadd.f32 %v5363, %v5671
      %v5673 = vpop.f32.mrf.mxu0
      %v5674 = vpop.f32.mrf.mxu0
      %v5675 = vadd.f32 %v5363, %v5674
      %v5676 = vpop.f32.mrf.mxu0
      %5677 = vmatprep.mubr.bf16.mxu0 %v5245
      %5678 = vmatmul.mubr.bf16.gmra.mxu0 %v5244
      %v5679 = vpop.f32.mrf.mxu0
      %v5680 = vadd.f32 %v5363, %v5679
      %v5681 = vpop.f32.mrf.mxu0
      %v5682 = vpop.f32.mrf.mxu0
      %v5683 = vadd.f32 %v5363, %v5682
      %v5684 = vpop.f32.mrf.mxu0
      %5685 = vmatprep.mubr.bf16.mxu0 %v5247
      %5686 = vmatmul.mubr.bf16.gmra.mxu0 %v5246
      %v5687 = vpop.f32.mrf.mxu0
      %v5688 = vadd.f32 %v5363, %v5687
      %v5689 = vpop.f32.mrf.mxu0
      %v5690 = vpop.f32.mrf.mxu0
      %v5691 = vadd.f32 %v5363, %v5690
      %v5692 = vpop.f32.mrf.mxu0
      %5693 = vmatprep.mubr.bf16.mxu0 %v5249
      %5694 = vmatmul.mubr.bf16.gmra.mxu0 %v5248
      %v5695 = vpop.f32.mrf.mxu0
      %v5696 = vadd.f32 %v5363, %v5695
      %v5697 = vpop.f32.mrf.mxu0
      %v5698 = vpop.f32.mrf.mxu0
      %v5699 = vadd.f32 %v5363, %v5698
      %v5700 = vpop.f32.mrf.mxu0
      %5701 = vmatprep.mubr.bf16.mxu0 %v5251
      %5702 = vmatmul.mubr.bf16.gmra.mxu0 %v5250
      %v5703 = vpop.f32.mrf.mxu0
      %v5704 = vadd.f32 %v5363, %v5703
      %v5705 = vpop.f32.mrf.mxu0
      %v5706 = vpop.f32.mrf.mxu0
      %v5707 = vadd.f32 %v5363, %v5706
      %v5708 = vpop.f32.mrf.mxu0
      %5709 = vmatprep.mubr.bf16.mxu0 %v5253
      %5710 = vmatmul.mubr.bf16.gmra.mxu0 %v5252
      %v5711 = vpop.f32.mrf.mxu0
      %v5712 = vadd.f32 %v5363, %v5711
      %v5713 = vpop.f32.mrf.mxu0
      %v5714 = vpop.f32.mrf.mxu0
      %v5715 = vadd.f32 %v5363, %v5714
      %v5716 = vpop.f32.mrf.mxu0
      %5717 = vmatprep.mubr.bf16.mxu0 %v5255
      %5718 = vmatmul.mubr.bf16.gmra.mxu0 %v5254
      %v5719 = vpop.f32.mrf.mxu0
      %v5720 = vadd.f32 %v5363, %v5719
      %v5721 = vpop.f32.mrf.mxu0
      %v5722 = vpop.f32.mrf.mxu0
      %v5723 = vadd.f32 %v5363, %v5722
      %v5724 = vpop.f32.mrf.mxu0
      %5725 = vmatprep.mubr.bf16.mxu0 %v5257
      %5726 = vmatmul.mubr.bf16.gmra.mxu0 %v5256
      %v5727 = vpop.f32.mrf.mxu0
      %v5728 = vadd.f32 %v5363, %v5727
      %v5729 = vpop.f32.mrf.mxu0
      %v5730 = vpop.f32.mrf.mxu0
      %v5731 = vadd.f32 %v5363, %v5730
      %v5732 = vpop.f32.mrf.mxu0
      %5733 = vmatprep.mubr.bf16.mxu0 %v5259
      %5734 = vmatmul.mubr.bf16.gmra.mxu0 %v5258
      %v5735 = vpop.f32.mrf.mxu0
      %v5736 = vadd.f32 %v5363, %v5735
      %v5737 = vpop.f32.mrf.mxu0
      %v5738 = vpop.f32.mrf.mxu0
      %v5739 = vadd.f32 %v5363, %v5738
      %v5740 = vpop.f32.mrf.mxu0
      %5741 = vmatprep.mubr.bf16.mxu0 %v5261
      %5742 = vmatmul.mubr.bf16.gmra.mxu0 %v5260
      %v5743 = vpop.f32.mrf.mxu0
      %v5744 = vadd.f32 %v5363, %v5743
      %v5745 = vpop.f32.mrf.mxu0
      %v5746 = vpop.f32.mrf.mxu0
      %v5747 = vadd.f32 %v5363, %v5746
      %v5748 = vpop.f32.mrf.mxu0
      %5749 = vmatprep.mubr.bf16.mxu0 %v5263
      %5750 = vmatmul.mubr.bf16.gmra.mxu0 %v5262
      %v5751 = vpop.f32.mrf.mxu0
      %v5752 = vadd.f32 %v5363, %v5751
      %v5753 = vpop.f32.mrf.mxu0
      %v5754 = vpop.f32.mrf.mxu0
      %v5755 = vadd.f32 %v5363, %v5754
      %v5756 = vpop.f32.mrf.mxu0
      %5757 = vmatprep.mubr.bf16.mxu0 %v5265
      %5758 = vmatmul.mubr.bf16.gmra.mxu0 %v5264
      %v5759 = vpop.f32.mrf.mxu0
      %v5760 = vadd.f32 %v5363, %v5759
      %v5761 = vpop.f32.mrf.mxu0
      %v5762 = vpop.f32.mrf.mxu0
      %v5763 = vadd.f32 %v5363, %v5762
      %v5764 = vpop.f32.mrf.mxu0
      %5765 = vmatprep.mubr.bf16.mxu0 %v5267
      %5766 = vmatmul.mubr.bf16.gmra.mxu0 %v5266
      %v5767 = vpop.f32.mrf.mxu0
      %v5768 = vadd.f32 %v5363, %v5767
      %v5769 = vpop.f32.mrf.mxu0
      %v5770 = vpop.f32.mrf.mxu0
      %v5771 = vadd.f32 %v5363, %v5770
      %v5772 = vpop.f32.mrf.mxu0
      %5773 = vmatprep.mubr.bf16.mxu0 %v5269
      %5774 = vmatmul.mubr.bf16.gmra.mxu0 %v5268
      %v5775 = vpop.f32.mrf.mxu0
      %v5776 = vadd.f32 %v5363, %v5775
      %v5777 = vpop.f32.mrf.mxu0
      %v5778 = vpop.f32.mrf.mxu0
      %v5779 = vadd.f32 %v5363, %v5778
      %v5780 = vpop.f32.mrf.mxu0
      %5781 = vmatprep.mubr.bf16.mxu0 %v5271
      %5782 = vmatmul.mubr.bf16.gmra.mxu0 %v5270
      %v5783 = vpop.f32.mrf.mxu0
      %v5784 = vadd.f32 %v5363, %v5783
      %v5785 = vpop.f32.mrf.mxu0
      %v5786 = vpop.f32.mrf.mxu0
      %v5787 = vadd.f32 %v5363, %v5786
      %v5788 = vpop.f32.mrf.mxu0
      %5789 = vmatprep.mubr.bf16.mxu0 %v5273
      %5790 = vmatmul.mubr.bf16.gmra.mxu0 %v5272
      %v5791 = vpop.f32.mrf.mxu0
      %v5792 = vadd.f32 %v5363, %v5791
      %v5793 = vpop.f32.mrf.mxu0
      %v5794 = vpop.f32.mrf.mxu0
      %v5795 = vadd.f32 %v5363, %v5794
      %v5796 = vpop.f32.mrf.mxu0
      %5797 = vmatprep.mubr.bf16.mxu0 %v5275
      %5798 = vmatmul.mubr.bf16.gmra.mxu0 %v5274
      %v5799 = vpop.f32.mrf.mxu0
      %v5800 = vadd.f32 %v5363, %v5799
      %v5801 = vpop.f32.mrf.mxu0
      %v5802 = vpop.f32.mrf.mxu0
      %v5803 = vadd.f32 %v5363, %v5802
      %v5804 = vpop.f32.mrf.mxu0
      %5805 = vmatprep.mubr.bf16.mxu0 %v5277
      %5806 = vmatmul.mubr.bf16.gmra.mxu0 %v5276
      %v5807 = vpop.f32.mrf.mxu0
      %v5808 = vadd.f32 %v5363, %v5807
      %v5809 = vpop.f32.mrf.mxu0
      %v5810 = vpop.f32.mrf.mxu0
      %v5811 = vadd.f32 %v5363, %v5810
      %v5812 = vpop.f32.mrf.mxu0
      %5813 = vmatprep.mubr.bf16.mxu0 %v5279
      %5814 = vmatmul.mubr.bf16.gmra.mxu0 %v5278
      %v5815 = vpop.f32.mrf.mxu0
      %v5816 = vadd.f32 %v5363, %v5815
      %v5817 = vpop.f32.mrf.mxu0
      %v5818 = vpop.f32.mrf.mxu0
      %v5819 = vadd.f32 %v5363, %v5818
      %v5820 = vpop.f32.mrf.mxu0
      %5821 = vmatprep.mubr.bf16.mxu0 %v5281
      %5822 = vmatmul.mubr.bf16.gmra.mxu0 %v5280
      %v5823 = vpop.f32.mrf.mxu0
      %v5824 = vadd.f32 %v5363, %v5823
      %v5825 = vpop.f32.mrf.mxu0
      %v5826 = vpop.f32.mrf.mxu0
      %v5827 = vadd.f32 %v5363, %v5826
      %v5828 = vpop.f32.mrf.mxu0
      %5829 = vmatprep.mubr.bf16.mxu0 %v5283
      %5830 = vmatmul.mubr.bf16.gmra.mxu0 %v5282
      %v5831 = vpop.f32.mrf.mxu0
      %v5832 = vadd.f32 %v5363, %v5831
      %v5833 = vpop.f32.mrf.mxu0
      %v5834 = vpop.f32.mrf.mxu0
      %v5835 = vadd.f32 %v5363, %v5834
      %v5836 = vpop.f32.mrf.mxu0
      %5837 = vmatprep.mubr.bf16.mxu0 %v5285
      %5838 = vmatmul.mubr.bf16.gmra.mxu0 %v5284
      %v5839 = vpop.f32.mrf.mxu0
      %v5840 = vadd.f32 %v5363, %v5839
      %v5841 = vpop.f32.mrf.mxu0
      %v5842 = vpop.f32.mrf.mxu0
      %v5843 = vadd.f32 %v5363, %v5842
      %v5844 = vpop.f32.mrf.mxu0
      %5845 = vmatprep.mubr.bf16.mxu0 %v5287
      %5846 = vmatmul.mubr.bf16.gmra.mxu0 %v5286
      %v5847 = vpop.f32.mrf.mxu0
      %v5848 = vadd.f32 %v5363, %v5847
      %v5849 = vpop.f32.mrf.mxu0
      %v5850 = vpop.f32.mrf.mxu0
      %v5851 = vadd.f32 %v5363, %v5850
      %v5852 = vpop.f32.mrf.mxu0
      %5853 = vmatprep.mubr.bf16.mxu0 %v5289
      %5854 = vmatmul.mubr.bf16.gmra.mxu0 %v5288
      %v5855 = vpop.f32.mrf.mxu0
      %v5856 = vadd.f32 %v5363, %v5855
      %v5857 = vpop.f32.mrf.mxu0
      %v5858 = vpop.f32.mrf.mxu0
      %v5859 = vadd.f32 %v5363, %v5858
      %v5860 = vpop.f32.mrf.mxu0
      %5861 = vmatprep.mubr.bf16.mxu0 %v5291
      %5862 = vmatmul.mubr.bf16.gmra.mxu0 %v5290
      %v5863 = vpop.f32.mrf.mxu0
      %v5864 = vadd.f32 %v5363, %v5863
      %v5865 = vpop.f32.mrf.mxu0
      %v5866 = vpop.f32.mrf.mxu0
      %v5867 = vadd.f32 %v5363, %v5866
      %v5868 = vpop.f32.mrf.mxu0
      %5869 = vmatprep.mubr.bf16.mxu0 %v5293
      %5870 = vmatmul.mubr.bf16.gmra.mxu0 %v5292
      %v5871 = vpop.f32.mrf.mxu0
      %v5872 = vadd.f32 %v5363, %v5871
      %v5873 = vpop.f32.mrf.mxu0
      %v5874 = vpop.f32.mrf.mxu0
      %v5875 = vadd.f32 %v5363, %v5874
      %v5876 = vpop.f32.mrf.mxu0
      %5877 = vmatprep.mubr.bf16.mxu0 %v5295
      %5878 = vmatmul.mubr.bf16.gmra.mxu0 %v5294
      %v5879 = vpop.f32.mrf.mxu0
      %v5880 = vadd.f32 %v5363, %v5879
      %v5881 = vpop.f32.mrf.mxu0
      %v5882 = vpop.f32.mrf.mxu0
      %v5883 = vadd.f32 %v5363, %v5882
      %v5884 = vpop.f32.mrf.mxu0
      %5885 = vmatprep.mubr.bf16.mxu0 %v5297
      %5886 = vmatmul.mubr.bf16.gmra.mxu0 %v5296
      %v5887 = vpop.f32.mrf.mxu0
      %v5888 = vadd.f32 %v5363, %v5887
      %v5889 = vpop.f32.mrf.mxu0
      %v5890 = vpop.f32.mrf.mxu0
      %v5891 = vadd.f32 %v5363, %v5890
      %v5892 = vpop.f32.mrf.mxu0
      %5893 = vmatprep.mubr.bf16.mxu0 %v5299
      %5894 = vmatmul.mubr.bf16.gmra.mxu0 %v5298
      %v5895 = vpop.f32.mrf.mxu0
      %v5896 = vadd.f32 %v5363, %v5895
      %v5897 = vpop.f32.mrf.mxu0
      %v5898 = vpop.f32.mrf.mxu0
      %v5899 = vadd.f32 %v5363, %v5898
      %v5900 = vpop.f32.mrf.mxu0
      %5901 = vmatprep.mubr.bf16.mxu0 %v5301
      %5902 = vmatmul.mubr.bf16.gmra.mxu0 %v5300
      %v5903 = vpop.f32.mrf.mxu0
      %v5904 = vadd.f32 %v5363, %v5903
      %v5905 = vpop.f32.mrf.mxu0
      %v5906 = vpop.f32.mrf.mxu0
      %v5907 = vadd.f32 %v5363, %v5906
      %v5908 = vpop.f32.mrf.mxu0
      %5909 = vmatprep.mubr.bf16.mxu0 %v5303
      %5910 = vmatmul.mubr.bf16.gmra.mxu0 %v5302
      %v5911 = vpop.f32.mrf.mxu0
      %v5912 = vadd.f32 %v5363, %v5911
      %v5913 = vpop.f32.mrf.mxu0
      %v5914 = vpop.f32.mrf.mxu0
      %v5915 = vadd.f32 %v5363, %v5914
      %v5916 = vpop.f32.mrf.mxu0
      %5917 = vmatprep.mubr.bf16.mxu0 %v5305
      %5918 = vmatmul.mubr.bf16.gmra.mxu0 %v5304
      %v5919 = vpop.f32.mrf.mxu0
      %v5920 = vadd.f32 %v5363, %v5919
      %v5921 = vpop.f32.mrf.mxu0
      %v5922 = vpop.f32.mrf.mxu0
      %v5923 = vadd.f32 %v5363, %v5922
      %v5924 = vpop.f32.mrf.mxu0
      %5925 = vmatprep.mubr.bf16.mxu0 %v5307
      %5926 = vmatmul.mubr.bf16.gmra.mxu0 %v5306
      %v5927 = vpop.f32.mrf.mxu0
      %v5928 = vadd.f32 %v5363, %v5927
      %v5929 = vpop.f32.mrf.mxu0
      %v5930 = vpop.f32.mrf.mxu0
      %v5931 = vadd.f32 %v5363, %v5930
      %v5932 = vpop.f32.mrf.mxu0
      %5933 = vmatprep.mubr.bf16.mxu0 %v5309
      %5934 = vmatmul.mubr.bf16.gmra.mxu0 %v5308
      %v5935 = vpop.f32.mrf.mxu0
      %v5936 = vadd.f32 %v5363, %v5935
      %v5937 = vpop.f32.mrf.mxu0
      %v5938 = vpop.f32.mrf.mxu0
      %v5939 = vadd.f32 %v5363, %v5938
      %v5940 = vpop.f32.mrf.mxu0
      %5941 = vmatprep.mubr.bf16.mxu0 %v5311
      %5942 = vmatmul.mubr.bf16.gmra.mxu0 %v5310
      %v5943 = vpop.f32.mrf.mxu0
      %v5944 = vadd.f32 %v5363, %v5943
      %v5945 = vpop.f32.mrf.mxu0
      %v5946 = vpop.f32.mrf.mxu0
      %v5947 = vadd.f32 %v5363, %v5946
      %v5948 = vpop.f32.mrf.mxu0
      %5949 = vmatprep.mubr.bf16.mxu0 %v5313
      %5950 = vmatmul.mubr.bf16.gmra.mxu0 %v5312
      %v5951 = vpop.f32.mrf.mxu0
      %v5952 = vadd.f32 %v5363, %v5951
      %v5953 = vpop.f32.mrf.mxu0
      %v5954 = vpop.f32.mrf.mxu0
      %v5955 = vadd.f32 %v5363, %v5954
      %v5956 = vpop.f32.mrf.mxu0
      %5957 = vmatprep.mubr.bf16.mxu0 %v5315
      %5958 = vmatmul.mubr.bf16.gmra.mxu0 %v5314
      %v5959 = vpop.f32.mrf.mxu0
      %v5960 = vadd.f32 %v5363, %v5959
      %v5961 = vpop.f32.mrf.mxu0
      %v5962 = vpop.f32.mrf.mxu0
      %v5963 = vadd.f32 %v5363, %v5962
      %v5964 = vpop.f32.mrf.mxu0
      %5965 = vmatprep.mubr.bf16.mxu0 %v5317
      %5966 = vmatmul.mubr.bf16.gmra.mxu0 %v5316
      %v5967 = vpop.f32.mrf.mxu0
      %v5968 = vadd.f32 %v5363, %v5967
      %v5969 = vpop.f32.mrf.mxu0
      %v5970 = vpop.f32.mrf.mxu0
      %v5971 = vadd.f32 %v5363, %v5970
      %v5972 = vpop.f32.mrf.mxu0
      %5973 = vmatprep.mubr.bf16.mxu0 %v5319
      %5974 = vmatmul.mubr.bf16.gmra.mxu0 %v5318
      %v5975 = vpop.f32.mrf.mxu0
      %v5976 = vadd.f32 %v5363, %v5975
      %v5977 = vpop.f32.mrf.mxu0
      %v5978 = vpop.f32.mrf.mxu0
      %v5979 = vadd.f32 %v5363, %v5978
      %v5980 = vpop.f32.mrf.mxu0
      %5981 = vmatprep.mubr.bf16.mxu0 %v5321
      %5982 = vmatmul.mubr.bf16.gmra.mxu0 %v5320
      %v5983 = vpop.f32.mrf.mxu0
      %v5984 = vadd.f32 %v5363, %v5983
      %v5985 = vpop.f32.mrf.mxu0
      %v5986 = vpop.f32.mrf.mxu0
      %v5987 = vadd.f32 %v5363, %v5986
      %v5988 = vpop.f32.mrf.mxu0
      %5989 = vmatprep.mubr.bf16.mxu0 %v5323
      %5990 = vmatmul.mubr.bf16.gmra.mxu0 %v5322
      %v5991 = vpop.f32.mrf.mxu0
      %v5992 = vadd.f32 %v5363, %v5991
      %v5993 = vpop.f32.mrf.mxu0
      %v5994 = vpop.f32.mrf.mxu0
      %v5995 = vadd.f32 %v5363, %v5994
      %v5996 = vpop.f32.mrf.mxu0
      %5997 = vmatprep.mubr.bf16.mxu0 %v5325
      %5998 = vmatmul.mubr.bf16.gmra.mxu0 %v5324
      %v5999 = vpop.f32.mrf.mxu0
      %v6000 = vadd.f32 %v5363, %v5999
      %v6001 = vpop.f32.mrf.mxu0
      %v6002 = vpop.f32.mrf.mxu0
      %v6003 = vadd.f32 %v5363, %v6002
      %v6004 = vpop.f32.mrf.mxu0
      %6005 = vdwg.mxu0
      %v6006 = vtanh.pop %v5496
      %v6007 = vtanh.pop %v5499
      %v6008 = vtanh.pop %v5504
      %v6009 = vtanh.pop %v5507
      %v6010 = vtanh.pop %v5512
      %v6011 = vtanh.pop %v5515
      %v6012 = vtanh.pop %v5520
      %v6013 = vtanh.pop %v5523
      %v6014 = vtanh.pop %v5528
      %v6015 = vtanh.pop %v5531
      %v6016 = vtanh.pop %v5536
      %v6017 = vtanh.pop %v5539
      %v6018 = vtanh.pop %v5544
      %v6019 = vtanh.pop %v5547
      %v6020 = vtanh.pop %v5552
      %v6021 = vtanh.pop %v5555
      %v6022 = vtanh.pop %v5560
      %v6023 = vtanh.pop %v5563
      %v6024 = vtanh.pop %v5568
      %v6025 = vtanh.pop %v5571
      %v6026 = vtanh.pop %v5576
      %v6027 = vtanh.pop %v5579
      %v6028 = vtanh.pop %v5584
      %v6029 = vtanh.pop %v5587
      %v6030 = vtanh.pop %v5592
      %v6031 = vtanh.pop %v5595
      %v6032 = vtanh.pop %v5600
      %v6033 = vtanh.pop %v5603
      %v6034 = vtanh.pop %v5608
      %v6035 = vtanh.pop %v5611
      %v6036 = vtanh.pop %v5616
      %v6037 = vtanh.pop %v5619
      %v6038 = vtanh.pop %v5624
      %v6039 = vtanh.pop %v5627
      %v6040 = vtanh.pop %v5632
      %v6041 = vtanh.pop %v5635
      %v6042 = vtanh.pop %v5640
      %v6043 = vtanh.pop %v5643
      %v6044 = vtanh.pop %v5648
      %v6045 = vtanh.pop %v5651
      %v6046 = vtanh.pop %v5656
      %v6047 = vtanh.pop %v5659
      %v6048 = vtanh.pop %v5664
      %v6049 = vtanh.pop %v5667
      %v6050 = vtanh.pop %v5672
      %v6051 = vtanh.pop %v5675
      %v6052 = vtanh.pop %v5680
      %v6053 = vtanh.pop %v5683
      %v6054 = vtanh.pop %v5688
      %v6055 = vtanh.pop %v5691
      %v6056 = vtanh.pop %v5696
      %v6057 = vtanh.pop %v5699
      %v6058 = vtanh.pop %v5704
      %v6059 = vtanh.pop %v5707
      %v6060 = vtanh.pop %v5712
      %v6061 = vtanh.pop %v5715
      %v6062 = vtanh.pop %v5720
      %v6063 = vtanh.pop %v5723
      %v6064 = vtanh.pop %v5728
      %v6065 = vtanh.pop %v5731
      %v6066 = vtanh.pop %v5736
      %v6067 = vtanh.pop %v5739
      %v6068 = vtanh.pop %v5744
      %v6069 = vtanh.pop %v5747
      %v6070 = vtanh.pop %v5752
      %v6071 = vtanh.pop %v5755
      %v6072 = vtanh.pop %v5760
      %v6073 = vtanh.pop %v5763
      %v6074 = vtanh.pop %v5768
      %v6075 = vtanh.pop %v5771
      %v6076 = vtanh.pop %v5776
      %v6077 = vtanh.pop %v5779
      %v6078 = vtanh.pop %v5784
      %v6079 = vtanh.pop %v5787
      %v6080 = vtanh.pop %v5792
      %v6081 = vtanh.pop %v5795
      %v6082 = vtanh.pop %v5800
      %v6083 = vtanh.pop %v5803
      %v6084 = vtanh.pop %v5808
      %v6085 = vtanh.pop %v5811
      %v6086 = vtanh.pop %v5816
      %v6087 = vtanh.pop %v5819
      %v6088 = vtanh.pop %v5824
      %v6089 = vtanh.pop %v5827
      %v6090 = vtanh.pop %v5832
      %v6091 = vtanh.pop %v5835
      %v6092 = vtanh.pop %v5840
      %v6093 = vtanh.pop %v5843
      %v6094 = vtanh.pop %v5848
      %v6095 = vtanh.pop %v5851
      %v6096 = vtanh.pop %v5856
      %v6097 = vtanh.pop %v5859
      %v6098 = vtanh.pop %v5864
      %v6099 = vtanh.pop %v5867
      %v6100 = vtanh.pop %v5872
      %v6101 = vtanh.pop %v5875
      %v6102 = vtanh.pop %v5880
      %v6103 = vtanh.pop %v5883
      %v6104 = vtanh.pop %v5888
      %v6105 = vtanh.pop %v5891
      %v6106 = vtanh.pop %v5896
      %v6107 = vtanh.pop %v5899
      %v6108 = vtanh.pop %v5904
      %v6109 = vtanh.pop %v5907
      %v6110 = vtanh.pop %v5912
      %v6111 = vtanh.pop %v5915
      %v6112 = vtanh.pop %v5920
      %v6113 = vtanh.pop %v5923
      %v6114 = vtanh.pop %v5928
      %v6115 = vtanh.pop %v5931
      %v6116 = vtanh.pop %v5936
      %v6117 = vtanh.pop %v5939
      %v6118 = vtanh.pop %v5944
      %v6119 = vtanh.pop %v5947
      %v6120 = vtanh.pop %v5952
      %v6121 = vtanh.pop %v5955
      %v6122 = vtanh.pop %v5960
      %v6123 = vtanh.pop %v5963
      %v6124 = vtanh.pop %v5968
      %v6125 = vtanh.pop %v5971
      %v6126 = vtanh.pop %v5976
      %v6127 = vtanh.pop %v5979
      %v6128 = vtanh.pop %v5984
      %v6129 = vtanh.pop %v5987
      %v6130 = vtanh.pop %v5992
      %v6131 = vtanh.pop %v5995
      %v6132 = vtanh.pop %v6000
      %v6133 = vtanh.pop %v6003
      %vm6134 = vcmask 7168
      %6135 = vst.msk [vmem:[%s282] sm:$0xff] %vm6134, %v6006
      %6136 = vst.msk [vmem:[%s282 + $0x8] sm:$0xff] %vm6134, %v6007
      %6137 = vst.msk [vmem:[%s282 + $0x10] sm:$0xff] %vm6134, %v6008
      %6138 = vst.msk [vmem:[%s282 + $0x18] sm:$0xff] %vm6134, %v6009
      %6139 = vst.msk [vmem:[%s282 + $0x20] sm:$0xff] %vm6134, %v6010
      %6140 = vst.msk [vmem:[%s282 + $0x28] sm:$0xff] %vm6134, %v6011
      %6141 = vst.msk [vmem:[%s282 + $0x30] sm:$0xff] %vm6134, %v6012
      %6142 = vst.msk [vmem:[%s282 + $0x38] sm:$0xff] %vm6134, %v6013
      %6143 = vst.msk [vmem:[%s282 + $0x40] sm:$0xff] %vm6134, %v6014
      %6144 = vst.msk [vmem:[%s282 + $0x48] sm:$0xff] %vm6134, %v6015
      %6145 = vst.msk [vmem:[%s282 + $0x50] sm:$0xff] %vm6134, %v6016
      %6146 = vst.msk [vmem:[%s282 + $0x58] sm:$0xff] %vm6134, %v6017
      %6147 = vst.msk [vmem:[%s282 + $0x60] sm:$0xff] %vm6134, %v6018
      %6148 = vst.msk [vmem:[%s282 + $0x68] sm:$0xff] %vm6134, %v6019
      %6149 = vst.msk [vmem:[%s282 + $0x70] sm:$0xff] %vm6134, %v6020
      %6150 = vst.msk [vmem:[%s282 + $0x78] sm:$0xff] %vm6134, %v6021
      %6151 = vst.msk [vmem:[%s282 + $0x80] sm:$0xff] %vm6134, %v6022
      %6152 = vst.msk [vmem:[%s282 + $0x88] sm:$0xff] %vm6134, %v6023
      %6153 = vst.msk [vmem:[%s282 + $0x90] sm:$0xff] %vm6134, %v6024
      %6154 = vst.msk [vmem:[%s282 + $0x98] sm:$0xff] %vm6134, %v6025
      %6155 = vst.msk [vmem:[%s282 + $0xa0] sm:$0xff] %vm6134, %v6026
      %6156 = vst.msk [vmem:[%s282 + $0xa8] sm:$0xff] %vm6134, %v6027
      %6157 = vst.msk [vmem:[%s282 + $0xb0] sm:$0xff] %vm6134, %v6028
      %6158 = vst.msk [vmem:[%s282 + $0xb8] sm:$0xff] %vm6134, %v6029
      %6159 = vst.msk [vmem:[%s282 + $0xc0] sm:$0xff] %vm6134, %v6030
      %6160 = vst.msk [vmem:[%s282 + $0xc8] sm:$0xff] %vm6134, %v6031
      %6161 = vst.msk [vmem:[%s282 + $0xd0] sm:$0xff] %vm6134, %v6032
      %6162 = vst.msk [vmem:[%s282 + $0xd8] sm:$0xff] %vm6134, %v6033
      %6163 = vst.msk [vmem:[%s282 + $0xe0] sm:$0xff] %vm6134, %v6034
      %6164 = vst.msk [vmem:[%s282 + $0xe8] sm:$0xff] %vm6134, %v6035
      %6165 = vst.msk [vmem:[%s282 + $0xf0] sm:$0xff] %vm6134, %v6036
      %6166 = vst.msk [vmem:[%s282 + $0xf8] sm:$0xff] %vm6134, %v6037
      %6167 = vst.msk [vmem:[%s282 + $0x100] sm:$0xff] %vm6134, %v6038
      %6168 = vst.msk [vmem:[%s282 + $0x108] sm:$0xff] %vm6134, %v6039
      %6169 = vst.msk [vmem:[%s282 + $0x110] sm:$0xff] %vm6134, %v6040
      %6170 = vst.msk [vmem:[%s282 + $0x118] sm:$0xff] %vm6134, %v6041
      %6171 = vst.msk [vmem:[%s282 + $0x120] sm:$0xff] %vm6134, %v6042
      %6172 = vst.msk [vmem:[%s282 + $0x128] sm:$0xff] %vm6134, %v6043
      %6173 = vst.msk [vmem:[%s282 + $0x130] sm:$0xff] %vm6134, %v6044
      %6174 = vst.msk [vmem:[%s282 + $0x138] sm:$0xff] %vm6134, %v6045
      %6175 = vst.msk [vmem:[%s282 + $0x140] sm:$0xff] %vm6134, %v6046
      %6176 = vst.msk [vmem:[%s282 + $0x148] sm:$0xff] %vm6134, %v6047
      %6177 = vst.msk [vmem:[%s282 + $0x150] sm:$0xff] %vm6134, %v6048
      %6178 = vst.msk [vmem:[%s282 + $0x158] sm:$0xff] %vm6134, %v6049
      %6179 = vst.msk [vmem:[%s282 + $0x160] sm:$0xff] %vm6134, %v6050
      %6180 = vst.msk [vmem:[%s282 + $0x168] sm:$0xff] %vm6134, %v6051
      %6181 = vst.msk [vmem:[%s282 + $0x170] sm:$0xff] %vm6134, %v6052
      %6182 = vst.msk [vmem:[%s282 + $0x178] sm:$0xff] %vm6134, %v6053
      %6183 = vst.msk [vmem:[%s282 + $0x180] sm:$0xff] %vm6134, %v6054
      %6184 = vst.msk [vmem:[%s282 + $0x188] sm:$0xff] %vm6134, %v6055
      %6185 = vst.msk [vmem:[%s282 + $0x190] sm:$0xff] %vm6134, %v6056
      %6186 = vst.msk [vmem:[%s282 + $0x198] sm:$0xff] %vm6134, %v6057
      %6187 = vst.msk [vmem:[%s282 + $0x1a0] sm:$0xff] %vm6134, %v6058
      %6188 = vst.msk [vmem:[%s282 + $0x1a8] sm:$0xff] %vm6134, %v6059
      %6189 = vst.msk [vmem:[%s282 + $0x1b0] sm:$0xff] %vm6134, %v6060
      %6190 = vst.msk [vmem:[%s282 + $0x1b8] sm:$0xff] %vm6134, %v6061
      %6191 = vst.msk [vmem:[%s282 + $0x1c0] sm:$0xff] %vm6134, %v6062
      %6192 = vst.msk [vmem:[%s282 + $0x1c8] sm:$0xff] %vm6134, %v6063
      %6193 = vst.msk [vmem:[%s282 + $0x1d0] sm:$0xff] %vm6134, %v6064
      %6194 = vst.msk [vmem:[%s282 + $0x1d8] sm:$0xff] %vm6134, %v6065
      %6195 = vst.msk [vmem:[%s282 + $0x1e0] sm:$0xff] %vm6134, %v6066
      %6196 = vst.msk [vmem:[%s282 + $0x1e8] sm:$0xff] %vm6134, %v6067
      %6197 = vst.msk [vmem:[%s282 + $0x1f0] sm:$0xff] %vm6134, %v6068
      %6198 = vst.msk [vmem:[%s282 + $0x1f8] sm:$0xff] %vm6134, %v6069
      %6199 = vst.msk [vmem:[%s282 + $0x200] sm:$0xff] %vm6134, %v6070
      %6200 = vst.msk [vmem:[%s282 + $0x208] sm:$0xff] %vm6134, %v6071
      %6201 = vst.msk [vmem:[%s282 + $0x210] sm:$0xff] %vm6134, %v6072
      %6202 = vst.msk [vmem:[%s282 + $0x218] sm:$0xff] %vm6134, %v6073
      %6203 = vst.msk [vmem:[%s282 + $0x220] sm:$0xff] %vm6134, %v6074
      %6204 = vst.msk [vmem:[%s282 + $0x228] sm:$0xff] %vm6134, %v6075
      %6205 = vst.msk [vmem:[%s282 + $0x230] sm:$0xff] %vm6134, %v6076
      %6206 = vst.msk [vmem:[%s282 + $0x238] sm:$0xff] %vm6134, %v6077
      %6207 = vst.msk [vmem:[%s282 + $0x240] sm:$0xff] %vm6134, %v6078
      %6208 = vst.msk [vmem:[%s282 + $0x248] sm:$0xff] %vm6134, %v6079
      %6209 = vst.msk [vmem:[%s282 + $0x250] sm:$0xff] %vm6134, %v6080
      %6210 = vst.msk [vmem:[%s282 + $0x258] sm:$0xff] %vm6134, %v6081
      %6211 = vst.msk [vmem:[%s282 + $0x260] sm:$0xff] %vm6134, %v6082
      %6212 = vst.msk [vmem:[%s282 + $0x268] sm:$0xff] %vm6134, %v6083
      %6213 = vst.msk [vmem:[%s282 + $0x270] sm:$0xff] %vm6134, %v6084
      %6214 = vst.msk [vmem:[%s282 + $0x278] sm:$0xff] %vm6134, %v6085
      %6215 = vst.msk [vmem:[%s282 + $0x280] sm:$0xff] %vm6134, %v6086
      %6216 = vst.msk [vmem:[%s282 + $0x288] sm:$0xff] %vm6134, %v6087
      %6217 = vst.msk [vmem:[%s282 + $0x290] sm:$0xff] %vm6134, %v6088
      %6218 = vst.msk [vmem:[%s282 + $0x298] sm:$0xff] %vm6134, %v6089
      %6219 = vst.msk [vmem:[%s282 + $0x2a0] sm:$0xff] %vm6134, %v6090
      %6220 = vst.msk [vmem:[%s282 + $0x2a8] sm:$0xff] %vm6134, %v6091
      %6221 = vst.msk [vmem:[%s282 + $0x2b0] sm:$0xff] %vm6134, %v6092
      %6222 = vst.msk [vmem:[%s282 + $0x2b8] sm:$0xff] %vm6134, %v6093
      %6223 = vst.msk [vmem:[%s282 + $0x2c0] sm:$0xff] %vm6134, %v6094
      %6224 = vst.msk [vmem:[%s282 + $0x2c8] sm:$0xff] %vm6134, %v6095
      %6225 = vst.msk [vmem:[%s282 + $0x2d0] sm:$0xff] %vm6134, %v6096
      %6226 = vst.msk [vmem:[%s282 + $0x2d8] sm:$0xff] %vm6134, %v6097
      %6227 = vst.msk [vmem:[%s282 + $0x2e0] sm:$0xff] %vm6134, %v6098
      %6228 = vst.msk [vmem:[%s282 + $0x2e8] sm:$0xff] %vm6134, %v6099
      %6229 = vst.msk [vmem:[%s282 + $0x2f0] sm:$0xff] %vm6134, %v6100
      %6230 = vst.msk [vmem:[%s282 + $0x2f8] sm:$0xff] %vm6134, %v6101
      %6231 = vst.msk [vmem:[%s282 + $0x300] sm:$0xff] %vm6134, %v6102
      %6232 = vst.msk [vmem:[%s282 + $0x308] sm:$0xff] %vm6134, %v6103
      %6233 = vst.msk [vmem:[%s282 + $0x310] sm:$0xff] %vm6134, %v6104
      %6234 = vst.msk [vmem:[%s282 + $0x318] sm:$0xff] %vm6134, %v6105
      %6235 = vst.msk [vmem:[%s282 + $0x320] sm:$0xff] %vm6134, %v6106
      %6236 = vst.msk [vmem:[%s282 + $0x328] sm:$0xff] %vm6134, %v6107
      %6237 = vst.msk [vmem:[%s282 + $0x330] sm:$0xff] %vm6134, %v6108
      %6238 = vst.msk [vmem:[%s282 + $0x338] sm:$0xff] %vm6134, %v6109
      %6239 = vst.msk [vmem:[%s282 + $0x340] sm:$0xff] %vm6134, %v6110
      %6240 = vst.msk [vmem:[%s282 + $0x348] sm:$0xff] %vm6134, %v6111
      %6241 = vst.msk [vmem:[%s282 + $0x350] sm:$0xff] %vm6134, %v6112
      %6242 = vst.msk [vmem:[%s282 + $0x358] sm:$0xff] %vm6134, %v6113
      %6243 = vst.msk [vmem:[%s282 + $0x360] sm:$0xff] %vm6134, %v6114
      %6244 = vst.msk [vmem:[%s282 + $0x368] sm:$0xff] %vm6134, %v6115
      %6245 = vst.msk [vmem:[%s282 + $0x370] sm:$0xff] %vm6134, %v6116
      %6246 = vst.msk [vmem:[%s282 + $0x378] sm:$0xff] %vm6134, %v6117
      %6247 = vst.msk [vmem:[%s282 + $0x380] sm:$0xff] %vm6134, %v6118
      %6248 = vst.msk [vmem:[%s282 + $0x388] sm:$0xff] %vm6134, %v6119
      %6249 = vst.msk [vmem:[%s282 + $0x390] sm:$0xff] %vm6134, %v6120
      %6250 = vst.msk [vmem:[%s282 + $0x398] sm:$0xff] %vm6134, %v6121
      %6251 = vst.msk [vmem:[%s282 + $0x3a0] sm:$0xff] %vm6134, %v6122
      %6252 = vst.msk [vmem:[%s282 + $0x3a8] sm:$0xff] %vm6134, %v6123
      %6253 = vst.msk [vmem:[%s282 + $0x3b0] sm:$0xff] %vm6134, %v6124
      %6254 = vst.msk [vmem:[%s282 + $0x3b8] sm:$0xff] %vm6134, %v6125
      %6255 = vst.msk [vmem:[%s282 + $0x3c0] sm:$0xff] %vm6134, %v6126
      %6256 = vst.msk [vmem:[%s282 + $0x3c8] sm:$0xff] %vm6134, %v6127
      %6257 = vst.msk [vmem:[%s282 + $0x3d0] sm:$0xff] %vm6134, %v6128
      %6258 = vst.msk [vmem:[%s282 + $0x3d8] sm:$0xff] %vm6134, %v6129
      %6259 = vst.msk [vmem:[%s282 + $0x3e0] sm:$0xff] %vm6134, %v6130
      %6260 = vst.msk [vmem:[%s282 + $0x3e8] sm:$0xff] %vm6134, %v6131
      %6261 = vst.msk [vmem:[%s282 + $0x3f0] sm:$0xff] %vm6134, %v6132
      %6262 = vst.msk [vmem:[%s282 + $0x3f8] sm:$0xff] %vm6134, %v6133
      %s6263 = smul.u32 128, %s20
      %p6264 = scmp.lt.s32.totalorder %s6263, 255
      %s6265 = scalar_select %p6264, %s6263, 255
      %s6266 = smul.addr %s6265, 8
      %s6267 = scalar_lea.vmem %s7, %s6266
      // Predicated region
      $region49: #{tpu_custom_call.1} parent=47 // pred_check
        %p6268 = pneg %p190
      $region50: #{tpu_custom_call.1} parent=47 // pred_check_branch
        %6270 = sbr.rel (%p6268) target = $region52
      $region51: #{tpu_custom_call.1} parent=47 // pred_region
        %s6271 = smul.u32 128, %s20
      $region52: #{tpu_custom_call.1} parent=47 // pred_fallthru
        _
    $region48: #{tpu_custom_call.1} parent=5 // pred_fallthru
      _
    %p6272 = scmp.le.s32.totalorder 2, %s15
    // Predicated region
    $region53: #{tpu_custom_call.1} parent=5 // pred_check
      %p6273 = pneg %p6272
    $region54: #{tpu_custom_call.1} parent=5 // pred_check_branch
      %6275 = sbr.rel (%p6273) target = $region56
    $region55: #{tpu_custom_call.1} parent=5 // pred_region
      %s6276 = ssub.s32 %s15, 2
      // Predicated region
      $region57: #{tpu_custom_call.1} parent=55 // pred_check
        %p6277 = pneg %p196
      $region58: #{tpu_custom_call.1} parent=55 // pred_check_branch
        %6279 = sbr.rel (%p6277) target = $region60
      $region59: #{tpu_custom_call.1} parent=55 // pred_region
        %s6280 = smul.u32 128, %s21
        %p6281 = scmp.lt.s32.totalorder %s6280, 255
        %s6282 = scalar_select %p6281, %s6280, 255
        %s6283 = smul.addr %s6282, 8
        %s6284 = scalar_lea.vmem %s7, %s6283
      $region60: #{tpu_custom_call.1} parent=55 // pred_fallthru
        _
    $region56: #{tpu_custom_call.1} parent=5 // pred_fallthru
      _
  $region6: #{tpu_custom_call.1} parent=0 // loop_footer
    %s19 = sadd.s32 1, %s15
  $region7: #{tpu_custom_call.1} parent=0 // loop_footer_branch
    %14 = sbr.rel target = $region3
  $region8: #{tpu_custom_call.1} parent=0 // loop_exit
    _

</llo_original>
